<compile_context>
chip_gen: v7x
topology: tpu7x:2x2x1
jax: 0.10.0
libtpu: 0.0.40
codegen_flags: <defaults>
</compile_context>

<pallas_src>
import math
import functools

import jax
import jax.numpy as jnp
from jax.experimental import pallas as pl
from jax.experimental.pallas import tpu as pltpu

F32 = jnp.float32
BF16 = jnp.bfloat16
LN_EPS = 1e-5


def _layer_norm(y, g, b):
    mu = jnp.mean(y, axis=-1, keepdims=True)
    var = jnp.mean((y - mu) ** 2, axis=-1, keepdims=True)
    return (y - mu) * jax.lax.rsqrt(var + LN_EPS) * g + b


def _row_tile(n, target=256):
    # Multiple-of-8 row tile, capped at `target`, and small enough to give the
    # pipeline (and v7x's second TensorCore) at least two grid steps.
    t = min(target, max(8, (n // 2 // 8) * 8))
    return min(t, n)


# --------------------------------------------------------------------------
# (1) fused self-attention block + cross-attn sampling / attention projections
# --------------------------------------------------------------------------
def _self_attn_kernel(H, scale, tgt_ref, pos_ref, wqk_ref, bqk_ref, wv_ref,
                      bv_ref, wo_ref, bo_ref, g_ref, bt_ref, woff_ref,
                      boff_ref, wat_ref, bat_ref, o_ref, off_ref, logit_ref,
                      head_buf):
    tgt = tgt_ref[0]                                       # (Q, D) f32
    pos = pos_ref[0]
    Q, D = tgt.shape
    hd = D // H
    qk_in = (tgt + pos).astype(BF16)
    # q and k share the same input -> single (D, 2D) matmul
    qk = jnp.dot(qk_in, wqk_ref[...], preferred_element_type=F32) + bqk_ref[...]
    v = jnp.dot(tgt.astype(BF16), wv_ref[...],
                preferred_element_type=F32) + bv_ref[...]
    for h in range(H):                                     # small static H
        lo = h * hd
        qh = qk[:, lo:lo + hd].astype(BF16)
        kh = qk[:, D + lo:D + lo + hd].astype(BF16)
        vh = v[:, lo:lo + hd].astype(BF16)
        s = jax.lax.dot_general(qh, kh, (((1,), (1,)), ((), ())),
                                preferred_element_type=F32) * scale
        s = s - jnp.max(s, axis=-1, keepdims=True)
        p = jnp.exp(s)
        p = p * pl.reciprocal(jnp.sum(p, axis=-1, keepdims=True), approx=True)
        # stash this head's output; output projection is a single K=D matmul
        head_buf[:, lo:lo + hd] = jnp.dot(p.astype(BF16), vh,
                                          preferred_element_type=F32)
    sa = jnp.dot(head_buf[...].astype(BF16), wo_ref[...],
                 preferred_element_type=F32) + bo_ref[...]
    y = _layer_norm(tgt + sa, g_ref[...], bt_ref[...])
    o_ref[0] = y
    # cross-attention sampling_offsets / attention_weights projections use the
    # norm2 output + query_pos that are already resident in VMEM.
    q_ca = (y + pos).astype(BF16)
    off_ref[0] = (jnp.dot(q_ca, woff_ref[...], preferred_element_type=F32)
                  + boff_ref[...])
    logit_ref[0] = (jnp.dot(q_ca, wat_ref[...], preferred_element_type=F32)
                    + bat_ref[...])


def pallas_self_attn_block(tgt, qpos, wqk, bqk, wv, bv, wo, bo, gamma, beta,
                           woff, boff, wat, bat, H):
    B, Q, D = tgt.shape
    n_off = woff.shape[1]
    n_at = wat.shape[1]
    scale = 1.0 / math.sqrt(D // H)

    def rep(shape):
        return pl.BlockSpec(shape, lambda b, _n=len(shape): (0,) * _n)

    def bq(last):
        return pl.BlockSpec((1, Q, last), lambda b: (b, 0, 0))

    return pl.pallas_call(
        functools.partial(_self_attn_kernel, H, scale),
        out_shape=(jax.ShapeDtypeStruct((B, Q, D), F32),
                   jax.ShapeDtypeStruct((B, Q, n_off), F32),
                   jax.ShapeDtypeStruct((B, Q, n_at), F32)),
        grid=(B,),
        in_specs=[bq(D), bq(D),
                  rep((D, 2 * D)), rep((1, 2 * D)),
                  rep((D, D)), rep((1, D)),
                  rep((D, D)), rep((1, D)),
                  rep((1, D)), rep((1, D)),
                  rep((D, n_off)), rep((1, n_off)),
                  rep((D, n_at)), rep((1, n_at))],
        out_specs=(bq(D), bq(n_off), bq(n_at)),
        scratch_shapes=[pltpu.VMEM((Q, D), F32)],
        compiler_params=pltpu.CompilerParams(dimension_semantics=("parallel",)),
    )(tgt, qpos, wqk, bqk.reshape(1, -1), wv, bv.reshape(1, -1),
      wo, bo.reshape(1, -1), gamma.reshape(1, -1), beta.reshape(1, -1),
      woff, boff.reshape(1, -1), wat, bat.reshape(1, -1))


# --------------------------------------------------------------------------
# (2) value projection with fused padding-mask masked_fill, row-tiled
# --------------------------------------------------------------------------
def _value_proj_kernel(x_ref, keep_ref, w_ref, b_ref, o_ref):
    y = (jnp.dot(x_ref[...].astype(BF16), w_ref[...],
                 preferred_element_type=F32) + b_ref[...])
    o_ref[...] = y * keep_ref[...]


def pallas_value_proj(x, keep, w, b):
    N, Din = x.shape
    Dout = w.shape[1]
    tn = _row_tile(N)
    row = lambda i: (i, 0)
    rep = lambda i: (0, 0)
    return pl.pallas_call(
        _value_proj_kernel,
        out_shape=jax.ShapeDtypeStruct((N, Dout), F32),
        grid=(pl.cdiv(N, tn),),
        in_specs=[pl.BlockSpec((tn, Din), row),
                  pl.BlockSpec((tn, 1), row),
                  pl.BlockSpec((Din, Dout), rep),
                  pl.BlockSpec((1, Dout), rep)],
        out_specs=pl.BlockSpec((tn, Dout), row),
        compiler_params=pltpu.CompilerParams(dimension_semantics=("parallel",)),
    )(x, keep, w, b.reshape(1, Dout))


# --------------------------------------------------------------------------
# (3) fused cross-attn tail: softmax(L*P) + aggregate + out-proj + res + LN1
#     + FFN + res + LN3, row-tiled over N = B*Q
# --------------------------------------------------------------------------
def _deform_tail_kernel(H, LP, hd, logit_ref, samp_ref, res_ref, wo_ref,
                        bo_ref, g1_ref, be1_ref, w1_ref, b1_ref, w2_ref,
                        b2_ref, g3_ref, be3_ref, o_ref, attn_ref, agg_buf):
    D = H * hd
    logits = logit_ref[...]                                # (TN, H*LP), (h,l,p)
    samp = samp_ref[...]                                   # (TN, LP*D)
    TN = logits.shape[0]
    for h in range(H):
        lg = logits[:, h * LP:(h + 1) * LP]                # (TN, LP)
        mg = jnp.max(lg, axis=-1, keepdims=True)
        eg = jnp.exp(lg - mg)
        # exact divide: these weights are returned to the caller
        ag = eg / jnp.sum(eg, axis=-1, keepdims=True)
        attn_ref[:, h * LP:(h + 1) * LP] = ag
        out_h = jnp.zeros((TN, hd), F32)
        for lp in range(LP):
            c0 = lp * D + h * hd
            out_h = out_h + ag[:, lp:lp + 1] * samp[:, c0:c0 + hd]
        agg_buf[:, h * hd:(h + 1) * hd] = out_h
    # MSDeformAttn output projection + residual + LayerNorm (norm1)
    y = (jnp.dot(agg_buf[...].astype(BF16), wo_ref[...],
                 preferred_element_type=F32) + bo_ref[...] + res_ref[...])
    y = _layer_norm(y, g1_ref[...], be1_ref[...])
    # FFN + residual + LayerNorm (norm3)
    hidden = jnp.maximum(
        jnp.dot(y.astype(BF16), w1_ref[...], preferred_element_type=F32)
        + b1_ref[...], 0.0)
    y2 = y + (jnp.dot(hidden.astype(BF16), w2_ref[...],
                      preferred_element_type=F32) + b2_ref[...])
    o_ref[...] = _layer_norm(y2, g3_ref[...], be3_ref[...])


def pallas_deform_tail(logits, sampled, res, wo, bo, g1, be1, w1, b1, w2, b2,
                       g3, be3, H, LP):
    N, HLP = logits.shape
    D = res.shape[1]
    hd = D // H
    Dff = w1.shape[1]
    tn = _row_tile(N)
    row = lambda i: (i, 0)
    rep = lambda i: (0, 0)
    return pl.pallas_call(
        functools.partial(_deform_tail_kernel, H, LP, hd),
        out_shape=(jax.ShapeDtypeStruct((N, D), F32),
                   jax.ShapeDtypeStruct((N, HLP), F32)),
        grid=(pl.cdiv(N, tn),),
        in_specs=[pl.BlockSpec((tn, HLP), row),
                  pl.BlockSpec((tn, LP * D), row),
                  pl.BlockSpec((tn, D), row),
                  pl.BlockSpec((D, D), rep), pl.BlockSpec((1, D), rep),
                  pl.BlockSpec((1, D), rep), pl.BlockSpec((1, D), rep),
                  pl.BlockSpec((D, Dff), rep), pl.BlockSpec((1, Dff), rep),
                  pl.BlockSpec((Dff, D), rep), pl.BlockSpec((1, D), rep),
                  pl.BlockSpec((1, D), rep), pl.BlockSpec((1, D), rep)],
        out_specs=(pl.BlockSpec((tn, D), row), pl.BlockSpec((tn, HLP), row)),
        scratch_shapes=[pltpu.VMEM((tn, D), F32)],
        compiler_params=pltpu.CompilerParams(dimension_semantics=("parallel",)),
    )(logits, sampled, res, wo, bo.reshape(1, D), g1.reshape(1, D),
      be1.reshape(1, D), w1, b1.reshape(1, Dff), w2, b2.reshape(1, D),
      g3.reshape(1, D), be3.reshape(1, D))


# --------------------------------------------------------------------------
# Decoder layer (gather glue in plain JAX; compute in the fused kernels)
# --------------------------------------------------------------------------
def decoder_layer_forward(p, tgt, query_pos, reference_points_input, src,
                          spatial_shapes, level_start_index, padding_mask,
                          H, L, P):
    B, Q, D = tgt.shape
    hd = D // H
    N = B * Q
    LP = L * P

    # ---- (1) self attention + offsets/attention-logits projections ---------
    tgt, offs, logits = pallas_self_attn_block(
        tgt, query_pos, *p['sa_qk'], *p['sa_v'], *p['sa_o'], *p['norm2'],
        *p['ca_off'], *p['ca_attn'], H=H)
    tgt_flat = tgt.reshape(N, D)
    offs = offs.reshape(B, Q, H, L, P, 2)
    logits_flat = logits.reshape(N, H * LP)                # (h, l, p) order

    # ---- (2) value projection with fused masked_fill -----------------------
    S = src.shape[1]
    keep = (1.0 - padding_mask.astype(F32)).reshape(B * S, 1)
    value = pallas_value_proj(src.reshape(B * S, D), keep, *p['ca_value'])
    value = value.reshape(B, S, H, hd)

    # ---- sampling locations (same math as the PyTorch reference) -----------
    spatial_f = spatial_shapes.astype(F32)
    offset_normalizer = jnp.stack([spatial_f[:, 1], spatial_f[:, 0]], -1)
    sampling_locations = (reference_points_input[:, :, None, :, None, :]
                          + offs / offset_normalizer[None, None, None, :, None, :])

    # TODO(synk): the data-dependent 4-corner bilinear gather (grid_sample,
    # align_corners=False, padding_mode='zeros') stays in XLA advanced
    # indexing; the bilinear combine is folded here (no 4x corner stacking)
    # and the indices are built in (B,Q,L,P,H) order so the result lands in
    # the kernel's (N, LP*D) layout with only free reshapes (no big transposes).
    loc_t = sampling_locations.transpose(0, 1, 3, 4, 2, 5)  # (B,Q,L,P,H,2)
    Hs = spatial_f[:, 0][None, None, :, None, None]
    Ws = spatial_f[:, 1][None, None, :, None, None]
    Hi = spatial_shapes[:, 0][None, None, :, None, None]
    Wi = spatial_shapes[:, 1][None, None, :, None, None]
    start = level_start_index[None, None, :, None, None]

    x = loc_t[..., 0] * Ws - 0.5
    y = loc_t[..., 1] * Hs - 0.5
    x0f = jnp.floor(x)
    y0f = jnp.floor(y)
    lx1 = x - x0f
    lx0 = 1.0 - lx1
    ly1 = y - y0f
    ly0 = 1.0 - ly1
    x0 = x0f.astype(jnp.int32)
    x1 = x0 + 1
    y0 = y0f.astype(jnp.int32)
    y1 = y0 + 1

    b_idx = jnp.arange(B)[:, None, None, None, None]
    h_idx = jnp.arange(H)[None, None, None, None, :]

    def corner(yi, xi, wy, wx):
        valid = (xi >= 0) & (xi < Wi) & (yi >= 0) & (yi < Hi)
        xi_c = jnp.clip(xi, 0, Wi - 1)
        yi_c = jnp.clip(yi, 0, Hi - 1)
        flat = start + yi_c * Wi + xi_c                    # (B,Q,L,P,H)
        vals = value[b_idx, flat, h_idx]                   # (B,Q,L,P,H,hd)
        w = (wy * wx) * valid.astype(F32)
        return w[..., None] * vals

    sampled = (corner(y0, x0, ly0, lx0) + corner(y0, x1, ly0, lx1)
               + corner(y1, x0, ly1, lx0) + corner(y1, x1, ly1, lx1))
    sampled = sampled.reshape(N, LP * D)                   # free reshape

    # ---- (3) fused tail: softmax + aggregate + out-proj + LN1 + FFN + LN3 --
    tgt_flat, attn = pallas_deform_tail(
        logits_flat, sampled, tgt_flat, *p['ca_out'], *p['norm1'],
        *p['ffn1'], *p['ffn2'], *p['norm3'], H=H, LP=LP)

    attn_weights = attn.reshape(B, Q, H, L, P)
    return tgt_flat.reshape(B, Q, D), sampling_locations, attn_weights


# --------------------------------------------------------------------------
# DeformableTransformerDecoder.forward
# --------------------------------------------------------------------------
def deformable_decoder_forward(layer_params, tgt, reference_points, src,
                               src_spatial_shapes, src_level_start_index,
                               src_valid_ratios, query_pos, src_padding_mask,
                               H, L, P, return_intermediate=True):
    output = tgt
    intermediate = []
    intermediate_reference_points = []
    sampling_locations_all = []
    attn_weights_all = []
    for p in layer_params:
        assert reference_points.shape[-1] == 2
        reference_points_input = (reference_points[:, :, None]
                                  * src_valid_ratios[:, None])     # (B,Q,L,2)
        output, samp_loc, attn_w = decoder_layer_forward(
            p, output, query_pos, reference_points_input, src,
            src_spatial_shapes, src_level_start_index, src_padding_mask,
            H, L, P)
        sampling_locations_all.append(samp_loc)
        attn_weights_all.append(attn_w)
        # bbox_embed is None -> no box refinement, reference_points unchanged
        if return_intermediate:
            intermediate.append(output)
            intermediate_reference_points.append(reference_points)
    sampling_locations_all = jnp.stack(sampling_locations_all, axis=1)
    attn_weights_all = jnp.stack(attn_weights_all, axis=1)
    if return_intermediate:
        return (jnp.stack(intermediate),
                jnp.stack(intermediate_reference_points),
                sampling_locations_all, attn_weights_all)
    return output, reference_points, sampling_locations_all, attn_weights_all


# --------------------------------------------------------------------------
# Deterministic parameter init (matmul weights stored in bfloat16)
# --------------------------------------------------------------------------
def init_linear(key, din, dout, scale=0.02):
    kw, kb = jax.random.split(key)
    return (scale * jax.random.normal(kw, (din, dout), dtype=F32),
            scale * jax.random.normal(kb, (dout,), dtype=F32))


def init_layer_params(key, D, H, L, P, d_ffn):
    ks = jax.random.split(key, 10)

    def lin(k, din, dout, scale=0.02):
        w, b = init_linear(k, din, dout, scale)
        return w.astype(BF16), b

    p = {}
    wq, bq = init_linear(ks[0], D, D)
    wk, bk = init_linear(ks[1], D, D)
    # q and k projections fused column-wise (shared input tgt + query_pos)
    p['sa_qk'] = (jnp.concatenate([wq, wk], axis=1).astype(BF16),
                  jnp.concatenate([bq, bk], axis=0))
    p['sa_v'] = lin(ks[2], D, D)
    p['sa_o'] = lin(ks[3], D, D)
    p['norm2'] = (jnp.ones((D,), F32), jnp.zeros((D,), F32))
    p['ca_value'] = lin(ks[4], D, D)
    p['ca_off'] = lin(ks[5], D, H * L * P * 2, 0.1)      # columns (h,l,p,2)
    p['ca_attn'] = lin(ks[6], D, H * L * P, 0.1)         # columns (h,l,p)
    p['ca_out'] = lin(ks[7], D, D)
    p['norm1'] = (jnp.ones((D,), F32), jnp.zeros((D,), F32))
    p['ffn1'] = lin(ks[8], D, d_ffn)
    p['ffn2'] = lin(ks[9], d_ffn, D)
    p['norm3'] = (jnp.ones((D,), F32), jnp.zeros((D,), F32))
    return p


# --------------------------------------------------------------------------
if __name__ == "__main__":
    B, Q, D = 2, 32, 64           # batch, num queries, d_model
    H, L, P = 4, 2, 2             # heads, feature levels, sampling points
    d_ffn = 128
    num_layers = 2
    spatial = [(8, 8), (4, 4)]
    S = sum(h * w for h, w in spatial)   # 80 flattened source tokens

    key = jax.random.PRNGKey(0)
    k_tgt, k_ref, k_src, k_qpos, k_params = jax.random.split(key, 5)

    tgt = jax.random.normal(k_tgt, (B, Q, D), dtype=F32)
    reference_points = jax.random.uniform(k_ref, (B, Q, 2), dtype=F32,
                                          minval=0.1, maxval=0.9)
    src = jax.random.normal(k_src, (B, S, D), dtype=F32)
    query_pos = jax.random.normal(k_qpos, (B, Q, D), dtype=F32)
    src_spatial_shapes = jnp.array(spatial, dtype=jnp.int32)
    src_level_start_index = jnp.array(
        [0, spatial[0][0] * spatial[0][1]], dtype=jnp.int32)
    src_valid_ratios = jnp.full((B, L, 2), 0.9, dtype=F32)
    src_padding_mask = jnp.zeros((B, S), dtype=bool)

    layer_keys = jax.random.split(k_params, num_layers)
    layer_params = [init_layer_params(k, D, H, L, P, d_ffn) for k in layer_keys]

    fwd = jax.jit(functools.partial(deformable_decoder_forward,
                                    H=H, L=L, P=P, return_intermediate=True))
    outs = fwd(layer_params, tgt, reference_points, src, src_spatial_shapes,
               src_level_start_index, src_valid_ratios, query_pos,
               src_padding_mask)
    outs = jax.block_until_ready(outs)
    inter, inter_ref, samp_all, attn_all = outs

    assert inter.shape == (num_layers, B, Q, D)
    assert inter_ref.shape == (num_layers, B, Q, 2)
    assert samp_all.shape == (B, num_layers, Q, H, L, P, 2)
    assert attn_all.shape == (B, num_layers, Q, H, L, P)
    assert all(bool(jnp.all(jnp.isfinite(o))) for o in outs)
    print("KERNEL_OK")
</pallas_src>

<mosaic_0001>
module attributes {stable_mosaic.version = 11 : i64} {
  func.func @_self_attn_kernel(%arg0: i32, %arg1: memref<1x32x64xf32, #tpu.memory_space<vmem>>, %arg2: memref<1x32x64xf32, #tpu.memory_space<vmem>>, %arg3: memref<64x128xbf16, #tpu.memory_space<vmem>>, %arg4: memref<1x128xf32, #tpu.memory_space<vmem>>, %arg5: memref<64x64xbf16, #tpu.memory_space<vmem>>, %arg6: memref<1x64xf32, #tpu.memory_space<vmem>>, %arg7: memref<64x64xbf16, #tpu.memory_space<vmem>>, %arg8: memref<1x64xf32, #tpu.memory_space<vmem>>, %arg9: memref<1x64xf32, #tpu.memory_space<vmem>>, %arg10: memref<1x64xf32, #tpu.memory_space<vmem>>, %arg11: memref<64x32xbf16, #tpu.memory_space<vmem>>, %arg12: memref<1x32xf32, #tpu.memory_space<vmem>>, %arg13: memref<64x16xbf16, #tpu.memory_space<vmem>>, %arg14: memref<1x16xf32, #tpu.memory_space<vmem>>, %arg15: memref<1x32x64xf32, #tpu.memory_space<vmem>>, %arg16: memref<1x32x32xf32, #tpu.memory_space<vmem>>, %arg17: memref<1x32x16xf32, #tpu.memory_space<vmem>>, %arg18: memref<32x64xf32, #tpu.memory_space<vmem>>) attributes {dimension_semantics = [#tpu.dimension_semantics<parallel>], iteration_bounds = array<i64: 2>, scalar_prefetch = 0 : i64, scratch_operands = 1 : i64, tpu.core_type = #tpu.core_type<tc>, window_params = [{transform_indices = @transform_0, window_bounds = array<i64: 1, 32, 64>}, {transform_indices = @transform_1, window_bounds = array<i64: 1, 32, 64>}, {pipeline_mode = #tpu.pipeline_mode<synchronous>, transform_indices = @transform_2, window_bounds = array<i64: 64, 128>}, {pipeline_mode = #tpu.pipeline_mode<synchronous>, transform_indices = @transform_3, window_bounds = array<i64: 1, 128>}, {pipeline_mode = #tpu.pipeline_mode<synchronous>, transform_indices = @transform_4, window_bounds = array<i64: 64, 64>}, {pipeline_mode = #tpu.pipeline_mode<synchronous>, transform_indices = @transform_5, window_bounds = array<i64: 1, 64>}, {pipeline_mode = #tpu.pipeline_mode<synchronous>, transform_indices = @transform_6, window_bounds = array<i64: 64, 64>}, {pipeline_mode = #tpu.pipeline_mode<synchronous>, transform_indices = @transform_7, window_bounds = array<i64: 1, 64>}, {pipeline_mode = #tpu.pipeline_mode<synchronous>, transform_indices = @transform_8, window_bounds = array<i64: 1, 64>}, {pipeline_mode = #tpu.pipeline_mode<synchronous>, transform_indices = @transform_9, window_bounds = array<i64: 1, 64>}, {pipeline_mode = #tpu.pipeline_mode<synchronous>, transform_indices = @transform_10, window_bounds = array<i64: 64, 32>}, {pipeline_mode = #tpu.pipeline_mode<synchronous>, transform_indices = @transform_11, window_bounds = array<i64: 1, 32>}, {pipeline_mode = #tpu.pipeline_mode<synchronous>, transform_indices = @transform_12, window_bounds = array<i64: 64, 16>}, {pipeline_mode = #tpu.pipeline_mode<synchronous>, transform_indices = @transform_13, window_bounds = array<i64: 1, 16>}, {transform_indices = @transform_14, window_bounds = array<i64: 1, 32, 64>}, {transform_indices = @transform_15, window_bounds = array<i64: 1, 32, 32>}, {transform_indices = @transform_16, window_bounds = array<i64: 1, 32, 16>}]} {
    %c0 = arith.constant 0 : index
    %c0_0 = arith.constant 0 : index
    %c0_1 = arith.constant 0 : index
    %0 = vector.load %arg1[%c0, %c0_0, %c0_1] : memref<1x32x64xf32, #tpu.memory_space<vmem>>, vector<1x32x64xf32>
    %1 = vector.shape_cast %0 : vector<1x32x64xf32> to vector<32x64xf32>
    %c0_2 = arith.constant 0 : index
    %c0_3 = arith.constant 0 : index
    %c0_4 = arith.constant 0 : index
    %2 = vector.load %arg2[%c0_2, %c0_3, %c0_4] : memref<1x32x64xf32, #tpu.memory_space<vmem>>, vector<1x32x64xf32>
    %3 = vector.shape_cast %2 : vector<1x32x64xf32> to vector<32x64xf32>
    %4 = arith.addf %1, %3 : vector<32x64xf32>
    %5 = arith.truncf %4 : vector<32x64xf32> to vector<32x64xbf16>
    %c0_5 = arith.constant 0 : index
    %c0_6 = arith.constant 0 : index
    %6 = vector.load %arg3[%c0_5, %c0_6] : memref<64x128xbf16, #tpu.memory_space<vmem>>, vector<64x128xbf16>
    %cst = arith.constant dense<0.000000e+00> : vector<32x128xf32>
    %7 = tpu.matmul %5, %6, %cst {dimension_numbers = #tpu.dot_dimension_numbers<[1], [0], [0], [1], [0, 0, 1, 1], [], []>} : vector<32x64xbf16>, vector<64x128xbf16>, vector<32x128xf32> -> vector<32x128xf32>
    %c0_7 = arith.constant 0 : index
    %c0_8 = arith.constant 0 : index
    %8 = vector.load %arg4[%c0_7, %c0_8] : memref<1x128xf32, #tpu.memory_space<vmem>>, vector<1x128xf32>
    %9 = vector.broadcast %8 : vector<1x128xf32> to vector<32x128xf32>
    %10 = arith.addf %7, %9 : vector<32x128xf32>
    %11 = arith.truncf %1 : vector<32x64xf32> to vector<32x64xbf16>
    %c0_9 = arith.constant 0 : index
    %c0_10 = arith.constant 0 : index
    %12 = vector.load %arg5[%c0_9, %c0_10] : memref<64x64xbf16, #tpu.memory_space<vmem>>, vector<64x64xbf16>
    %cst_11 = arith.constant dense<0.000000e+00> : vector<32x64xf32>
    %13 = tpu.matmul %11, %12, %cst_11 {dimension_numbers = #tpu.dot_dimension_numbers<[1], [0], [0], [1], [0, 0, 1, 1], [], []>} : vector<32x64xbf16>, vector<64x64xbf16>, vector<32x64xf32> -> vector<32x64xf32>
    %c0_12 = arith.constant 0 : index
    %c0_13 = arith.constant 0 : index
    %14 = vector.load %arg6[%c0_12, %c0_13] : memref<1x64xf32, #tpu.memory_space<vmem>>, vector<1x64xf32>
    %15 = vector.broadcast %14 : vector<1x64xf32> to vector<32x64xf32>
    %16 = arith.addf %13, %15 : vector<32x64xf32>
    %17 = vector.extract_strided_slice %10 {offsets = [0, 0], sizes = [32, 16], strides = [1, 1]} : vector<32x128xf32> to vector<32x16xf32>
    %18 = arith.truncf %17 : vector<32x16xf32> to vector<32x16xbf16>
    %19 = vector.extract_strided_slice %10 {offsets = [0, 64], sizes = [32, 16], strides = [1, 1]} : vector<32x128xf32> to vector<32x16xf32>
    %20 = arith.truncf %19 : vector<32x16xf32> to vector<32x16xbf16>
    %21 = vector.extract_strided_slice %16 {offsets = [0, 0], sizes = [32, 16], strides = [1, 1]} : vector<32x64xf32> to vector<32x16xf32>
    %22 = arith.truncf %21 : vector<32x16xf32> to vector<32x16xbf16>
    %cst_14 = arith.constant dense<0.000000e+00> : vector<32x32xf32>
    %23 = tpu.matmul %18, %20, %cst_14 {dimension_numbers = #tpu.dot_dimension_numbers<[1], [1], [0], [0], [0, 0, 1, 0], [], []>} : vector<32x16xbf16>, vector<32x16xbf16>, vector<32x32xf32> -> vector<32x32xf32>
    %cst_15 = arith.constant 2.500000e-01 : f32
    %24 = vector.broadcast %cst_15 : f32 to vector<32x32xf32>
    %25 = arith.mulf %23, %24 : vector<32x32xf32>
    %cst_16 = arith.constant dense<0xFF800000> : vector<32xf32>
    %26 = vector.multi_reduction <maximumf>, %25, %cst_16 [1] : vector<32x32xf32> to vector<32xf32>
    %27 = vector.shape_cast %26 : vector<32xf32> to vector<32x1xf32>
    %28 = vector.broadcast %27 : vector<32x1xf32> to vector<32x32xf32>
    %29 = arith.subf %25, %28 : vector<32x32xf32>
    %30 = math.exp %29 : vector<32x32xf32>
    %cst_17 = arith.constant dense<0.000000e+00> : vector<32xf32>
    %31 = vector.multi_reduction <add>, %30, %cst_17 [1] : vector<32x32xf32> to vector<32xf32>
    %32 = vector.shape_cast %31 : vector<32xf32> to vector<32x1xf32>
    %33 = tpu.reciprocal %32 {approx = true} : vector<32x1xf32> -> vector<32x1xf32>
    %34 = vector.broadcast %33 : vector<32x1xf32> to vector<32x32xf32>
    %35 = arith.mulf %30, %34 : vector<32x32xf32>
    %36 = arith.truncf %35 : vector<32x32xf32> to vector<32x32xbf16>
    %cst_18 = arith.constant dense<0.000000e+00> : vector<32x16xf32>
    %37 = tpu.matmul %36, %22, %cst_18 {dimension_numbers = #tpu.dot_dimension_numbers<[1], [0], [0], [1], [0, 0, 1, 1], [], []>} : vector<32x32xbf16>, vector<32x16xbf16>, vector<32x16xf32> -> vector<32x16xf32>
    %c0_19 = arith.constant 0 : index
    %c0_20 = arith.constant 0 : index
    %38 = vector.load %arg18[%c0_19, %c0_20] : memref<32x64xf32, #tpu.memory_space<vmem>>, vector<32x16xf32>
    tpu.vector_store %arg18[%c0_19, %c0_20], %37 {strides = array<i32>} : memref<32x64xf32, #tpu.memory_space<vmem>>, vector<32x16xf32>,
    %39 = vector.extract_strided_slice %10 {offsets = [0, 16], sizes = [32, 16], strides = [1, 1]} : vector<32x128xf32> to vector<32x16xf32>
    %40 = arith.truncf %39 : vector<32x16xf32> to vector<32x16xbf16>
    %41 = vector.extract_strided_slice %10 {offsets = [0, 80], sizes = [32, 16], strides = [1, 1]} : vector<32x128xf32> to vector<32x16xf32>
    %42 = arith.truncf %41 : vector<32x16xf32> to vector<32x16xbf16>
    %43 = vector.extract_strided_slice %16 {offsets = [0, 16], sizes = [32, 16], strides = [1, 1]} : vector<32x64xf32> to vector<32x16xf32>
    %44 = arith.truncf %43 : vector<32x16xf32> to vector<32x16xbf16>
    %cst_21 = arith.constant dense<0.000000e+00> : vector<32x32xf32>
    %45 = tpu.matmul %40, %42, %cst_21 {dimension_numbers = #tpu.dot_dimension_numbers<[1], [1], [0], [0], [0, 0, 1, 0], [], []>} : vector<32x16xbf16>, vector<32x16xbf16>, vector<32x32xf32> -> vector<32x32xf32>
    %cst_22 = arith.constant 2.500000e-01 : f32
    %46 = vector.broadcast %cst_22 : f32 to vector<32x32xf32>
    %47 = arith.mulf %45, %46 : vector<32x32xf32>
    %cst_23 = arith.constant dense<0xFF800000> : vector<32xf32>
    %48 = vector.multi_reduction <maximumf>, %47, %cst_23 [1] : vector<32x32xf32> to vector<32xf32>
    %49 = vector.shape_cast %48 : vector<32xf32> to vector<32x1xf32>
    %50 = vector.broadcast %49 : vector<32x1xf32> to vector<32x32xf32>
    %51 = arith.subf %47, %50 : vector<32x32xf32>
    %52 = math.exp %51 : vector<32x32xf32>
    %cst_24 = arith.constant dense<0.000000e+00> : vector<32xf32>
    %53 = vector.multi_reduction <add>, %52, %cst_24 [1] : vector<32x32xf32> to vector<32xf32>
    %54 = vector.shape_cast %53 : vector<32xf32> to vector<32x1xf32>
    %55 = tpu.reciprocal %54 {approx = true} : vector<32x1xf32> -> vector<32x1xf32>
    %56 = vector.broadcast %55 : vector<32x1xf32> to vector<32x32xf32>
    %57 = arith.mulf %52, %56 : vector<32x32xf32>
    %58 = arith.truncf %57 : vector<32x32xf32> to vector<32x32xbf16>
    %cst_25 = arith.constant dense<0.000000e+00> : vector<32x16xf32>
    %59 = tpu.matmul %58, %44, %cst_25 {dimension_numbers = #tpu.dot_dimension_numbers<[1], [0], [0], [1], [0, 0, 1, 1], [], []>} : vector<32x32xbf16>, vector<32x16xbf16>, vector<32x16xf32> -> vector<32x16xf32>
    %c0_26 = arith.constant 0 : index
    %c16 = arith.constant 16 : index
    %60 = vector.load %arg18[%c0_26, %c16] : memref<32x64xf32, #tpu.memory_space<vmem>>, vector<32x16xf32>
    tpu.vector_store %arg18[%c0_26, %c16], %59 {strides = array<i32>} : memref<32x64xf32, #tpu.memory_space<vmem>>, vector<32x16xf32>,
    %61 = vector.extract_strided_slice %10 {offsets = [0, 32], sizes = [32, 16], strides = [1, 1]} : vector<32x128xf32> to vector<32x16xf32>
    %62 = arith.truncf %61 : vector<32x16xf32> to vector<32x16xbf16>
    %63 = vector.extract_strided_slice %10 {offsets = [0, 96], sizes = [32, 16], strides = [1, 1]} : vector<32x128xf32> to vector<32x16xf32>
    %64 = arith.truncf %63 : vector<32x16xf32> to vector<32x16xbf16>
    %65 = vector.extract_strided_slice %16 {offsets = [0, 32], sizes = [32, 16], strides = [1, 1]} : vector<32x64xf32> to vector<32x16xf32>
    %66 = arith.truncf %65 : vector<32x16xf32> to vector<32x16xbf16>
    %cst_27 = arith.constant dense<0.000000e+00> : vector<32x32xf32>
    %67 = tpu.matmul %62, %64, %cst_27 {dimension_numbers = #tpu.dot_dimension_numbers<[1], [1], [0], [0], [0, 0, 1, 0], [], []>} : vector<32x16xbf16>, vector<32x16xbf16>, vector<32x32xf32> -> vector<32x32xf32>
    %cst_28 = arith.constant 2.500000e-01 : f32
    %68 = vector.broadcast %cst_28 : f32 to vector<32x32xf32>
    %69 = arith.mulf %67, %68 : vector<32x32xf32>
    %cst_29 = arith.constant dense<0xFF800000> : vector<32xf32>
    %70 = vector.multi_reduction <maximumf>, %69, %cst_29 [1] : vector<32x32xf32> to vector<32xf32>
    %71 = vector.shape_cast %70 : vector<32xf32> to vector<32x1xf32>
    %72 = vector.broadcast %71 : vector<32x1xf32> to vector<32x32xf32>
    %73 = arith.subf %69, %72 : vector<32x32xf32>
    %74 = math.exp %73 : vector<32x32xf32>
    %cst_30 = arith.constant dense<0.000000e+00> : vector<32xf32>
    %75 = vector.multi_reduction <add>, %74, %cst_30 [1] : vector<32x32xf32> to vector<32xf32>
    %76 = vector.shape_cast %75 : vector<32xf32> to vector<32x1xf32>
    %77 = tpu.reciprocal %76 {approx = true} : vector<32x1xf32> -> vector<32x1xf32>
    %78 = vector.broadcast %77 : vector<32x1xf32> to vector<32x32xf32>
    %79 = arith.mulf %74, %78 : vector<32x32xf32>
    %80 = arith.truncf %79 : vector<32x32xf32> to vector<32x32xbf16>
    %cst_31 = arith.constant dense<0.000000e+00> : vector<32x16xf32>
    %81 = tpu.matmul %80, %66, %cst_31 {dimension_numbers = #tpu.dot_dimension_numbers<[1], [0], [0], [1], [0, 0, 1, 1], [], []>} : vector<32x32xbf16>, vector<32x16xbf16>, vector<32x16xf32> -> vector<32x16xf32>
    %c0_32 = arith.constant 0 : index
    %c32 = arith.constant 32 : index
    %82 = vector.load %arg18[%c0_32, %c32] : memref<32x64xf32, #tpu.memory_space<vmem>>, vector<32x16xf32>
    tpu.vector_store %arg18[%c0_32, %c32], %81 {strides = array<i32>} : memref<32x64xf32, #tpu.memory_space<vmem>>, vector<32x16xf32>,
    %83 = vector.extract_strided_slice %10 {offsets = [0, 48], sizes = [32, 16], strides = [1, 1]} : vector<32x128xf32> to vector<32x16xf32>
    %84 = arith.truncf %83 : vector<32x16xf32> to vector<32x16xbf16>
    %85 = vector.extract_strided_slice %10 {offsets = [0, 112], sizes = [32, 16], strides = [1, 1]} : vector<32x128xf32> to vector<32x16xf32>
    %86 = arith.truncf %85 : vector<32x16xf32> to vector<32x16xbf16>
    %87 = vector.extract_strided_slice %16 {offsets = [0, 48], sizes = [32, 16], strides = [1, 1]} : vector<32x64xf32> to vector<32x16xf32>
    %88 = arith.truncf %87 : vector<32x16xf32> to vector<32x16xbf16>
    %cst_33 = arith.constant dense<0.000000e+00> : vector<32x32xf32>
    %89 = tpu.matmul %84, %86, %cst_33 {dimension_numbers = #tpu.dot_dimension_numbers<[1], [1], [0], [0], [0, 0, 1, 0], [], []>} : vector<32x16xbf16>, vector<32x16xbf16>, vector<32x32xf32> -> vector<32x32xf32>
    %cst_34 = arith.constant 2.500000e-01 : f32
    %90 = vector.broadcast %cst_34 : f32 to vector<32x32xf32>
    %91 = arith.mulf %89, %90 : vector<32x32xf32>
    %cst_35 = arith.constant dense<0xFF800000> : vector<32xf32>
    %92 = vector.multi_reduction <maximumf>, %91, %cst_35 [1] : vector<32x32xf32> to vector<32xf32>
    %93 = vector.shape_cast %92 : vector<32xf32> to vector<32x1xf32>
    %94 = vector.broadcast %93 : vector<32x1xf32> to vector<32x32xf32>
    %95 = arith.subf %91, %94 : vector<32x32xf32>
    %96 = math.exp %95 : vector<32x32xf32>
    %cst_36 = arith.constant dense<0.000000e+00> : vector<32xf32>
    %97 = vector.multi_reduction <add>, %96, %cst_36 [1] : vector<32x32xf32> to vector<32xf32>
    %98 = vector.shape_cast %97 : vector<32xf32> to vector<32x1xf32>
    %99 = tpu.reciprocal %98 {approx = true} : vector<32x1xf32> -> vector<32x1xf32>
    %100 = vector.broadcast %99 : vector<32x1xf32> to vector<32x32xf32>
    %101 = arith.mulf %96, %100 : vector<32x32xf32>
    %102 = arith.truncf %101 : vector<32x32xf32> to vector<32x32xbf16>
    %cst_37 = arith.constant dense<0.000000e+00> : vector<32x16xf32>
    %103 = tpu.matmul %102, %88, %cst_37 {dimension_numbers = #tpu.dot_dimension_numbers<[1], [0], [0], [1], [0, 0, 1, 1], [], []>} : vector<32x32xbf16>, vector<32x16xbf16>, vector<32x16xf32> -> vector<32x16xf32>
    %c0_38 = arith.constant 0 : index
    %c48 = arith.constant 48 : index
    %104 = vector.load %arg18[%c0_38, %c48] : memref<32x64xf32, #tpu.memory_space<vmem>>, vector<32x16xf32>
    tpu.vector_store %arg18[%c0_38, %c48], %103 {strides = array<i32>} : memref<32x64xf32, #tpu.memory_space<vmem>>, vector<32x16xf32>,
    %c0_39 = arith.constant 0 : index
    %c0_40 = arith.constant 0 : index
    %105 = vector.load %arg18[%c0_39, %c0_40] : memref<32x64xf32, #tpu.memory_space<vmem>>, vector<32x64xf32>
    %106 = arith.truncf %105 : vector<32x64xf32> to vector<32x64xbf16>
    %c0_41 = arith.constant 0 : index
    %c0_42 = arith.constant 0 : index
    %107 = vector.load %arg7[%c0_41, %c0_42] : memref<64x64xbf16, #tpu.memory_space<vmem>>, vector<64x64xbf16>
    %cst_43 = arith.constant dense<0.000000e+00> : vector<32x64xf32>
    %108 = tpu.matmul %106, %107, %cst_43 {dimension_numbers = #tpu.dot_dimension_numbers<[1], [0], [0], [1], [0, 0, 1, 1], [], []>} : vector<32x64xbf16>, vector<64x64xbf16>, vector<32x64xf32> -> vector<32x64xf32>
    %c0_44 = arith.constant 0 : index
    %c0_45 = arith.constant 0 : index
    %109 = vector.load %arg8[%c0_44, %c0_45] : memref<1x64xf32, #tpu.memory_space<vmem>>, vector<1x64xf32>
    %110 = vector.broadcast %109 : vector<1x64xf32> to vector<32x64xf32>
    %111 = arith.addf %108, %110 : vector<32x64xf32>
    %112 = arith.addf %1, %111 : vector<32x64xf32>
    %c0_46 = arith.constant 0 : index
    %c0_47 = arith.constant 0 : index
    %113 = vector.load %arg9[%c0_46, %c0_47] : memref<1x64xf32, #tpu.memory_space<vmem>>, vector<1x64xf32>
    %c0_48 = arith.constant 0 : index
    %c0_49 = arith.constant 0 : index
    %114 = vector.load %arg10[%c0_48, %c0_49] : memref<1x64xf32, #tpu.memory_space<vmem>>, vector<1x64xf32>
    %cst_50 = arith.constant dense<0.000000e+00> : vector<32xf32>
    %115 = vector.multi_reduction <add>, %112, %cst_50 [1] : vector<32x64xf32> to vector<32xf32>
    %116 = vector.shape_cast %115 : vector<32xf32> to vector<32x1xf32>
    %cst_51 = arith.constant 6.400000e+01 : f32
    %117 = vector.broadcast %cst_51 : f32 to vector<32x1xf32>
    %118 = arith.divf %116, %117 : vector<32x1xf32>
    %119 = vector.broadcast %118 : vector<32x1xf32> to vector<32x64xf32>
    %120 = arith.subf %112, %119 : vector<32x64xf32>
    %121 = arith.mulf %120, %120 : vector<32x64xf32>
    %cst_52 = arith.constant dense<0.000000e+00> : vector<32xf32>
    %122 = vector.multi_reduction <add>, %121, %cst_52 [1] : vector<32x64xf32> to vector<32xf32>
    %123 = vector.shape_cast %122 : vector<32xf32> to vector<32x1xf32>
    %cst_53 = arith.constant 6.400000e+01 : f32
    %124 = vector.broadcast %cst_53 : f32 to vector<32x1xf32>
    %125 = arith.divf %123, %124 : vector<32x1xf32>
    %126 = vector.broadcast %118 : vector<32x1xf32> to vector<32x64xf32>
    %127 = arith.subf %112, %126 : vector<32x64xf32>
    %cst_54 = arith.constant 9.99999974E-6 : f32
    %128 = vector.broadcast %cst_54 : f32 to vector<32x1xf32>
    %129 = arith.addf %125, %128 : vector<32x1xf32>
    %130 = math.rsqrt %129 : vector<32x1xf32>
    %131 = vector.broadcast %130 : vector<32x1xf32> to vector<32x64xf32>
    %132 = arith.mulf %127, %131 : vector<32x64xf32>
    %133 = vector.broadcast %113 : vector<1x64xf32> to vector<32x64xf32>
    %134 = arith.mulf %132, %133 : vector<32x64xf32>
    %135 = vector.broadcast %114 : vector<1x64xf32> to vector<32x64xf32>
    %136 = arith.addf %134, %135 : vector<32x64xf32>
    %c0_55 = arith.constant 0 : index
    %c0_56 = arith.constant 0 : index
    %c0_57 = arith.constant 0 : index
    %137 = vector.load %arg15[%c0_55, %c0_56, %c0_57] : memref<1x32x64xf32, #tpu.memory_space<vmem>>, vector<1x32x64xf32>
    %138 = vector.shape_cast %137 : vector<1x32x64xf32> to vector<32x64xf32>
    %139 = vector.shape_cast %136 : vector<32x64xf32> to vector<1x32x64xf32>
    tpu.vector_store %arg15[%c0_55, %c0_56, %c0_57], %139 {strides = array<i32>} : memref<1x32x64xf32, #tpu.memory_space<vmem>>, vector<1x32x64xf32>,
    %140 = arith.addf %136, %3 : vector<32x64xf32>
    %141 = arith.truncf %140 : vector<32x64xf32> to vector<32x64xbf16>
    %c0_58 = arith.constant 0 : index
    %c0_59 = arith.constant 0 : index
    %142 = vector.load %arg11[%c0_58, %c0_59] : memref<64x32xbf16, #tpu.memory_space<vmem>>, vector<64x32xbf16>
    %cst_60 = arith.constant dense<0.000000e+00> : vector<32x32xf32>
    %143 = tpu.matmul %141, %142, %cst_60 {dimension_numbers = #tpu.dot_dimension_numbers<[1], [0], [0], [1], [0, 0, 1, 1], [], []>} : vector<32x64xbf16>, vector<64x32xbf16>, vector<32x32xf32> -> vector<32x32xf32>
    %c0_61 = arith.constant 0 : index
    %c0_62 = arith.constant 0 : index
    %144 = vector.load %arg12[%c0_61, %c0_62] : memref<1x32xf32, #tpu.memory_space<vmem>>, vector<1x32xf32>
    %145 = vector.broadcast %144 : vector<1x32xf32> to vector<32x32xf32>
    %146 = arith.addf %143, %145 : vector<32x32xf32>
    %c0_63 = arith.constant 0 : index
    %c0_64 = arith.constant 0 : index
    %c0_65 = arith.constant 0 : index
    %147 = vector.load %arg16[%c0_63, %c0_64, %c0_65] : memref<1x32x32xf32, #tpu.memory_space<vmem>>, vector<1x32x32xf32>
    %148 = vector.shape_cast %147 : vector<1x32x32xf32> to vector<32x32xf32>
    %149 = vector.shape_cast %146 : vector<32x32xf32> to vector<1x32x32xf32>
    tpu.vector_store %arg16[%c0_63, %c0_64, %c0_65], %149 {strides = array<i32>} : memref<1x32x32xf32, #tpu.memory_space<vmem>>, vector<1x32x32xf32>,
    %c0_66 = arith.constant 0 : index
    %c0_67 = arith.constant 0 : index
    %150 = vector.load %arg13[%c0_66, %c0_67] : memref<64x16xbf16, #tpu.memory_space<vmem>>, vector<64x16xbf16>
    %cst_68 = arith.constant dense<0.000000e+00> : vector<32x16xf32>
    %151 = tpu.matmul %141, %150, %cst_68 {dimension_numbers = #tpu.dot_dimension_numbers<[1], [0], [0], [1], [0, 0, 1, 1], [], []>} : vector<32x64xbf16>, vector<64x16xbf16>, vector<32x16xf32> -> vector<32x16xf32>
    %c0_69 = arith.constant 0 : index
    %c0_70 = arith.constant 0 : index
    %152 = vector.load %arg14[%c0_69, %c0_70] : memref<1x16xf32, #tpu.memory_space<vmem>>, vector<1x16xf32>
    %153 = vector.broadcast %152 : vector<1x16xf32> to vector<32x16xf32>
    %154 = arith.addf %151, %153 : vector<32x16xf32>
    %c0_71 = arith.constant 0 : index
    %c0_72 = arith.constant 0 : index
    %c0_73 = arith.constant 0 : index
    %155 = vector.load %arg17[%c0_71, %c0_72, %c0_73] : memref<1x32x16xf32, #tpu.memory_space<vmem>>, vector<1x32x16xf32>
    %156 = vector.shape_cast %155 : vector<1x32x16xf32> to vector<32x16xf32>
    %157 = vector.shape_cast %154 : vector<32x16xf32> to vector<1x32x16xf32>
    tpu.vector_store %arg17[%c0_71, %c0_72, %c0_73], %157 {strides = array<i32>} : memref<1x32x16xf32, #tpu.memory_space<vmem>>, vector<1x32x16xf32>,
    return
  }
  func.func @transform_0(%arg0: i32) -> (i32, i32, i32) {
    %c0_i32 = arith.constant 0 : i32
    %c0_i32_0 = arith.constant 0 : i32
    %c0_i32_1 = arith.constant 0 : i32
    return %arg0, %c0_i32, %c0_i32_0 : i32, i32, i32
  }
  func.func @transform_1(%arg0: i32) -> (i32, i32, i32) {
    %c0_i32 = arith.constant 0 : i32
    %c0_i32_0 = arith.constant 0 : i32
    %c0_i32_1 = arith.constant 0 : i32
    return %arg0, %c0_i32, %c0_i32_0 : i32, i32, i32
  }
  func.func @transform_2(%arg0: i32) -> (i32, i32) {
    %c0_i32 = arith.constant 0 : i32
    %c0_i32_0 = arith.constant 0 : i32
    %c0_i32_1 = arith.constant 0 : i32
    return %c0_i32, %c0_i32_0 : i32, i32
  }
  func.func @transform_3(%arg0: i32) -> (i32, i32) {
    %c0_i32 = arith.constant 0 : i32
    %c0_i32_0 = arith.constant 0 : i32
    %c0_i32_1 = arith.constant 0 : i32
    return %c0_i32, %c0_i32_0 : i32, i32
  }
  func.func @transform_4(%arg0: i32) -> (i32, i32) {
    %c0_i32 = arith.constant 0 : i32
    %c0_i32_0 = arith.constant 0 : i32
    %c0_i32_1 = arith.constant 0 : i32
    return %c0_i32, %c0_i32_0 : i32, i32
  }
  func.func @transform_5(%arg0: i32) -> (i32, i32) {
    %c0_i32 = arith.constant 0 : i32
    %c0_i32_0 = arith.constant 0 : i32
    %c0_i32_1 = arith.constant 0 : i32
    return %c0_i32, %c0_i32_0 : i32, i32
  }
  func.func @transform_6(%arg0: i32) -> (i32, i32) {
    %c0_i32 = arith.constant 0 : i32
    %c0_i32_0 = arith.constant 0 : i32
    %c0_i32_1 = arith.constant 0 : i32
    return %c0_i32, %c0_i32_0 : i32, i32
  }
  func.func @transform_7(%arg0: i32) -> (i32, i32) {
    %c0_i32 = arith.constant 0 : i32
    %c0_i32_0 = arith.constant 0 : i32
    %c0_i32_1 = arith.constant 0 : i32
    return %c0_i32, %c0_i32_0 : i32, i32
  }
  func.func @transform_8(%arg0: i32) -> (i32, i32) {
    %c0_i32 = arith.constant 0 : i32
    %c0_i32_0 = arith.constant 0 : i32
    %c0_i32_1 = arith.constant 0 : i32
    return %c0_i32, %c0_i32_0 : i32, i32
  }
  func.func @transform_9(%arg0: i32) -> (i32, i32) {
    %c0_i32 = arith.constant 0 : i32
    %c0_i32_0 = arith.constant 0 : i32
    %c0_i32_1 = arith.constant 0 : i32
    return %c0_i32, %c0_i32_0 : i32, i32
  }
  func.func @transform_10(%arg0: i32) -> (i32, i32) {
    %c0_i32 = arith.constant 0 : i32
    %c0_i32_0 = arith.constant 0 : i32
    %c0_i32_1 = arith.constant 0 : i32
    return %c0_i32, %c0_i32_0 : i32, i32
  }
  func.func @transform_11(%arg0: i32) -> (i32, i32) {
    %c0_i32 = arith.constant 0 : i32
    %c0_i32_0 = arith.constant 0 : i32
    %c0_i32_1 = arith.constant 0 : i32
    return %c0_i32, %c0_i32_0 : i32, i32
  }
  func.func @transform_12(%arg0: i32) -> (i32, i32) {
    %c0_i32 = arith.constant 0 : i32
    %c0_i32_0 = arith.constant 0 : i32
    %c0_i32_1 = arith.constant 0 : i32
    return %c0_i32, %c0_i32_0 : i32, i32
  }
  func.func @transform_13(%arg0: i32) -> (i32, i32) {
    %c0_i32 = arith.constant 0 : i32
    %c0_i32_0 = arith.constant 0 : i32
    %c0_i32_1 = arith.constant 0 : i32
    return %c0_i32, %c0_i32_0 : i32, i32
  }
  func.func @transform_14(%arg0: i32) -> (i32, i32, i32) {
    %c0_i32 = arith.constant 0 : i32
    %c0_i32_0 = arith.constant 0 : i32
    %c0_i32_1 = arith.constant 0 : i32
    return %arg0, %c0_i32, %c0_i32_0 : i32, i32, i32
  }
  func.func @transform_15(%arg0: i32) -> (i32, i32, i32) {
    %c0_i32 = arith.constant 0 : i32
    %c0_i32_0 = arith.constant 0 : i32
    %c0_i32_1 = arith.constant 0 : i32
    return %arg0, %c0_i32, %c0_i32_0 : i32, i32, i32
  }
  func.func @transform_16(%arg0: i32) -> (i32, i32, i32) {
    %c0_i32 = arith.constant 0 : i32
    %c0_i32_0 = arith.constant 0 : i32
    %c0_i32_1 = arith.constant 0 : i32
    return %arg0, %c0_i32, %c0_i32_0 : i32, i32, i32
  }
}

module attributes {stable_mosaic.version = 11 : i64} {
  func.func @_value_proj_kernel(%arg0: i32, %arg1: memref<80x64xf32, #tpu.memory_space<vmem>>, %arg2: memref<80x1xf32, #tpu.memory_space<vmem>>, %arg3: memref<64x64xbf16, #tpu.memory_space<vmem>>, %arg4: memref<1x64xf32, #tpu.memory_space<vmem>>, %arg5: memref<80x64xf32, #tpu.memory_space<vmem>>) attributes {dimension_semantics = [#tpu.dimension_semantics<parallel>], iteration_bounds = array<i64: 2>, scalar_prefetch = 0 : i64, scratch_operands = 0 : i64, tpu.core_type = #tpu.core_type<tc>, window_params = [{transform_indices = @transform_0, window_bounds = array<i64: 80, 64>}, {transform_indices = @transform_1, window_bounds = array<i64: 80, 1>}, {pipeline_mode = #tpu.pipeline_mode<synchronous>, transform_indices = @transform_2, window_bounds = array<i64: 64, 64>}, {pipeline_mode = #tpu.pipeline_mode<synchronous>, transform_indices = @transform_3, window_bounds = array<i64: 1, 64>}, {transform_indices = @transform_4, window_bounds = array<i64: 80, 64>}]} {
    %c0 = arith.constant 0 : index
    %c0_0 = arith.constant 0 : index
    %0 = vector.load %arg1[%c0, %c0_0] : memref<80x64xf32, #tpu.memory_space<vmem>>, vector<80x64xf32>
    %1 = arith.truncf %0 : vector<80x64xf32> to vector<80x64xbf16>
    %c0_1 = arith.constant 0 : index
    %c0_2 = arith.constant 0 : index
    %2 = vector.load %arg3[%c0_1, %c0_2] : memref<64x64xbf16, #tpu.memory_space<vmem>>, vector<64x64xbf16>
    %cst = arith.constant dense<0.000000e+00> : vector<80x64xf32>
    %3 = tpu.matmul %1, %2, %cst {dimension_numbers = #tpu.dot_dimension_numbers<[1], [0], [0], [1], [0, 0, 1, 1], [], []>} : vector<80x64xbf16>, vector<64x64xbf16>, vector<80x64xf32> -> vector<80x64xf32>
    %c0_3 = arith.constant 0 : index
    %c0_4 = arith.constant 0 : index
    %4 = vector.load %arg4[%c0_3, %c0_4] : memref<1x64xf32, #tpu.memory_space<vmem>>, vector<1x64xf32>
    %5 = vector.broadcast %4 : vector<1x64xf32> to vector<80x64xf32>
    %6 = arith.addf %3, %5 : vector<80x64xf32>
    %c0_5 = arith.constant 0 : index
    %c0_6 = arith.constant 0 : index
    %7 = vector.load %arg2[%c0_5, %c0_6] : memref<80x1xf32, #tpu.memory_space<vmem>>, vector<80x1xf32>
    %8 = vector.broadcast %7 : vector<80x1xf32> to vector<80x64xf32>
    %9 = arith.mulf %6, %8 : vector<80x64xf32>
    %c0_7 = arith.constant 0 : index
    %c0_8 = arith.constant 0 : index
    %10 = vector.load %arg5[%c0_7, %c0_8] : memref<80x64xf32, #tpu.memory_space<vmem>>, vector<80x64xf32>
    tpu.vector_store %arg5[%c0_7, %c0_8], %9 {strides = array<i32>} : memref<80x64xf32, #tpu.memory_space<vmem>>, vector<80x64xf32>,
    return
  }
  func.func @transform_0(%arg0: i32) -> (i32, i32) {
    %c0_i32 = arith.constant 0 : i32
    %c0_i32_0 = arith.constant 0 : i32
    return %arg0, %c0_i32 : i32, i32
  }
  func.func @transform_1(%arg0: i32) -> (i32, i32) {
    %c0_i32 = arith.constant 0 : i32
    %c0_i32_0 = arith.constant 0 : i32
    return %arg0, %c0_i32 : i32, i32
  }
  func.func @transform_2(%arg0: i32) -> (i32, i32) {
    %c0_i32 = arith.constant 0 : i32
    %c0_i32_0 = arith.constant 0 : i32
    %c0_i32_1 = arith.constant 0 : i32
    return %c0_i32, %c0_i32_0 : i32, i32
  }
  func.func @transform_3(%arg0: i32) -> (i32, i32) {
    %c0_i32 = arith.constant 0 : i32
    %c0_i32_0 = arith.constant 0 : i32
    %c0_i32_1 = arith.constant 0 : i32
    return %c0_i32, %c0_i32_0 : i32, i32
  }
  func.func @transform_4(%arg0: i32) -> (i32, i32) {
    %c0_i32 = arith.constant 0 : i32
    %c0_i32_0 = arith.constant 0 : i32
    return %arg0, %c0_i32 : i32, i32
  }
}

module attributes {stable_mosaic.version = 11 : i64} {
  func.func @_deform_tail_kernel(%arg0: i32, %arg1: memref<32x16xf32, #tpu.memory_space<vmem>>, %arg2: memref<32x256xf32, #tpu.memory_space<vmem>>, %arg3: memref<32x64xf32, #tpu.memory_space<vmem>>, %arg4: memref<64x64xbf16, #tpu.memory_space<vmem>>, %arg5: memref<1x64xf32, #tpu.memory_space<vmem>>, %arg6: memref<1x64xf32, #tpu.memory_space<vmem>>, %arg7: memref<1x64xf32, #tpu.memory_space<vmem>>, %arg8: memref<64x128xbf16, #tpu.memory_space<vmem>>, %arg9: memref<1x128xf32, #tpu.memory_space<vmem>>, %arg10: memref<128x64xbf16, #tpu.memory_space<vmem>>, %arg11: memref<1x64xf32, #tpu.memory_space<vmem>>, %arg12: memref<1x64xf32, #tpu.memory_space<vmem>>, %arg13: memref<1x64xf32, #tpu.memory_space<vmem>>, %arg14: memref<32x64xf32, #tpu.memory_space<vmem>>, %arg15: memref<32x16xf32, #tpu.memory_space<vmem>>, %arg16: memref<32x64xf32, #tpu.memory_space<vmem>>) attributes {dimension_semantics = [#tpu.dimension_semantics<parallel>], iteration_bounds = array<i64: 2>, scalar_prefetch = 0 : i64, scratch_operands = 1 : i64, tpu.core_type = #tpu.core_type<tc>, window_params = [{transform_indices = @transform_0, window_bounds = array<i64: 32, 16>}, {transform_indices = @transform_1, window_bounds = array<i64: 32, 256>}, {transform_indices = @transform_2, window_bounds = array<i64: 32, 64>}, {pipeline_mode = #tpu.pipeline_mode<synchronous>, transform_indices = @transform_3, window_bounds = array<i64: 64, 64>}, {pipeline_mode = #tpu.pipeline_mode<synchronous>, transform_indices = @transform_4, window_bounds = array<i64: 1, 64>}, {pipeline_mode = #tpu.pipeline_mode<synchronous>, transform_indices = @transform_5, window_bounds = array<i64: 1, 64>}, {pipeline_mode = #tpu.pipeline_mode<synchronous>, transform_indices = @transform_6, window_bounds = array<i64: 1, 64>}, {pipeline_mode = #tpu.pipeline_mode<synchronous>, transform_indices = @transform_7, window_bounds = array<i64: 64, 128>}, {pipeline_mode = #tpu.pipeline_mode<synchronous>, transform_indices = @transform_8, window_bounds = array<i64: 1, 128>}, {pipeline_mode = #tpu.pipeline_mode<synchronous>, transform_indices = @transform_9, window_bounds = array<i64: 128, 64>}, {pipeline_mode = #tpu.pipeline_mode<synchronous>, transform_indices = @transform_10, window_bounds = array<i64: 1, 64>}, {pipeline_mode = #tpu.pipeline_mode<synchronous>, transform_indices = @transform_11, window_bounds = array<i64: 1, 64>}, {pipeline_mode = #tpu.pipeline_mode<synchronous>, transform_indices = @transform_12, window_bounds = array<i64: 1, 64>}, {transform_indices = @transform_13, window_bounds = array<i64: 32, 64>}, {transform_indices = @transform_14, window_bounds = array<i64: 32, 16>}]} {
    %c0 = arith.constant 0 : index
    %c0_0 = arith.constant 0 : index
    %0 = vector.load %arg1[%c0, %c0_0] : memref<32x16xf32, #tpu.memory_space<vmem>>, vector<32x16xf32>
    %c0_1 = arith.constant 0 : index
    %c0_2 = arith.constant 0 : index
    %1 = vector.load %arg2[%c0_1, %c0_2] : memref<32x256xf32, #tpu.memory_space<vmem>>, vector<32x256xf32>
    %2 = vector.extract_strided_slice %0 {offsets = [0, 0], sizes = [32, 4], strides = [1, 1]} : vector<32x16xf32> to vector<32x4xf32>
    %cst = arith.constant dense<0xFF800000> : vector<32xf32>
    %3 = vector.multi_reduction <maximumf>, %2, %cst [1] : vector<32x4xf32> to vector<32xf32>
    %4 = vector.shape_cast %3 : vector<32xf32> to vector<32x1xf32>
    %5 = vector.broadcast %4 : vector<32x1xf32> to vector<32x4xf32>
    %6 = arith.subf %2, %5 : vector<32x4xf32>
    %7 = math.exp %6 : vector<32x4xf32>
    %cst_3 = arith.constant dense<0.000000e+00> : vector<32xf32>
    %8 = vector.multi_reduction <add>, %7, %cst_3 [1] : vector<32x4xf32> to vector<32xf32>
    %9 = vector.shape_cast %8 : vector<32xf32> to vector<32x1xf32>
    %10 = vector.broadcast %9 : vector<32x1xf32> to vector<32x4xf32>
    %11 = arith.divf %7, %10 : vector<32x4xf32>
    %c0_4 = arith.constant 0 : index
    %c0_5 = arith.constant 0 : index
    %12 = vector.load %arg15[%c0_4, %c0_5] : memref<32x16xf32, #tpu.memory_space<vmem>>, vector<32x4xf32>
    tpu.vector_store %arg15[%c0_4, %c0_5], %11 {strides = array<i32>} : memref<32x16xf32, #tpu.memory_space<vmem>>, vector<32x4xf32>,
    %cst_6 = arith.constant 0.000000e+00 : f32
    %13 = vector.broadcast %cst_6 : f32 to vector<32x16xf32>
    %14 = vector.extract_strided_slice %11 {offsets = [0, 0], sizes = [32, 1], strides = [1, 1]} : vector<32x4xf32> to vector<32x1xf32>
    %15 = vector.extract_strided_slice %1 {offsets = [0, 0], sizes = [32, 16], strides = [1, 1]} : vector<32x256xf32> to vector<32x16xf32>
    %16 = vector.broadcast %14 : vector<32x1xf32> to vector<32x16xf32>
    %17 = arith.mulf %16, %15 : vector<32x16xf32>
    %18 = arith.addf %13, %17 : vector<32x16xf32>
    %19 = vector.extract_strided_slice %11 {offsets = [0, 1], sizes = [32, 1], strides = [1, 1]} : vector<32x4xf32> to vector<32x1xf32>
    %20 = vector.extract_strided_slice %1 {offsets = [0, 64], sizes = [32, 16], strides = [1, 1]} : vector<32x256xf32> to vector<32x16xf32>
    %21 = vector.broadcast %19 : vector<32x1xf32> to vector<32x16xf32>
    %22 = arith.mulf %21, %20 : vector<32x16xf32>
    %23 = arith.addf %18, %22 : vector<32x16xf32>
    %24 = vector.extract_strided_slice %11 {offsets = [0, 2], sizes = [32, 1], strides = [1, 1]} : vector<32x4xf32> to vector<32x1xf32>
    %25 = vector.extract_strided_slice %1 {offsets = [0, 128], sizes = [32, 16], strides = [1, 1]} : vector<32x256xf32> to vector<32x16xf32>
    %26 = vector.broadcast %24 : vector<32x1xf32> to vector<32x16xf32>
    %27 = arith.mulf %26, %25 : vector<32x16xf32>
    %28 = arith.addf %23, %27 : vector<32x16xf32>
    %29 = vector.extract_strided_slice %11 {offsets = [0, 3], sizes = [32, 1], strides = [1, 1]} : vector<32x4xf32> to vector<32x1xf32>
    %30 = vector.extract_strided_slice %1 {offsets = [0, 192], sizes = [32, 16], strides = [1, 1]} : vector<32x256xf32> to vector<32x16xf32>
    %31 = vector.broadcast %29 : vector<32x1xf32> to vector<32x16xf32>
    %32 = arith.mulf %31, %30 : vector<32x16xf32>
    %33 = arith.addf %28, %32 : vector<32x16xf32>
    %c0_7 = arith.constant 0 : index
    %c0_8 = arith.constant 0 : index
    %34 = vector.load %arg16[%c0_7, %c0_8] : memref<32x64xf32, #tpu.memory_space<vmem>>, vector<32x16xf32>
    tpu.vector_store %arg16[%c0_7, %c0_8], %33 {strides = array<i32>} : memref<32x64xf32, #tpu.memory_space<vmem>>, vector<32x16xf32>,
    %35 = vector.extract_strided_slice %0 {offsets = [0, 4], sizes = [32, 4], strides = [1, 1]} : vector<32x16xf32> to vector<32x4xf32>
    %cst_9 = arith.constant dense<0xFF800000> : vector<32xf32>
    %36 = vector.multi_reduction <maximumf>, %35, %cst_9 [1] : vector<32x4xf32> to vector<32xf32>
    %37 = vector.shape_cast %36 : vector<32xf32> to vector<32x1xf32>
    %38 = vector.broadcast %37 : vector<32x1xf32> to vector<32x4xf32>
    %39 = arith.subf %35, %38 : vector<32x4xf32>
    %40 = math.exp %39 : vector<32x4xf32>
    %cst_10 = arith.constant dense<0.000000e+00> : vector<32xf32>
    %41 = vector.multi_reduction <add>, %40, %cst_10 [1] : vector<32x4xf32> to vector<32xf32>
    %42 = vector.shape_cast %41 : vector<32xf32> to vector<32x1xf32>
    %43 = vector.broadcast %42 : vector<32x1xf32> to vector<32x4xf32>
    %44 = arith.divf %40, %43 : vector<32x4xf32>
    %c0_11 = arith.constant 0 : index
    %c4 = arith.constant 4 : index
    %45 = vector.load %arg15[%c0_11, %c4] : memref<32x16xf32, #tpu.memory_space<vmem>>, vector<32x4xf32>
    tpu.vector_store %arg15[%c0_11, %c4], %44 {strides = array<i32>} : memref<32x16xf32, #tpu.memory_space<vmem>>, vector<32x4xf32>,
    %cst_12 = arith.constant 0.000000e+00 : f32
    %46 = vector.broadcast %cst_12 : f32 to vector<32x16xf32>
    %47 = vector.extract_strided_slice %44 {offsets = [0, 0], sizes = [32, 1], strides = [1, 1]} : vector<32x4xf32> to vector<32x1xf32>
    %48 = vector.extract_strided_slice %1 {offsets = [0, 16], sizes = [32, 16], strides = [1, 1]} : vector<32x256xf32> to vector<32x16xf32>
    %49 = vector.broadcast %47 : vector<32x1xf32> to vector<32x16xf32>
    %50 = arith.mulf %49, %48 : vector<32x16xf32>
    %51 = arith.addf %46, %50 : vector<32x16xf32>
    %52 = vector.extract_strided_slice %44 {offsets = [0, 1], sizes = [32, 1], strides = [1, 1]} : vector<32x4xf32> to vector<32x1xf32>
    %53 = vector.extract_strided_slice %1 {offsets = [0, 80], sizes = [32, 16], strides = [1, 1]} : vector<32x256xf32> to vector<32x16xf32>
    %54 = vector.broadcast %52 : vector<32x1xf32> to vector<32x16xf32>
    %55 = arith.mulf %54, %53 : vector<32x16xf32>
    %56 = arith.addf %51, %55 : vector<32x16xf32>
    %57 = vector.extract_strided_slice %44 {offsets = [0, 2], sizes = [32, 1], strides = [1, 1]} : vector<32x4xf32> to vector<32x1xf32>
    %58 = vector.extract_strided_slice %1 {offsets = [0, 144], sizes = [32, 16], strides = [1, 1]} : vector<32x256xf32> to vector<32x16xf32>
    %59 = vector.broadcast %57 : vector<32x1xf32> to vector<32x16xf32>
    %60 = arith.mulf %59, %58 : vector<32x16xf32>
    %61 = arith.addf %56, %60 : vector<32x16xf32>
    %62 = vector.extract_strided_slice %44 {offsets = [0, 3], sizes = [32, 1], strides = [1, 1]} : vector<32x4xf32> to vector<32x1xf32>
    %63 = vector.extract_strided_slice %1 {offsets = [0, 208], sizes = [32, 16], strides = [1, 1]} : vector<32x256xf32> to vector<32x16xf32>
    %64 = vector.broadcast %62 : vector<32x1xf32> to vector<32x16xf32>
    %65 = arith.mulf %64, %63 : vector<32x16xf32>
    %66 = arith.addf %61, %65 : vector<32x16xf32>
    %c0_13 = arith.constant 0 : index
    %c16 = arith.constant 16 : index
    %67 = vector.load %arg16[%c0_13, %c16] : memref<32x64xf32, #tpu.memory_space<vmem>>, vector<32x16xf32>
    tpu.vector_store %arg16[%c0_13, %c16], %66 {strides = array<i32>} : memref<32x64xf32, #tpu.memory_space<vmem>>, vector<32x16xf32>,
    %68 = vector.extract_strided_slice %0 {offsets = [0, 8], sizes = [32, 4], strides = [1, 1]} : vector<32x16xf32> to vector<32x4xf32>
    %cst_14 = arith.constant dense<0xFF800000> : vector<32xf32>
    %69 = vector.multi_reduction <maximumf>, %68, %cst_14 [1] : vector<32x4xf32> to vector<32xf32>
    %70 = vector.shape_cast %69 : vector<32xf32> to vector<32x1xf32>
    %71 = vector.broadcast %70 : vector<32x1xf32> to vector<32x4xf32>
    %72 = arith.subf %68, %71 : vector<32x4xf32>
    %73 = math.exp %72 : vector<32x4xf32>
    %cst_15 = arith.constant dense<0.000000e+00> : vector<32xf32>
    %74 = vector.multi_reduction <add>, %73, %cst_15 [1] : vector<32x4xf32> to vector<32xf32>
    %75 = vector.shape_cast %74 : vector<32xf32> to vector<32x1xf32>
    %76 = vector.broadcast %75 : vector<32x1xf32> to vector<32x4xf32>
    %77 = arith.divf %73, %76 : vector<32x4xf32>
    %c0_16 = arith.constant 0 : index
    %c8 = arith.constant 8 : index
    %78 = vector.load %arg15[%c0_16, %c8] : memref<32x16xf32, #tpu.memory_space<vmem>>, vector<32x4xf32>
    tpu.vector_store %arg15[%c0_16, %c8], %77 {strides = array<i32>} : memref<32x16xf32, #tpu.memory_space<vmem>>, vector<32x4xf32>,
    %cst_17 = arith.constant 0.000000e+00 : f32
    %79 = vector.broadcast %cst_17 : f32 to vector<32x16xf32>
    %80 = vector.extract_strided_slice %77 {offsets = [0, 0], sizes = [32, 1], strides = [1, 1]} : vector<32x4xf32> to vector<32x1xf32>
    %81 = vector.extract_strided_slice %1 {offsets = [0, 32], sizes = [32, 16], strides = [1, 1]} : vector<32x256xf32> to vector<32x16xf32>
    %82 = vector.broadcast %80 : vector<32x1xf32> to vector<32x16xf32>
    %83 = arith.mulf %82, %81 : vector<32x16xf32>
    %84 = arith.addf %79, %83 : vector<32x16xf32>
    %85 = vector.extract_strided_slice %77 {offsets = [0, 1], sizes = [32, 1], strides = [1, 1]} : vector<32x4xf32> to vector<32x1xf32>
    %86 = vector.extract_strided_slice %1 {offsets = [0, 96], sizes = [32, 16], strides = [1, 1]} : vector<32x256xf32> to vector<32x16xf32>
    %87 = vector.broadcast %85 : vector<32x1xf32> to vector<32x16xf32>
    %88 = arith.mulf %87, %86 : vector<32x16xf32>
    %89 = arith.addf %84, %88 : vector<32x16xf32>
    %90 = vector.extract_strided_slice %77 {offsets = [0, 2], sizes = [32, 1], strides = [1, 1]} : vector<32x4xf32> to vector<32x1xf32>
    %91 = vector.extract_strided_slice %1 {offsets = [0, 160], sizes = [32, 16], strides = [1, 1]} : vector<32x256xf32> to vector<32x16xf32>
    %92 = vector.broadcast %90 : vector<32x1xf32> to vector<32x16xf32>
    %93 = arith.mulf %92, %91 : vector<32x16xf32>
    %94 = arith.addf %89, %93 : vector<32x16xf32>
    %95 = vector.extract_strided_slice %77 {offsets = [0, 3], sizes = [32, 1], strides = [1, 1]} : vector<32x4xf32> to vector<32x1xf32>
    %96 = vector.extract_strided_slice %1 {offsets = [0, 224], sizes = [32, 16], strides = [1, 1]} : vector<32x256xf32> to vector<32x16xf32>
    %97 = vector.broadcast %95 : vector<32x1xf32> to vector<32x16xf32>
    %98 = arith.mulf %97, %96 : vector<32x16xf32>
    %99 = arith.addf %94, %98 : vector<32x16xf32>
    %c0_18 = arith.constant 0 : index
    %c32 = arith.constant 32 : index
    %100 = vector.load %arg16[%c0_18, %c32] : memref<32x64xf32, #tpu.memory_space<vmem>>, vector<32x16xf32>
    tpu.vector_store %arg16[%c0_18, %c32], %99 {strides = array<i32>} : memref<32x64xf32, #tpu.memory_space<vmem>>, vector<32x16xf32>,
    %101 = vector.extract_strided_slice %0 {offsets = [0, 12], sizes = [32, 4], strides = [1, 1]} : vector<32x16xf32> to vector<32x4xf32>
    %cst_19 = arith.constant dense<0xFF800000> : vector<32xf32>
    %102 = vector.multi_reduction <maximumf>, %101, %cst_19 [1] : vector<32x4xf32> to vector<32xf32>
    %103 = vector.shape_cast %102 : vector<32xf32> to vector<32x1xf32>
    %104 = vector.broadcast %103 : vector<32x1xf32> to vector<32x4xf32>
    %105 = arith.subf %101, %104 : vector<32x4xf32>
    %106 = math.exp %105 : vector<32x4xf32>
    %cst_20 = arith.constant dense<0.000000e+00> : vector<32xf32>
    %107 = vector.multi_reduction <add>, %106, %cst_20 [1] : vector<32x4xf32> to vector<32xf32>
    %108 = vector.shape_cast %107 : vector<32xf32> to vector<32x1xf32>
    %109 = vector.broadcast %108 : vector<32x1xf32> to vector<32x4xf32>
    %110 = arith.divf %106, %109 : vector<32x4xf32>
    %c0_21 = arith.constant 0 : index
    %c12 = arith.constant 12 : index
    %111 = vector.load %arg15[%c0_21, %c12] : memref<32x16xf32, #tpu.memory_space<vmem>>, vector<32x4xf32>
    tpu.vector_store %arg15[%c0_21, %c12], %110 {strides = array<i32>} : memref<32x16xf32, #tpu.memory_space<vmem>>, vector<32x4xf32>,
    %cst_22 = arith.constant 0.000000e+00 : f32
    %112 = vector.broadcast %cst_22 : f32 to vector<32x16xf32>
    %113 = vector.extract_strided_slice %110 {offsets = [0, 0], sizes = [32, 1], strides = [1, 1]} : vector<32x4xf32> to vector<32x1xf32>
    %114 = vector.extract_strided_slice %1 {offsets = [0, 48], sizes = [32, 16], strides = [1, 1]} : vector<32x256xf32> to vector<32x16xf32>
    %115 = vector.broadcast %113 : vector<32x1xf32> to vector<32x16xf32>
    %116 = arith.mulf %115, %114 : vector<32x16xf32>
    %117 = arith.addf %112, %116 : vector<32x16xf32>
    %118 = vector.extract_strided_slice %110 {offsets = [0, 1], sizes = [32, 1], strides = [1, 1]} : vector<32x4xf32> to vector<32x1xf32>
    %119 = vector.extract_strided_slice %1 {offsets = [0, 112], sizes = [32, 16], strides = [1, 1]} : vector<32x256xf32> to vector<32x16xf32>
    %120 = vector.broadcast %118 : vector<32x1xf32> to vector<32x16xf32>
    %121 = arith.mulf %120, %119 : vector<32x16xf32>
    %122 = arith.addf %117, %121 : vector<32x16xf32>
    %123 = vector.extract_strided_slice %110 {offsets = [0, 2], sizes = [32, 1], strides = [1, 1]} : vector<32x4xf32> to vector<32x1xf32>
    %124 = vector.extract_strided_slice %1 {offsets = [0, 176], sizes = [32, 16], strides = [1, 1]} : vector<32x256xf32> to vector<32x16xf32>
    %125 = vector.broadcast %123 : vector<32x1xf32> to vector<32x16xf32>
    %126 = arith.mulf %125, %124 : vector<32x16xf32>
    %127 = arith.addf %122, %126 : vector<32x16xf32>
    %128 = vector.extract_strided_slice %110 {offsets = [0, 3], sizes = [32, 1], strides = [1, 1]} : vector<32x4xf32> to vector<32x1xf32>
    %129 = vector.extract_strided_slice %1 {offsets = [0, 240], sizes = [32, 16], strides = [1, 1]} : vector<32x256xf32> to vector<32x16xf32>
    %130 = vector.broadcast %128 : vector<32x1xf32> to vector<32x16xf32>
    %131 = arith.mulf %130, %129 : vector<32x16xf32>
    %132 = arith.addf %127, %131 : vector<32x16xf32>
    %c0_23 = arith.constant 0 : index
    %c48 = arith.constant 48 : index
    %133 = vector.load %arg16[%c0_23, %c48] : memref<32x64xf32, #tpu.memory_space<vmem>>, vector<32x16xf32>
    tpu.vector_store %arg16[%c0_23, %c48], %132 {strides = array<i32>} : memref<32x64xf32, #tpu.memory_space<vmem>>, vector<32x16xf32>,
    %c0_24 = arith.constant 0 : index
    %c0_25 = arith.constant 0 : index
    %134 = vector.load %arg16[%c0_24, %c0_25] : memref<32x64xf32, #tpu.memory_space<vmem>>, vector<32x64xf32>
    %135 = arith.truncf %134 : vector<32x64xf32> to vector<32x64xbf16>
    %c0_26 = arith.constant 0 : index
    %c0_27 = arith.constant 0 : index
    %136 = vector.load %arg4[%c0_26, %c0_27] : memref<64x64xbf16, #tpu.memory_space<vmem>>, vector<64x64xbf16>
    %cst_28 = arith.constant dense<0.000000e+00> : vector<32x64xf32>
    %137 = tpu.matmul %135, %136, %cst_28 {dimension_numbers = #tpu.dot_dimension_numbers<[1], [0], [0], [1], [0, 0, 1, 1], [], []>} : vector<32x64xbf16>, vector<64x64xbf16>, vector<32x64xf32> -> vector<32x64xf32>
    %c0_29 = arith.constant 0 : index
    %c0_30 = arith.constant 0 : index
    %138 = vector.load %arg5[%c0_29, %c0_30] : memref<1x64xf32, #tpu.memory_space<vmem>>, vector<1x64xf32>
    %139 = vector.broadcast %138 : vector<1x64xf32> to vector<32x64xf32>
    %140 = arith.addf %137, %139 : vector<32x64xf32>
    %c0_31 = arith.constant 0 : index
    %c0_32 = arith.constant 0 : index
    %141 = vector.load %arg3[%c0_31, %c0_32] : memref<32x64xf32, #tpu.memory_space<vmem>>, vector<32x64xf32>
    %142 = arith.addf %140, %141 : vector<32x64xf32>
    %c0_33 = arith.constant 0 : index
    %c0_34 = arith.constant 0 : index
    %143 = vector.load %arg6[%c0_33, %c0_34] : memref<1x64xf32, #tpu.memory_space<vmem>>, vector<1x64xf32>
    %c0_35 = arith.constant 0 : index
    %c0_36 = arith.constant 0 : index
    %144 = vector.load %arg7[%c0_35, %c0_36] : memref<1x64xf32, #tpu.memory_space<vmem>>, vector<1x64xf32>
    %cst_37 = arith.constant dense<0.000000e+00> : vector<32xf32>
    %145 = vector.multi_reduction <add>, %142, %cst_37 [1] : vector<32x64xf32> to vector<32xf32>
    %146 = vector.shape_cast %145 : vector<32xf32> to vector<32x1xf32>
    %cst_38 = arith.constant 6.400000e+01 : f32
    %147 = vector.broadcast %cst_38 : f32 to vector<32x1xf32>
    %148 = arith.divf %146, %147 : vector<32x1xf32>
    %149 = vector.broadcast %148 : vector<32x1xf32> to vector<32x64xf32>
    %150 = arith.subf %142, %149 : vector<32x64xf32>
    %151 = arith.mulf %150, %150 : vector<32x64xf32>
    %cst_39 = arith.constant dense<0.000000e+00> : vector<32xf32>
    %152 = vector.multi_reduction <add>, %151, %cst_39 [1] : vector<32x64xf32> to vector<32xf32>
    %153 = vector.shape_cast %152 : vector<32xf32> to vector<32x1xf32>
    %cst_40 = arith.constant 6.400000e+01 : f32
    %154 = vector.broadcast %cst_40 : f32 to vector<32x1xf32>
    %155 = arith.divf %153, %154 : vector<32x1xf32>
    %156 = vector.broadcast %148 : vector<32x1xf32> to vector<32x64xf32>
    %157 = arith.subf %142, %156 : vector<32x64xf32>
    %cst_41 = arith.constant 9.99999974E-6 : f32
    %158 = vector.broadcast %cst_41 : f32 to vector<32x1xf32>
    %159 = arith.addf %155, %158 : vector<32x1xf32>
    %160 = math.rsqrt %159 : vector<32x1xf32>
    %161 = vector.broadcast %160 : vector<32x1xf32> to vector<32x64xf32>
    %162 = arith.mulf %157, %161 : vector<32x64xf32>
    %163 = vector.broadcast %143 : vector<1x64xf32> to vector<32x64xf32>
    %164 = arith.mulf %162, %163 : vector<32x64xf32>
    %165 = vector.broadcast %144 : vector<1x64xf32> to vector<32x64xf32>
    %166 = arith.addf %164, %165 : vector<32x64xf32>
    %167 = arith.truncf %166 : vector<32x64xf32> to vector<32x64xbf16>
    %c0_42 = arith.constant 0 : index
    %c0_43 = arith.constant 0 : index
    %168 = vector.load %arg8[%c0_42, %c0_43] : memref<64x128xbf16, #tpu.memory_space<vmem>>, vector<64x128xbf16>
    %cst_44 = arith.constant dense<0.000000e+00> : vector<32x128xf32>
    %169 = tpu.matmul %167, %168, %cst_44 {dimension_numbers = #tpu.dot_dimension_numbers<[1], [0], [0], [1], [0, 0, 1, 1], [], []>} : vector<32x64xbf16>, vector<64x128xbf16>, vector<32x128xf32> -> vector<32x128xf32>
    %c0_45 = arith.constant 0 : index
    %c0_46 = arith.constant 0 : index
    %170 = vector.load %arg9[%c0_45, %c0_46] : memref<1x128xf32, #tpu.memory_space<vmem>>, vector<1x128xf32>
    %171 = vector.broadcast %170 : vector<1x128xf32> to vector<32x128xf32>
    %172 = arith.addf %169, %171 : vector<32x128xf32>
    %cst_47 = arith.constant 0.000000e+00 : f32
    %173 = vector.broadcast %cst_47 : f32 to vector<32x128xf32>
    %174 = arith.maximumf %172, %173 : vector<32x128xf32>
    %175 = arith.truncf %174 : vector<32x128xf32> to vector<32x128xbf16>
    %c0_48 = arith.constant 0 : index
    %c0_49 = arith.constant 0 : index
    %176 = vector.load %arg10[%c0_48, %c0_49] : memref<128x64xbf16, #tpu.memory_space<vmem>>, vector<128x64xbf16>
    %cst_50 = arith.constant dense<0.000000e+00> : vector<32x64xf32>
    %177 = tpu.matmul %175, %176, %cst_50 {dimension_numbers = #tpu.dot_dimension_numbers<[1], [0], [0], [1], [0, 0, 1, 1], [], []>} : vector<32x128xbf16>, vector<128x64xbf16>, vector<32x64xf32> -> vector<32x64xf32>
    %c0_51 = arith.constant 0 : index
    %c0_52 = arith.constant 0 : index
    %178 = vector.load %arg11[%c0_51, %c0_52] : memref<1x64xf32, #tpu.memory_space<vmem>>, vector<1x64xf32>
    %179 = vector.broadcast %178 : vector<1x64xf32> to vector<32x64xf32>
    %180 = arith.addf %177, %179 : vector<32x64xf32>
    %181 = arith.addf %166, %180 : vector<32x64xf32>
    %c0_53 = arith.constant 0 : index
    %c0_54 = arith.constant 0 : index
    %182 = vector.load %arg12[%c0_53, %c0_54] : memref<1x64xf32, #tpu.memory_space<vmem>>, vector<1x64xf32>
    %c0_55 = arith.constant 0 : index
    %c0_56 = arith.constant 0 : index
    %183 = vector.load %arg13[%c0_55, %c0_56] : memref<1x64xf32, #tpu.memory_space<vmem>>, vector<1x64xf32>
    %cst_57 = arith.constant dense<0.000000e+00> : vector<32xf32>
    %184 = vector.multi_reduction <add>, %181, %cst_57 [1] : vector<32x64xf32> to vector<32xf32>
    %185 = vector.shape_cast %184 : vector<32xf32> to vector<32x1xf32>
    %cst_58 = arith.constant 6.400000e+01 : f32
    %186 = vector.broadcast %cst_58 : f32 to vector<32x1xf32>
    %187 = arith.divf %185, %186 : vector<32x1xf32>
    %188 = vector.broadcast %187 : vector<32x1xf32> to vector<32x64xf32>
    %189 = arith.subf %181, %188 : vector<32x64xf32>
    %190 = arith.mulf %189, %189 : vector<32x64xf32>
    %cst_59 = arith.constant dense<0.000000e+00> : vector<32xf32>
    %191 = vector.multi_reduction <add>, %190, %cst_59 [1] : vector<32x64xf32> to vector<32xf32>
    %192 = vector.shape_cast %191 : vector<32xf32> to vector<32x1xf32>
    %cst_60 = arith.constant 6.400000e+01 : f32
    %193 = vector.broadcast %cst_60 : f32 to vector<32x1xf32>
    %194 = arith.divf %192, %193 : vector<32x1xf32>
    %195 = vector.broadcast %187 : vector<32x1xf32> to vector<32x64xf32>
    %196 = arith.subf %181, %195 : vector<32x64xf32>
    %cst_61 = arith.constant 9.99999974E-6 : f32
    %197 = vector.broadcast %cst_61 : f32 to vector<32x1xf32>
    %198 = arith.addf %194, %197 : vector<32x1xf32>
    %199 = math.rsqrt %198 : vector<32x1xf32>
    %200 = vector.broadcast %199 : vector<32x1xf32> to vector<32x64xf32>
    %201 = arith.mulf %196, %200 : vector<32x64xf32>
    %202 = vector.broadcast %182 : vector<1x64xf32> to vector<32x64xf32>
    %203 = arith.mulf %201, %202 : vector<32x64xf32>
    %204 = vector.broadcast %183 : vector<1x64xf32> to vector<32x64xf32>
    %205 = arith.addf %203, %204 : vector<32x64xf32>
    %c0_62 = arith.constant 0 : index
    %c0_63 = arith.constant 0 : index
    %206 = vector.load %arg14[%c0_62, %c0_63] : memref<32x64xf32, #tpu.memory_space<vmem>>, vector<32x64xf32>
    tpu.vector_store %arg14[%c0_62, %c0_63], %205 {strides = array<i32>} : memref<32x64xf32, #tpu.memory_space<vmem>>, vector<32x64xf32>,
    return
  }
  func.func @transform_0(%arg0: i32) -> (i32, i32) {
    %c0_i32 = arith.constant 0 : i32
    %c0_i32_0 = arith.constant 0 : i32
    return %arg0, %c0_i32 : i32, i32
  }
  func.func @transform_1(%arg0: i32) -> (i32, i32) {
    %c0_i32 = arith.constant 0 : i32
    %c0_i32_0 = arith.constant 0 : i32
    return %arg0, %c0_i32 : i32, i32
  }
  func.func @transform_2(%arg0: i32) -> (i32, i32) {
    %c0_i32 = arith.constant 0 : i32
    %c0_i32_0 = arith.constant 0 : i32
    return %arg0, %c0_i32 : i32, i32
  }
  func.func @transform_3(%arg0: i32) -> (i32, i32) {
    %c0_i32 = arith.constant 0 : i32
    %c0_i32_0 = arith.constant 0 : i32
    %c0_i32_1 = arith.constant 0 : i32
    return %c0_i32, %c0_i32_0 : i32, i32
  }
  func.func @transform_4(%arg0: i32) -> (i32, i32) {
    %c0_i32 = arith.constant 0 : i32
    %c0_i32_0 = arith.constant 0 : i32
    %c0_i32_1 = arith.constant 0 : i32
    return %c0_i32, %c0_i32_0 : i32, i32
  }
  func.func @transform_5(%arg0: i32) -> (i32, i32) {
    %c0_i32 = arith.constant 0 : i32
    %c0_i32_0 = arith.constant 0 : i32
    %c0_i32_1 = arith.constant 0 : i32
    return %c0_i32, %c0_i32_0 : i32, i32
  }
  func.func @transform_6(%arg0: i32) -> (i32, i32) {
    %c0_i32 = arith.constant 0 : i32
    %c0_i32_0 = arith.constant 0 : i32
    %c0_i32_1 = arith.constant 0 : i32
    return %c0_i32, %c0_i32_0 : i32, i32
  }
  func.func @transform_7(%arg0: i32) -> (i32, i32) {
    %c0_i32 = arith.constant 0 : i32
    %c0_i32_0 = arith.constant 0 : i32
    %c0_i32_1 = arith.constant 0 : i32
    return %c0_i32, %c0_i32_0 : i32, i32
  }
  func.func @transform_8(%arg0: i32) -> (i32, i32) {
    %c0_i32 = arith.constant 0 : i32
    %c0_i32_0 = arith.constant 0 : i32
    %c0_i32_1 = arith.constant 0 : i32
    return %c0_i32, %c0_i32_0 : i32, i32
  }
  func.func @transform_9(%arg0: i32) -> (i32, i32) {
    %c0_i32 = arith.constant 0 : i32
    %c0_i32_0 = arith.constant 0 : i32
    %c0_i32_1 = arith.constant 0 : i32
    return %c0_i32, %c0_i32_0 : i32, i32
  }
  func.func @transform_10(%arg0: i32) -> (i32, i32) {
    %c0_i32 = arith.constant 0 : i32
    %c0_i32_0 = arith.constant 0 : i32
    %c0_i32_1 = arith.constant 0 : i32
    return %c0_i32, %c0_i32_0 : i32, i32
  }
  func.func @transform_11(%arg0: i32) -> (i32, i32) {
    %c0_i32 = arith.constant 0 : i32
    %c0_i32_0 = arith.constant 0 : i32
    %c0_i32_1 = arith.constant 0 : i32
    return %c0_i32, %c0_i32_0 : i32, i32
  }
  func.func @transform_12(%arg0: i32) -> (i32, i32) {
    %c0_i32 = arith.constant 0 : i32
    %c0_i32_0 = arith.constant 0 : i32
    %c0_i32_1 = arith.constant 0 : i32
    return %c0_i32, %c0_i32_0 : i32, i32
  }
  func.func @transform_13(%arg0: i32) -> (i32, i32) {
    %c0_i32 = arith.constant 0 : i32
    %c0_i32_0 = arith.constant 0 : i32
    return %arg0, %c0_i32 : i32, i32
  }
  func.func @transform_14(%arg0: i32) -> (i32, i32) {
    %c0_i32 = arith.constant 0 : i32
    %c0_i32_0 = arith.constant 0 : i32
    return %arg0, %c0_i32 : i32, i32
  }
}

</mosaic_0001>

<llo_original>
// kernel: deformable_decoder_forward.7
$region0: #{deformable_decoder_forward.7}
  #allocation0 [shape = 'u32[]', space=smem, size = 0x4, offset = 0x4, fixed_abs, tag = 'smem constant byte address 0x4 - core index']
  #allocation1 [shape = 'u32[144,128]{1,0:T(1,128)}', space=vmem, size = 0x12000, scoped, tag = 'internal scratch']
  %s0 = inlined_call_operand.vmem [shape: f32[160,64], index: 0, kind: input, shape index: {}]
  %s1 = inlined_call_operand.vmem [shape: f32[160,1], index: 1, kind: input, shape index: {}]
  %s2 = inlined_call_operand.vmem [shape: bf16[64,64], index: 2, kind: input, shape index: {}]
  %s3 = inlined_call_operand.vmem [shape: f32[1,64], index: 3, kind: input, shape index: {}]
  %s4 = inlined_call_operand.vmem [shape: f32[160,64], index: 4, kind: output, shape index: {}]
  %s5 = sld [smem:[#allocation0]]
  $region49: #{deformable_decoder_forward.7} parent=0
    _
  %s7 = ssub.s32 1, %s5
  %s8 = scalar_select 0, %s7, %s5
  loop: start=0, step=1, limit=4
  $region2: #{deformable_decoder_forward.7} parent=0 // loop_pre_header
    _
  $region3: #{deformable_decoder_forward.7} parent=0 // loop_header
    %s10 = sphi 0, %s14
    %p11 = scmp.ge.s32.totalorder %s10, 4
    %s20 = sphi 0, %s22
    %s23 = sphi 0, %s20
    %s24 = sphi 0, %s23
    %s40 = sphi 0, %s24
    %s46 = sphi 0, %s48
    %s49 = sphi 0, %s46
    %s50 = sphi 0, %s49
    %s66 = sphi 0, %s50
    %s70 = sphi 0, %s70
    %s72 = sphi 0, %s70
    %s73 = sphi 0, %s72
    %s87 = sphi 0, %s73
    %s91 = sphi 0, %s91
    %s93 = sphi 0, %s91
    %s94 = sphi 0, %s93
    %s108 = sphi 0, %s94
    %s114 = sphi 0, %s116
    %s117 = sphi 0, %s114
    %s118 = sphi 0, %s117
    %s134 = sphi 0, %s118
  $region4: #{deformable_decoder_forward.7} parent=0 // loop_header_branch
    %13 = sbr.rel (%p11) target = $region8
  $region5: #{deformable_decoder_forward.7} parent=0 // loop_body
    %s15 = ssub.s32 %s10, 1
    %s16 = ssub.s32 %s10, 2
    %s17 = sadd.s32 %s10, 1
    %s18 = ssub.s32 %s10, %s17
    %p19 = scmp.eq.s32.totalorder %s18, 0
    %s21 = sadd.s32 %s20, 1
    %s22 = scalar_select %p19, %s20, %s21
    %p25 = pneg %p19
    %p26 = scmp.eq.s32.totalorder %s10, 1
    %p27 = por %p25, %p26
    %p28 = scmp.ne.s32.totalorder %s20, %s23
    %p29 = scmp.eq.s32.totalorder %s10, 0
    %p30 = por %p28, %p29
    %p31 = scmp.ne.s32.totalorder %s20, %s23
    %p32 = scmp.eq.s32.totalorder %s15, 1
    %p33 = por %p31, %p32
    %p34 = scmp.ne.s32.totalorder %s23, %s24
    %p35 = scmp.eq.s32.totalorder %s15, 0
    %p36 = por %p34, %p35
    %p37 = scmp.ne.s32.totalorder %s23, %s24
    %p38 = scmp.eq.s32.totalorder %s16, 1
    %p39 = por %p37, %p38
    %p41 = scmp.ne.s32.totalorder %s24, %s40
    %p42 = scmp.eq.s32.totalorder %s16, 0
    %p43 = por %p41, %p42
    %s44 = ssub.s32 %s10, %s17
    %p45 = scmp.eq.s32.totalorder %s44, 0
    %s47 = sadd.s32 %s46, 1
    %s48 = scalar_select %p45, %s46, %s47
    %p51 = pneg %p45
    %p52 = scmp.eq.s32.totalorder %s10, 1
    %p53 = por %p51, %p52
    %p54 = scmp.ne.s32.totalorder %s46, %s49
    %p55 = scmp.eq.s32.totalorder %s10, 0
    %p56 = por %p54, %p55
    %p57 = scmp.ne.s32.totalorder %s46, %s49
    %p58 = scmp.eq.s32.totalorder %s15, 1
    %p59 = por %p57, %p58
    %p60 = scmp.ne.s32.totalorder %s49, %s50
    %p61 = scmp.eq.s32.totalorder %s15, 0
    %p62 = por %p60, %p61
    %p63 = scmp.ne.s32.totalorder %s49, %s50
    %p64 = scmp.eq.s32.totalorder %s16, 1
    %p65 = por %p63, %p64
    %p67 = scmp.ne.s32.totalorder %s50, %s66
    %p68 = scmp.eq.s32.totalorder %s16, 0
    %p69 = por %p67, %p68
    %s71 = sadd.s32 %s70, 1
    %p74 = scmp.eq.s32.totalorder %s10, 1
    %p75 = scmp.ne.s32.totalorder %s70, %s72
    %p76 = scmp.eq.s32.totalorder %s10, 0
    %p77 = por %p75, %p76
    %p78 = scmp.ne.s32.totalorder %s70, %s72
    %p79 = scmp.eq.s32.totalorder %s15, 1
    %p80 = por %p78, %p79
    %p81 = scmp.ne.s32.totalorder %s72, %s73
    %p82 = scmp.eq.s32.totalorder %s15, 0
    %p83 = por %p81, %p82
    %p84 = scmp.ne.s32.totalorder %s72, %s73
    %p85 = scmp.eq.s32.totalorder %s16, 1
    %p86 = por %p84, %p85
    %p88 = scmp.ne.s32.totalorder %s73, %s87
    %p89 = scmp.eq.s32.totalorder %s16, 0
    %p90 = por %p88, %p89
    %s92 = sadd.s32 %s91, 1
    %p95 = scmp.eq.s32.totalorder %s10, 1
    %p96 = scmp.ne.s32.totalorder %s91, %s93
    %p97 = scmp.eq.s32.totalorder %s10, 0
    %p98 = por %p96, %p97
    %p99 = scmp.ne.s32.totalorder %s91, %s93
    %p100 = scmp.eq.s32.totalorder %s15, 1
    %p101 = por %p99, %p100
    %p102 = scmp.ne.s32.totalorder %s93, %s94
    %p103 = scmp.eq.s32.totalorder %s15, 0
    %p104 = por %p102, %p103
    %p105 = scmp.ne.s32.totalorder %s93, %s94
    %p106 = scmp.eq.s32.totalorder %s16, 1
    %p107 = por %p105, %p106
    %p109 = scmp.ne.s32.totalorder %s94, %s108
    %p110 = scmp.eq.s32.totalorder %s16, 0
    %p111 = por %p109, %p110
    %s112 = ssub.s32 %s10, %s17
    %p113 = scmp.eq.s32.totalorder %s112, 0
    %s115 = sadd.s32 %s114, 1
    %s116 = scalar_select %p113, %s114, %s115
    %p119 = pneg %p113
    %p120 = scmp.eq.s32.totalorder %s10, 1
    %p121 = por %p119, %p120
    %p122 = scmp.ne.s32.totalorder %s114, %s117
    %p123 = scmp.eq.s32.totalorder %s10, 0
    %p124 = por %p122, %p123
    %p125 = scmp.ne.s32.totalorder %s114, %s117
    %p126 = scmp.eq.s32.totalorder %s15, 1
    %p127 = por %p125, %p126
    %p128 = scmp.ne.s32.totalorder %s117, %s118
    %p129 = scmp.eq.s32.totalorder %s15, 0
    %p130 = por %p128, %p129
    %p131 = scmp.ne.s32.totalorder %s117, %s118
    %p132 = scmp.eq.s32.totalorder %s16, 1
    %p133 = por %p131, %p132
    %p135 = scmp.ne.s32.totalorder %s118, %s134
    %p136 = scmp.eq.s32.totalorder %s16, 0
    %p137 = por %p135, %p136
    %p138 = scmp.le.s32.totalorder 1, %s10
    %p139 = scmp.lt.s32.totalorder %s10, 3
    %p140 = pnand %p138, %p139
    %p141 = pneg %p140
    // Predicated region
    $region9: #{deformable_decoder_forward.7} parent=5 // pred_check
      _
    $region10: #{deformable_decoder_forward.7} parent=5 // pred_check_branch
      %143 = sbr.rel (%p140) target = $region12
    $region11: #{deformable_decoder_forward.7} parent=5 // pred_region
      %s144 = ssub.s32 %s10, 1
      // Predicated region
      $region13: #{deformable_decoder_forward.7} parent=11 // pred_check
        %p145 = pneg %p83
      $region14: #{deformable_decoder_forward.7} parent=11 // pred_check_branch
        %147 = sbr.rel (%p145) target = $region16
      $region15: #{deformable_decoder_forward.7} parent=11 // pred_region
        _
      $region16: #{deformable_decoder_forward.7} parent=11 // pred_fallthru
        _
      // Predicated region
      $region17: #{deformable_decoder_forward.7} parent=11 // pred_check
        %p148 = pneg %p104
      $region18: #{deformable_decoder_forward.7} parent=11 // pred_check_branch
        %150 = sbr.rel (%p148) target = $region20
      $region19: #{deformable_decoder_forward.7} parent=11 // pred_region
        _
      $region20: #{deformable_decoder_forward.7} parent=11 // pred_fallthru
        _
    $region12: #{deformable_decoder_forward.7} parent=5 // pred_fallthru
      _
    %p151 = scmp.lt.s32.totalorder %s10, 2
    // Predicated region
    $region21: #{deformable_decoder_forward.7} parent=5 // pred_check
      %p152 = pneg %p151
    $region22: #{deformable_decoder_forward.7} parent=5 // pred_check_branch
      %154 = sbr.rel (%p152) target = $region24
    $region23: #{deformable_decoder_forward.7} parent=5 // pred_region
      // Predicated region
      $region25: #{deformable_decoder_forward.7} parent=23 // pred_check
        %p155 = pneg %p30
      $region26: #{deformable_decoder_forward.7} parent=23 // pred_check_branch
        %157 = sbr.rel (%p155) target = $region28
      $region27: #{deformable_decoder_forward.7} parent=23 // pred_region
        %s158 = smul.u32 10, %s10
        %p159 = scmp.lt.s32.totalorder %s158, 19
        %s160 = scalar_select %p159, %s158, 19
        %s161 = smul.addr %s160, 8
        %s162 = scalar_lea.vmem %s0, %s161
        %s163 = smul.u32 10, %s10
      $region28: #{deformable_decoder_forward.7} parent=23 // pred_fallthru
        _
      // Predicated region
      $region29: #{deformable_decoder_forward.7} parent=23 // pred_check
        %p164 = pneg %p56
      $region30: #{deformable_decoder_forward.7} parent=23 // pred_check_branch
        %166 = sbr.rel (%p164) target = $region32
      $region31: #{deformable_decoder_forward.7} parent=23 // pred_region
        %s167 = smul.u32 10, %s10
        %p168 = scmp.lt.s32.totalorder %s167, 19
        %s169 = scalar_select %p168, %s167, 19
        %s170 = smul.addr %s169, 8
        %s171 = scalar_lea.vmem %s1, %s170
        %s172 = smul.u32 10, %s10
      $region32: #{deformable_decoder_forward.7} parent=23 // pred_fallthru
        _
    $region24: #{deformable_decoder_forward.7} parent=5 // pred_fallthru
      _
    %p173 = scmp.le.s32.totalorder 1, %s10
    %p174 = scmp.lt.s32.totalorder %s10, 3
    %p175 = pnand %p173, %p174
    %p176 = pneg %p175
    // Predicated region
    $region33: #{deformable_decoder_forward.7} parent=5 // pred_check
      _
    $region34: #{deformable_decoder_forward.7} parent=5 // pred_check_branch
      %178 = sbr.rel (%p175) target = $region36
    $region35: #{deformable_decoder_forward.7} parent=5 // pred_region
      %s179 = ssub.s32 %s10, 1
      %s180 = smul.u32 10, %s15
      %p181 = scmp.lt.s32.totalorder %s180, 19
      %s182 = scalar_select %p181, %s180, 19
      %s183 = smul.addr %s182, 8
      %s184 = scalar_lea.vmem %s0, %s183
      %p185 = pneg %p36
      %p186 = pneg %p33
      %s187 = smul.u32 10, %s15
      %p188 = scmp.lt.s32.totalorder %s187, 19
      %s189 = scalar_select %p188, %s187, 19
      %s190 = smul.addr %s189, 8
      %s191 = scalar_lea.vmem %s1, %s190
      %p192 = pneg %p62
      %p193 = pneg %p59
      %p194 = pneg %p83
      %p195 = pneg %p80
      %p196 = pneg %p104
      %p197 = pneg %p101
      %p198 = pneg %p130
      %p199 = pneg %p127
      %s200 = smul.u32 10, %s15
      %p201 = scmp.lt.s32.totalorder %s200, 19
      %s202 = scalar_select %p201, %s200, 19
      %s203 = smul.addr %s202, 8
      %s204 = scalar_lea.vmem %s4, %s203
      %s205 = smul.u32 10, %s15
      %p206 = scmp.lt.s32.totalorder %s205, 19
      %s207 = scalar_select %p206, %s205, 19
      %s208 = smul.addr %s207, 8
      %s209 = scalar_lea.vmem %s0, %s208
      %s210 = smul.u32 10, %s15
      %s211 = smul.u32 10, %s15
      %p212 = scmp.lt.s32.totalorder %s211, 19
      %s213 = scalar_select %p212, %s211, 19
      %s214 = smul.addr %s213, 8
      %s215 = scalar_lea.vmem %s1, %s214
      %s216 = smul.u32 10, %s15
      %s217 = smul.u32 10, %s15
      %p218 = scmp.lt.s32.totalorder %s217, 19
      %s219 = scalar_select %p218, %s217, 19
      %s220 = smul.addr %s219, 8
      %s221 = scalar_lea.vmem %s4, %s220
      %s222 = smul.u32 10, %s15
      %v224 = vld [vmem:[%s209] sm:$0xff]
      %v225 = vld [vmem:[%s209 + $0x8] sm:$0xff]
      %v226 = vld [vmem:[%s209 + $0x10] sm:$0xff]
      %v227 = vld [vmem:[%s209 + $0x18] sm:$0xff]
      %v228 = vld [vmem:[%s209 + $0x20] sm:$0xff]
      %v229 = vld [vmem:[%s209 + $0x28] sm:$0xff]
      %v230 = vld [vmem:[%s209 + $0x30] sm:$0xff]
      %v231 = vld [vmem:[%s209 + $0x38] sm:$0xff]
      %v232 = vld [vmem:[%s209 + $0x40] sm:$0xff]
      %v233 = vld [vmem:[%s209 + $0x48] sm:$0xff]
      %v234 = vpack.c.bf16 %v225, %v224
      %v235 = vpack.c.bf16 %v227, %v226
      %v236 = vpack.c.bf16 %v229, %v228
      %v237 = vpack.c.bf16 %v231, %v230
      %v238 = vpack.c.bf16 %v233, %v232
      %v239 = vld [vmem:[%s2] sm:$0xf]
      %v240 = vld [vmem:[%s2 + $0x4] sm:$0xf]
      %v241 = vld [vmem:[%s2 + $0x8] sm:$0xf]
      %v242 = vld [vmem:[%s2 + $0xc] sm:$0xf]
      %v243 = vld [vmem:[%s2 + $0x10] sm:$0xf]
      %v244 = vld [vmem:[%s2 + $0x14] sm:$0xf]
      %v245 = vld [vmem:[%s2 + $0x18] sm:$0xf]
      %v246 = vld [vmem:[%s2 + $0x1c] sm:$0xf]
      %v247 = vld [vmem:[%s3] sm:$0x1]
      %v249 = vlaneseq
      %v250 = vshrl.u32 %v249, 7
      %v251 = vsub.s32 0, %v250
      %v252 = vrot.slane %v247, %v251
      %v262 = vunpack.c.l.b16 %v239
      %v263 = vunpack.c.l.b16 %v240
      %v264 = vunpack.c.l.b16 %v241
      %v265 = vunpack.c.l.b16 %v242
      %v266 = vunpack.c.l.b16 %v243
      %v267 = vunpack.c.l.b16 %v244
      %v268 = vunpack.c.l.b16 %v245
      %v269 = vunpack.c.l.b16 %v246
      %v270 = vpack.c.b16 %v263, %v262
      %v271 = vpack.c.b16 %v265, %v264
      %v272 = vpack.c.b16 %v267, %v266
      %v273 = vpack.c.b16 %v269, %v268
      %vm278 = vcmask 523264
      %v280 = vsel %vm278, %v234, 0
      %v283 = vsel %vm278, %v235, 0
      %v286 = vsel %vm278, %v236, 0
      %v289 = vsel %vm278, %v237, 0
      %v292 = vsel %vm278, %v238, 0
      %294 = vmatprep.subr.bf16.mxu0 0
      %295 = vmatpush1.bf16.msra.mxu0 %v270
      %296 = vmatprep.subr.bf16.mxu0 0
      %297 = vmatpush1.bf16.msra.mxu0 %v271
      %298 = vmatprep.subr.bf16.mxu0 0
      %299 = vmatpush1.bf16.msra.mxu0 %v272
      %300 = vmatprep.subr.bf16.mxu0 0
      %301 = vmatpush1.bf16.msra.mxu0 %v273
      %302 = vmatprep.subr.bf16.mxu0 0
      %303 = vmatpush1.bf16.msra.mxu0 0
      %304 = vmatprep.subr.bf16.mxu0 0
      %305 = vmatpush1.bf16.msra.mxu0 0
      %306 = vmatprep.subr.bf16.mxu0 0
      %307 = vmatpush1.bf16.msra.mxu0 0
      %308 = vmatprep.subr.bf16.mxu0 0
      %309 = vmatpush1.bf16.msra.mxu0 0
      %310 = vmatprep.subr.bf16.mxu0 0
      %311 = vmatpush1.bf16.msra.mxu0 0
      %312 = vmatprep.subr.bf16.mxu0 0
      %313 = vmatpush1.bf16.msra.mxu0 0
      %314 = vmatprep.subr.bf16.mxu0 0
      %315 = vmatpush1.bf16.msra.mxu0 0
      %316 = vmatprep.subr.bf16.mxu0 0
      %317 = vmatpush1.bf16.msra.mxu0 0
      %318 = vmatprep.subr.bf16.mxu0 0
      %319 = vmatpush1.bf16.msra.mxu0 0
      %320 = vmatprep.subr.bf16.mxu0 0
      %321 = vmatpush1.bf16.msra.mxu0 0
      %322 = vmatprep.subr.bf16.mxu0 0
      %323 = vmatpush1.bf16.msra.mxu0 0
      %324 = vmatprep.subr.bf16.mxu0 0
      %325 = vmatpush1.bf16.msra.mxu0 0
      %326 = vmatprep.mubr.bf16.mxu0 0
      %327 = vmatmul.mubr.bf16.gmra.mrb[0].mxu0 %v280
      %v328 = vpop.f32.mrb[0].mxu0
      %v329 = vadd.f32 %v252, %v328
      %v330 = vpop.f32.mrb[0].mxu0
      %v331 = vpop.f32.mrb[0].mxu0
      %v332 = vadd.f32 %v252, %v331
      %v333 = vpop.f32.mrb[0].mxu0
      %334 = vmatprep.mubr.bf16.mxu0 0
      %335 = vmatmul.mubr.bf16.gmra.mrb[0].mxu0 %v283
      %v336 = vpop.f32.mrb[0].mxu0
      %v337 = vadd.f32 %v252, %v336
      %v338 = vpop.f32.mrb[0].mxu0
      %v339 = vpop.f32.mrb[0].mxu0
      %v340 = vadd.f32 %v252, %v339
      %v341 = vpop.f32.mrb[0].mxu0
      %342 = vmatprep.mubr.bf16.mxu0 0
      %343 = vmatmul.mubr.bf16.gmra.mrb[0].mxu0 %v286
      %v344 = vpop.f32.mrb[0].mxu0
      %v345 = vadd.f32 %v252, %v344
      %v346 = vpop.f32.mrb[0].mxu0
      %v347 = vpop.f32.mrb[0].mxu0
      %v348 = vadd.f32 %v252, %v347
      %v349 = vpop.f32.mrb[0].mxu0
      %350 = vmatprep.mubr.bf16.mxu0 0
      %351 = vmatmul.mubr.bf16.gmra.mrb[0].mxu0 %v289
      %v352 = vpop.f32.mrb[0].mxu0
      %v353 = vadd.f32 %v252, %v352
      %v354 = vpop.f32.mrb[0].mxu0
      %v355 = vpop.f32.mrb[0].mxu0
      %v356 = vadd.f32 %v252, %v355
      %v357 = vpop.f32.mrb[0].mxu0
      %358 = vmatprep.mubr.bf16.mxu0 0
      %359 = vmatmul.mubr.bf16.gmra.mrb[0].mxu0 %v292
      %v360 = vpop.f32.mrb[0].mxu0
      %v361 = vadd.f32 %v252, %v360
      %v362 = vpop.f32.mrb[0].mxu0
      %v363 = vpop.f32.mrb[0].mxu0
      %v364 = vadd.f32 %v252, %v363
      %v365 = vpop.f32.mrb[0].mxu0
      %366 = vdwg.mxu0
      %v367 = vld [vmem:[%s215] sm:$0xff]
      %v368 = vld [vmem:[%s215 + $0x8] sm:$0xff]
      %v369 = vld [vmem:[%s215 + $0x10] sm:$0xff]
      %v370 = vld [vmem:[%s215 + $0x18] sm:$0xff]
      %v371 = vld [vmem:[%s215 + $0x20] sm:$0xff]
      %v372 = vld [vmem:[%s215 + $0x28] sm:$0xff]
      %v373 = vld [vmem:[%s215 + $0x30] sm:$0xff]
      %v374 = vld [vmem:[%s215 + $0x38] sm:$0xff]
      %v375 = vld [vmem:[%s215 + $0x40] sm:$0xff]
      %v376 = vld [vmem:[%s215 + $0x48] sm:$0xff]
      %378 = vset.pattern.permute.xlu0 0
      %379 = vperm.xlu0 %378, %v367
      %v380 = vpop.permute.xlu0 %379
      %383 = vset.pattern.permute.xlu0 0
      %384 = vperm.xlu0 %383, %v368
      %v385 = vpop.permute.xlu0 %384
      %388 = vset.pattern.permute.xlu0 0
      %389 = vperm.xlu0 %388, %v369
      %v390 = vpop.permute.xlu0 %389
      %393 = vset.pattern.permute.xlu0 0
      %394 = vperm.xlu0 %393, %v370
      %v395 = vpop.permute.xlu0 %394
      %398 = vset.pattern.permute.xlu0 0
      %399 = vperm.xlu0 %398, %v371
      %v400 = vpop.permute.xlu0 %399
      %403 = vset.pattern.permute.xlu0 0
      %404 = vperm.xlu0 %403, %v372
      %v405 = vpop.permute.xlu0 %404
      %408 = vset.pattern.permute.xlu0 0
      %409 = vperm.xlu0 %408, %v373
      %v410 = vpop.permute.xlu0 %409
      %413 = vset.pattern.permute.xlu0 0
      %414 = vperm.xlu0 %413, %v374
      %v415 = vpop.permute.xlu0 %414
      %418 = vset.pattern.permute.xlu0 0
      %419 = vperm.xlu0 %418, %v375
      %v420 = vpop.permute.xlu0 %419
      %423 = vset.pattern.permute.xlu0 0
      %424 = vperm.xlu0 %423, %v376
      %v425 = vpop.permute.xlu0 %424
      %v427 = vmul.f32 %v329, %v380
      %v428 = vmul.f32 %v332, %v385
      %v429 = vmul.f32 %v337, %v390
      %v430 = vmul.f32 %v340, %v395
      %v431 = vmul.f32 %v345, %v400
      %v432 = vmul.f32 %v348, %v405
      %v433 = vmul.f32 %v353, %v410
      %v434 = vmul.f32 %v356, %v415
      %v435 = vmul.f32 %v361, %v420
      %v436 = vmul.f32 %v364, %v425
      %437 = vst.msk [vmem:[%s221] sm:$0xff] %vm278, %v427
      %438 = vst.msk [vmem:[%s221 + $0x8] sm:$0xff] %vm278, %v428
      %439 = vst.msk [vmem:[%s221 + $0x10] sm:$0xff] %vm278, %v429
      %440 = vst.msk [vmem:[%s221 + $0x18] sm:$0xff] %vm278, %v430
      %441 = vst.msk [vmem:[%s221 + $0x20] sm:$0xff] %vm278, %v431
      %442 = vst.msk [vmem:[%s221 + $0x28] sm:$0xff] %vm278, %v432
      %443 = vst.msk [vmem:[%s221 + $0x30] sm:$0xff] %vm278, %v433
      %444 = vst.msk [vmem:[%s221 + $0x38] sm:$0xff] %vm278, %v434
      %445 = vst.msk [vmem:[%s221 + $0x40] sm:$0xff] %vm278, %v435
      %446 = vst.msk [vmem:[%s221 + $0x48] sm:$0xff] %vm278, %v436
      %s447 = smul.u32 10, %s15
      %p448 = scmp.lt.s32.totalorder %s447, 19
      %s449 = scalar_select %p448, %s447, 19
      %s450 = smul.addr %s449, 8
      %s451 = scalar_lea.vmem %s4, %s450
      // Predicated region
      $region37: #{deformable_decoder_forward.7} parent=35 // pred_check
        %p452 = pneg %p127
      $region38: #{deformable_decoder_forward.7} parent=35 // pred_check_branch
        %454 = sbr.rel (%p452) target = $region40
      $region39: #{deformable_decoder_forward.7} parent=35 // pred_region
        %s455 = smul.u32 10, %s15
      $region40: #{deformable_decoder_forward.7} parent=35 // pred_fallthru
        _
    $region36: #{deformable_decoder_forward.7} parent=5 // pred_fallthru
      _
    %p456 = scmp.le.s32.totalorder 2, %s10
    // Predicated region
    $region41: #{deformable_decoder_forward.7} parent=5 // pred_check
      %p457 = pneg %p456
    $region42: #{deformable_decoder_forward.7} parent=5 // pred_check_branch
      %459 = sbr.rel (%p457) target = $region44
    $region43: #{deformable_decoder_forward.7} parent=5 // pred_region
      %s460 = ssub.s32 %s10, 2
      // Predicated region
      $region45: #{deformable_decoder_forward.7} parent=43 // pred_check
        %p461 = pneg %p133
      $region46: #{deformable_decoder_forward.7} parent=43 // pred_check_branch
        %463 = sbr.rel (%p461) target = $region48
      $region47: #{deformable_decoder_forward.7} parent=43 // pred_region
        %s464 = smul.u32 10, %s16
        %p465 = scmp.lt.s32.totalorder %s464, 19
        %s466 = scalar_select %p465, %s464, 19
        %s467 = smul.addr %s466, 8
        %s468 = scalar_lea.vmem %s4, %s467
      $region48: #{deformable_decoder_forward.7} parent=43 // pred_fallthru
        _
    $region44: #{deformable_decoder_forward.7} parent=5 // pred_fallthru
      _
  $region6: #{deformable_decoder_forward.7} parent=0 // loop_footer
    %s14 = sadd.s32 1, %s10
  $region7: #{deformable_decoder_forward.7} parent=0 // loop_footer_branch
    %9 = sbr.rel target = $region3
  $region8: #{deformable_decoder_forward.7} parent=0 // loop_exit
    _

// kernel: deformable_decoder_forward.6
$region0: #{deformable_decoder_forward.6}
  #allocation0 [shape = 'u32[]', space=smem, size = 0x4, offset = 0x4, fixed_abs, tag = 'smem constant byte address 0x4 - core index']
  #allocation1 [shape = 'u32[144,128]{1,0:T(1,128)}', space=vmem, size = 0x12000, scoped, tag = 'internal scratch']
  #allocation2 [shape = 'f32[32,64]{1,0:T(8,128)}', space=vmem, size = 0x4000, scoped, tag = 'scratch operand']
  %s0 = inlined_call_operand.vmem [shape: f32[2,32,64], index: 0, kind: input, shape index: {}]
  %s1 = inlined_call_operand.vmem [shape: f32[2,32,64], index: 1, kind: input, shape index: {}]
  %s2 = inlined_call_operand.vmem [shape: bf16[64,128], index: 2, kind: input, shape index: {}]
  %s3 = inlined_call_operand.vmem [shape: f32[1,128], index: 3, kind: input, shape index: {}]
  %s4 = inlined_call_operand.vmem [shape: bf16[64,64], index: 4, kind: input, shape index: {}]
  %s5 = inlined_call_operand.vmem [shape: f32[1,64], index: 5, kind: input, shape index: {}]
  %s6 = inlined_call_operand.vmem [shape: bf16[64,64], index: 6, kind: input, shape index: {}]
  %s7 = inlined_call_operand.vmem [shape: f32[1,64], index: 7, kind: input, shape index: {}]
  %s8 = inlined_call_operand.vmem [shape: f32[1,64], index: 8, kind: input, shape index: {}]
  %s9 = inlined_call_operand.vmem [shape: f32[1,64], index: 9, kind: input, shape index: {}]
  %s10 = inlined_call_operand.vmem [shape: bf16[64,32], index: 10, kind: input, shape index: {}]
  %s11 = inlined_call_operand.vmem [shape: f32[1,32], index: 11, kind: input, shape index: {}]
  %s12 = inlined_call_operand.vmem [shape: bf16[64,16], index: 12, kind: input, shape index: {}]
  %s13 = inlined_call_operand.vmem [shape: f32[1,16], index: 13, kind: input, shape index: {}]
  %s14 = inlined_call_operand.vmem [shape: f32[2,32,64], index: 14, kind: output, shape index: {0}]
  %s15 = inlined_call_operand.vmem [shape: f32[2,32,32], index: 15, kind: output, shape index: {1}]
  %s16 = inlined_call_operand.vmem [shape: f32[2,32,16], index: 16, kind: output, shape index: {2}]
  %17 = xla_tuple %s14, %s15, %s16
  %s18 = sld [smem:[#allocation0]]
  $region105: #{deformable_decoder_forward.6} parent=0
    _
  %s20 = ssub.s32 1, %s18
  %s21 = scalar_select 0, %s20, %s18
  loop: start=0, step=1, limit=4
  $region2: #{deformable_decoder_forward.6} parent=0 // loop_pre_header
    _
  $region3: #{deformable_decoder_forward.6} parent=0 // loop_header
    %s23 = sphi 0, %s27
    %p24 = scmp.ge.s32.totalorder %s23, 4
    %s33 = sphi 0, %s35
    %s36 = sphi 0, %s33
    %s37 = sphi 0, %s36
    %s53 = sphi 0, %s37
    %s59 = sphi 0, %s61
    %s62 = sphi 0, %s59
    %s63 = sphi 0, %s62
    %s79 = sphi 0, %s63
    %s83 = sphi 0, %s83
    %s85 = sphi 0, %s83
    %s86 = sphi 0, %s85
    %s100 = sphi 0, %s86
    %s104 = sphi 0, %s104
    %s106 = sphi 0, %s104
    %s107 = sphi 0, %s106
    %s121 = sphi 0, %s107
    %s125 = sphi 0, %s125
    %s127 = sphi 0, %s125
    %s128 = sphi 0, %s127
    %s142 = sphi 0, %s128
    %s146 = sphi 0, %s146
    %s148 = sphi 0, %s146
    %s149 = sphi 0, %s148
    %s163 = sphi 0, %s149
    %s167 = sphi 0, %s167
    %s169 = sphi 0, %s167
    %s170 = sphi 0, %s169
    %s184 = sphi 0, %s170
    %s188 = sphi 0, %s188
    %s190 = sphi 0, %s188
    %s191 = sphi 0, %s190
    %s205 = sphi 0, %s191
    %s209 = sphi 0, %s209
    %s211 = sphi 0, %s209
    %s212 = sphi 0, %s211
    %s226 = sphi 0, %s212
    %s230 = sphi 0, %s230
    %s232 = sphi 0, %s230
    %s233 = sphi 0, %s232
    %s247 = sphi 0, %s233
    %s251 = sphi 0, %s251
    %s253 = sphi 0, %s251
    %s254 = sphi 0, %s253
    %s268 = sphi 0, %s254
    %s272 = sphi 0, %s272
    %s274 = sphi 0, %s272
    %s275 = sphi 0, %s274
    %s289 = sphi 0, %s275
    %s293 = sphi 0, %s293
    %s295 = sphi 0, %s293
    %s296 = sphi 0, %s295
    %s310 = sphi 0, %s296
    %s314 = sphi 0, %s314
    %s316 = sphi 0, %s314
    %s317 = sphi 0, %s316
    %s331 = sphi 0, %s317
    %s337 = sphi 0, %s339
    %s340 = sphi 0, %s337
    %s341 = sphi 0, %s340
    %s357 = sphi 0, %s341
    %s363 = sphi 0, %s365
    %s366 = sphi 0, %s363
    %s367 = sphi 0, %s366
    %s383 = sphi 0, %s367
    %s389 = sphi 0, %s391
    %s392 = sphi 0, %s389
    %s393 = sphi 0, %s392
    %s409 = sphi 0, %s393
  $region4: #{deformable_decoder_forward.6} parent=0 // loop_header_branch
    %26 = sbr.rel (%p24) target = $region8
  $region5: #{deformable_decoder_forward.6} parent=0 // loop_body
    %s28 = ssub.s32 %s23, 1
    %s29 = ssub.s32 %s23, 2
    %s30 = sadd.s32 %s23, 1
    %s31 = ssub.s32 %s23, %s30
    %p32 = scmp.eq.s32.totalorder %s31, 0
    %s34 = sadd.s32 %s33, 1
    %s35 = scalar_select %p32, %s33, %s34
    %p38 = pneg %p32
    %p39 = scmp.eq.s32.totalorder %s23, 1
    %p40 = por %p38, %p39
    %p41 = scmp.ne.s32.totalorder %s33, %s36
    %p42 = scmp.eq.s32.totalorder %s23, 0
    %p43 = por %p41, %p42
    %p44 = scmp.ne.s32.totalorder %s33, %s36
    %p45 = scmp.eq.s32.totalorder %s28, 1
    %p46 = por %p44, %p45
    %p47 = scmp.ne.s32.totalorder %s36, %s37
    %p48 = scmp.eq.s32.totalorder %s28, 0
    %p49 = por %p47, %p48
    %p50 = scmp.ne.s32.totalorder %s36, %s37
    %p51 = scmp.eq.s32.totalorder %s29, 1
    %p52 = por %p50, %p51
    %p54 = scmp.ne.s32.totalorder %s37, %s53
    %p55 = scmp.eq.s32.totalorder %s29, 0
    %p56 = por %p54, %p55
    %s57 = ssub.s32 %s23, %s30
    %p58 = scmp.eq.s32.totalorder %s57, 0
    %s60 = sadd.s32 %s59, 1
    %s61 = scalar_select %p58, %s59, %s60
    %p64 = pneg %p58
    %p65 = scmp.eq.s32.totalorder %s23, 1
    %p66 = por %p64, %p65
    %p67 = scmp.ne.s32.totalorder %s59, %s62
    %p68 = scmp.eq.s32.totalorder %s23, 0
    %p69 = por %p67, %p68
    %p70 = scmp.ne.s32.totalorder %s59, %s62
    %p71 = scmp.eq.s32.totalorder %s28, 1
    %p72 = por %p70, %p71
    %p73 = scmp.ne.s32.totalorder %s62, %s63
    %p74 = scmp.eq.s32.totalorder %s28, 0
    %p75 = por %p73, %p74
    %p76 = scmp.ne.s32.totalorder %s62, %s63
    %p77 = scmp.eq.s32.totalorder %s29, 1
    %p78 = por %p76, %p77
    %p80 = scmp.ne.s32.totalorder %s63, %s79
    %p81 = scmp.eq.s32.totalorder %s29, 0
    %p82 = por %p80, %p81
    %s84 = sadd.s32 %s83, 1
    %p87 = scmp.eq.s32.totalorder %s23, 1
    %p88 = scmp.ne.s32.totalorder %s83, %s85
    %p89 = scmp.eq.s32.totalorder %s23, 0
    %p90 = por %p88, %p89
    %p91 = scmp.ne.s32.totalorder %s83, %s85
    %p92 = scmp.eq.s32.totalorder %s28, 1
    %p93 = por %p91, %p92
    %p94 = scmp.ne.s32.totalorder %s85, %s86
    %p95 = scmp.eq.s32.totalorder %s28, 0
    %p96 = por %p94, %p95
    %p97 = scmp.ne.s32.totalorder %s85, %s86
    %p98 = scmp.eq.s32.totalorder %s29, 1
    %p99 = por %p97, %p98
    %p101 = scmp.ne.s32.totalorder %s86, %s100
    %p102 = scmp.eq.s32.totalorder %s29, 0
    %p103 = por %p101, %p102
    %s105 = sadd.s32 %s104, 1
    %p108 = scmp.eq.s32.totalorder %s23, 1
    %p109 = scmp.ne.s32.totalorder %s104, %s106
    %p110 = scmp.eq.s32.totalorder %s23, 0
    %p111 = por %p109, %p110
    %p112 = scmp.ne.s32.totalorder %s104, %s106
    %p113 = scmp.eq.s32.totalorder %s28, 1
    %p114 = por %p112, %p113
    %p115 = scmp.ne.s32.totalorder %s106, %s107
    %p116 = scmp.eq.s32.totalorder %s28, 0
    %p117 = por %p115, %p116
    %p118 = scmp.ne.s32.totalorder %s106, %s107
    %p119 = scmp.eq.s32.totalorder %s29, 1
    %p120 = por %p118, %p119
    %p122 = scmp.ne.s32.totalorder %s107, %s121
    %p123 = scmp.eq.s32.totalorder %s29, 0
    %p124 = por %p122, %p123
    %s126 = sadd.s32 %s125, 1
    %p129 = scmp.eq.s32.totalorder %s23, 1
    %p130 = scmp.ne.s32.totalorder %s125, %s127
    %p131 = scmp.eq.s32.totalorder %s23, 0
    %p132 = por %p130, %p131
    %p133 = scmp.ne.s32.totalorder %s125, %s127
    %p134 = scmp.eq.s32.totalorder %s28, 1
    %p135 = por %p133, %p134
    %p136 = scmp.ne.s32.totalorder %s127, %s128
    %p137 = scmp.eq.s32.totalorder %s28, 0
    %p138 = por %p136, %p137
    %p139 = scmp.ne.s32.totalorder %s127, %s128
    %p140 = scmp.eq.s32.totalorder %s29, 1
    %p141 = por %p139, %p140
    %p143 = scmp.ne.s32.totalorder %s128, %s142
    %p144 = scmp.eq.s32.totalorder %s29, 0
    %p145 = por %p143, %p144
    %s147 = sadd.s32 %s146, 1
    %p150 = scmp.eq.s32.totalorder %s23, 1
    %p151 = scmp.ne.s32.totalorder %s146, %s148
    %p152 = scmp.eq.s32.totalorder %s23, 0
    %p153 = por %p151, %p152
    %p154 = scmp.ne.s32.totalorder %s146, %s148
    %p155 = scmp.eq.s32.totalorder %s28, 1
    %p156 = por %p154, %p155
    %p157 = scmp.ne.s32.totalorder %s148, %s149
    %p158 = scmp.eq.s32.totalorder %s28, 0
    %p159 = por %p157, %p158
    %p160 = scmp.ne.s32.totalorder %s148, %s149
    %p161 = scmp.eq.s32.totalorder %s29, 1
    %p162 = por %p160, %p161
    %p164 = scmp.ne.s32.totalorder %s149, %s163
    %p165 = scmp.eq.s32.totalorder %s29, 0
    %p166 = por %p164, %p165
    %s168 = sadd.s32 %s167, 1
    %p171 = scmp.eq.s32.totalorder %s23, 1
    %p172 = scmp.ne.s32.totalorder %s167, %s169
    %p173 = scmp.eq.s32.totalorder %s23, 0
    %p174 = por %p172, %p173
    %p175 = scmp.ne.s32.totalorder %s167, %s169
    %p176 = scmp.eq.s32.totalorder %s28, 1
    %p177 = por %p175, %p176
    %p178 = scmp.ne.s32.totalorder %s169, %s170
    %p179 = scmp.eq.s32.totalorder %s28, 0
    %p180 = por %p178, %p179
    %p181 = scmp.ne.s32.totalorder %s169, %s170
    %p182 = scmp.eq.s32.totalorder %s29, 1
    %p183 = por %p181, %p182
    %p185 = scmp.ne.s32.totalorder %s170, %s184
    %p186 = scmp.eq.s32.totalorder %s29, 0
    %p187 = por %p185, %p186
    %s189 = sadd.s32 %s188, 1
    %p192 = scmp.eq.s32.totalorder %s23, 1
    %p193 = scmp.ne.s32.totalorder %s188, %s190
    %p194 = scmp.eq.s32.totalorder %s23, 0
    %p195 = por %p193, %p194
    %p196 = scmp.ne.s32.totalorder %s188, %s190
    %p197 = scmp.eq.s32.totalorder %s28, 1
    %p198 = por %p196, %p197
    %p199 = scmp.ne.s32.totalorder %s190, %s191
    %p200 = scmp.eq.s32.totalorder %s28, 0
    %p201 = por %p199, %p200
    %p202 = scmp.ne.s32.totalorder %s190, %s191
    %p203 = scmp.eq.s32.totalorder %s29, 1
    %p204 = por %p202, %p203
    %p206 = scmp.ne.s32.totalorder %s191, %s205
    %p207 = scmp.eq.s32.totalorder %s29, 0
    %p208 = por %p206, %p207
    %s210 = sadd.s32 %s209, 1
    %p213 = scmp.eq.s32.totalorder %s23, 1
    %p214 = scmp.ne.s32.totalorder %s209, %s211
    %p215 = scmp.eq.s32.totalorder %s23, 0
    %p216 = por %p214, %p215
    %p217 = scmp.ne.s32.totalorder %s209, %s211
    %p218 = scmp.eq.s32.totalorder %s28, 1
    %p219 = por %p217, %p218
    %p220 = scmp.ne.s32.totalorder %s211, %s212
    %p221 = scmp.eq.s32.totalorder %s28, 0
    %p222 = por %p220, %p221
    %p223 = scmp.ne.s32.totalorder %s211, %s212
    %p224 = scmp.eq.s32.totalorder %s29, 1
    %p225 = por %p223, %p224
    %p227 = scmp.ne.s32.totalorder %s212, %s226
    %p228 = scmp.eq.s32.totalorder %s29, 0
    %p229 = por %p227, %p228
    %s231 = sadd.s32 %s230, 1
    %p234 = scmp.eq.s32.totalorder %s23, 1
    %p235 = scmp.ne.s32.totalorder %s230, %s232
    %p236 = scmp.eq.s32.totalorder %s23, 0
    %p237 = por %p235, %p236
    %p238 = scmp.ne.s32.totalorder %s230, %s232
    %p239 = scmp.eq.s32.totalorder %s28, 1
    %p240 = por %p238, %p239
    %p241 = scmp.ne.s32.totalorder %s232, %s233
    %p242 = scmp.eq.s32.totalorder %s28, 0
    %p243 = por %p241, %p242
    %p244 = scmp.ne.s32.totalorder %s232, %s233
    %p245 = scmp.eq.s32.totalorder %s29, 1
    %p246 = por %p244, %p245
    %p248 = scmp.ne.s32.totalorder %s233, %s247
    %p249 = scmp.eq.s32.totalorder %s29, 0
    %p250 = por %p248, %p249
    %s252 = sadd.s32 %s251, 1
    %p255 = scmp.eq.s32.totalorder %s23, 1
    %p256 = scmp.ne.s32.totalorder %s251, %s253
    %p257 = scmp.eq.s32.totalorder %s23, 0
    %p258 = por %p256, %p257
    %p259 = scmp.ne.s32.totalorder %s251, %s253
    %p260 = scmp.eq.s32.totalorder %s28, 1
    %p261 = por %p259, %p260
    %p262 = scmp.ne.s32.totalorder %s253, %s254
    %p263 = scmp.eq.s32.totalorder %s28, 0
    %p264 = por %p262, %p263
    %p265 = scmp.ne.s32.totalorder %s253, %s254
    %p266 = scmp.eq.s32.totalorder %s29, 1
    %p267 = por %p265, %p266
    %p269 = scmp.ne.s32.totalorder %s254, %s268
    %p270 = scmp.eq.s32.totalorder %s29, 0
    %p271 = por %p269, %p270
    %s273 = sadd.s32 %s272, 1
    %p276 = scmp.eq.s32.totalorder %s23, 1
    %p277 = scmp.ne.s32.totalorder %s272, %s274
    %p278 = scmp.eq.s32.totalorder %s23, 0
    %p279 = por %p277, %p278
    %p280 = scmp.ne.s32.totalorder %s272, %s274
    %p281 = scmp.eq.s32.totalorder %s28, 1
    %p282 = por %p280, %p281
    %p283 = scmp.ne.s32.totalorder %s274, %s275
    %p284 = scmp.eq.s32.totalorder %s28, 0
    %p285 = por %p283, %p284
    %p286 = scmp.ne.s32.totalorder %s274, %s275
    %p287 = scmp.eq.s32.totalorder %s29, 1
    %p288 = por %p286, %p287
    %p290 = scmp.ne.s32.totalorder %s275, %s289
    %p291 = scmp.eq.s32.totalorder %s29, 0
    %p292 = por %p290, %p291
    %s294 = sadd.s32 %s293, 1
    %p297 = scmp.eq.s32.totalorder %s23, 1
    %p298 = scmp.ne.s32.totalorder %s293, %s295
    %p299 = scmp.eq.s32.totalorder %s23, 0
    %p300 = por %p298, %p299
    %p301 = scmp.ne.s32.totalorder %s293, %s295
    %p302 = scmp.eq.s32.totalorder %s28, 1
    %p303 = por %p301, %p302
    %p304 = scmp.ne.s32.totalorder %s295, %s296
    %p305 = scmp.eq.s32.totalorder %s28, 0
    %p306 = por %p304, %p305
    %p307 = scmp.ne.s32.totalorder %s295, %s296
    %p308 = scmp.eq.s32.totalorder %s29, 1
    %p309 = por %p307, %p308
    %p311 = scmp.ne.s32.totalorder %s296, %s310
    %p312 = scmp.eq.s32.totalorder %s29, 0
    %p313 = por %p311, %p312
    %s315 = sadd.s32 %s314, 1
    %p318 = scmp.eq.s32.totalorder %s23, 1
    %p319 = scmp.ne.s32.totalorder %s314, %s316
    %p320 = scmp.eq.s32.totalorder %s23, 0
    %p321 = por %p319, %p320
    %p322 = scmp.ne.s32.totalorder %s314, %s316
    %p323 = scmp.eq.s32.totalorder %s28, 1
    %p324 = por %p322, %p323
    %p325 = scmp.ne.s32.totalorder %s316, %s317
    %p326 = scmp.eq.s32.totalorder %s28, 0
    %p327 = por %p325, %p326
    %p328 = scmp.ne.s32.totalorder %s316, %s317
    %p329 = scmp.eq.s32.totalorder %s29, 1
    %p330 = por %p328, %p329
    %p332 = scmp.ne.s32.totalorder %s317, %s331
    %p333 = scmp.eq.s32.totalorder %s29, 0
    %p334 = por %p332, %p333
    %s335 = ssub.s32 %s23, %s30
    %p336 = scmp.eq.s32.totalorder %s335, 0
    %s338 = sadd.s32 %s337, 1
    %s339 = scalar_select %p336, %s337, %s338
    %p342 = pneg %p336
    %p343 = scmp.eq.s32.totalorder %s23, 1
    %p344 = por %p342, %p343
    %p345 = scmp.ne.s32.totalorder %s337, %s340
    %p346 = scmp.eq.s32.totalorder %s23, 0
    %p347 = por %p345, %p346
    %p348 = scmp.ne.s32.totalorder %s337, %s340
    %p349 = scmp.eq.s32.totalorder %s28, 1
    %p350 = por %p348, %p349
    %p351 = scmp.ne.s32.totalorder %s340, %s341
    %p352 = scmp.eq.s32.totalorder %s28, 0
    %p353 = por %p351, %p352
    %p354 = scmp.ne.s32.totalorder %s340, %s341
    %p355 = scmp.eq.s32.totalorder %s29, 1
    %p356 = por %p354, %p355
    %p358 = scmp.ne.s32.totalorder %s341, %s357
    %p359 = scmp.eq.s32.totalorder %s29, 0
    %p360 = por %p358, %p359
    %s361 = ssub.s32 %s23, %s30
    %p362 = scmp.eq.s32.totalorder %s361, 0
    %s364 = sadd.s32 %s363, 1
    %s365 = scalar_select %p362, %s363, %s364
    %p368 = pneg %p362
    %p369 = scmp.eq.s32.totalorder %s23, 1
    %p370 = por %p368, %p369
    %p371 = scmp.ne.s32.totalorder %s363, %s366
    %p372 = scmp.eq.s32.totalorder %s23, 0
    %p373 = por %p371, %p372
    %p374 = scmp.ne.s32.totalorder %s363, %s366
    %p375 = scmp.eq.s32.totalorder %s28, 1
    %p376 = por %p374, %p375
    %p377 = scmp.ne.s32.totalorder %s366, %s367
    %p378 = scmp.eq.s32.totalorder %s28, 0
    %p379 = por %p377, %p378
    %p380 = scmp.ne.s32.totalorder %s366, %s367
    %p381 = scmp.eq.s32.totalorder %s29, 1
    %p382 = por %p380, %p381
    %p384 = scmp.ne.s32.totalorder %s367, %s383
    %p385 = scmp.eq.s32.totalorder %s29, 0
    %p386 = por %p384, %p385
    %s387 = ssub.s32 %s23, %s30
    %p388 = scmp.eq.s32.totalorder %s387, 0
    %s390 = sadd.s32 %s389, 1
    %s391 = scalar_select %p388, %s389, %s390
    %p394 = pneg %p388
    %p395 = scmp.eq.s32.totalorder %s23, 1
    %p396 = por %p394, %p395
    %p397 = scmp.ne.s32.totalorder %s389, %s392
    %p398 = scmp.eq.s32.totalorder %s23, 0
    %p399 = por %p397, %p398
    %p400 = scmp.ne.s32.totalorder %s389, %s392
    %p401 = scmp.eq.s32.totalorder %s28, 1
    %p402 = por %p400, %p401
    %p403 = scmp.ne.s32.totalorder %s392, %s393
    %p404 = scmp.eq.s32.totalorder %s28, 0
    %p405 = por %p403, %p404
    %p406 = scmp.ne.s32.totalorder %s392, %s393
    %p407 = scmp.eq.s32.totalorder %s29, 1
    %p408 = por %p406, %p407
    %p410 = scmp.ne.s32.totalorder %s393, %s409
    %p411 = scmp.eq.s32.totalorder %s29, 0
    %p412 = por %p410, %p411
    %p413 = scmp.le.s32.totalorder 1, %s23
    %p414 = scmp.lt.s32.totalorder %s23, 3
    %p415 = pnand %p413, %p414
    %p416 = pneg %p415
    // Predicated region
    $region9: #{deformable_decoder_forward.6} parent=5 // pred_check
      _
    $region10: #{deformable_decoder_forward.6} parent=5 // pred_check_branch
      %418 = sbr.rel (%p415) target = $region12
    $region11: #{deformable_decoder_forward.6} parent=5 // pred_region
      %s419 = ssub.s32 %s23, 1
      // Predicated region
      $region13: #{deformable_decoder_forward.6} parent=11 // pred_check
        %p420 = pneg %p96
      $region14: #{deformable_decoder_forward.6} parent=11 // pred_check_branch
        %422 = sbr.rel (%p420) target = $region16
      $region15: #{deformable_decoder_forward.6} parent=11 // pred_region
        _
      $region16: #{deformable_decoder_forward.6} parent=11 // pred_fallthru
        _
      // Predicated region
      $region17: #{deformable_decoder_forward.6} parent=11 // pred_check
        %p423 = pneg %p117
      $region18: #{deformable_decoder_forward.6} parent=11 // pred_check_branch
        %425 = sbr.rel (%p423) target = $region20
      $region19: #{deformable_decoder_forward.6} parent=11 // pred_region
        _
      $region20: #{deformable_decoder_forward.6} parent=11 // pred_fallthru
        _
      // Predicated region
      $region21: #{deformable_decoder_forward.6} parent=11 // pred_check
        %p426 = pneg %p138
      $region22: #{deformable_decoder_forward.6} parent=11 // pred_check_branch
        %428 = sbr.rel (%p426) target = $region24
      $region23: #{deformable_decoder_forward.6} parent=11 // pred_region
        _
      $region24: #{deformable_decoder_forward.6} parent=11 // pred_fallthru
        _
      // Predicated region
      $region25: #{deformable_decoder_forward.6} parent=11 // pred_check
        %p429 = pneg %p159
      $region26: #{deformable_decoder_forward.6} parent=11 // pred_check_branch
        %431 = sbr.rel (%p429) target = $region28
      $region27: #{deformable_decoder_forward.6} parent=11 // pred_region
        _
      $region28: #{deformable_decoder_forward.6} parent=11 // pred_fallthru
        _
      // Predicated region
      $region29: #{deformable_decoder_forward.6} parent=11 // pred_check
        %p432 = pneg %p180
      $region30: #{deformable_decoder_forward.6} parent=11 // pred_check_branch
        %434 = sbr.rel (%p432) target = $region32
      $region31: #{deformable_decoder_forward.6} parent=11 // pred_region
        _
      $region32: #{deformable_decoder_forward.6} parent=11 // pred_fallthru
        _
      // Predicated region
      $region33: #{deformable_decoder_forward.6} parent=11 // pred_check
        %p435 = pneg %p201
      $region34: #{deformable_decoder_forward.6} parent=11 // pred_check_branch
        %437 = sbr.rel (%p435) target = $region36
      $region35: #{deformable_decoder_forward.6} parent=11 // pred_region
        _
      $region36: #{deformable_decoder_forward.6} parent=11 // pred_fallthru
        _
      // Predicated region
      $region37: #{deformable_decoder_forward.6} parent=11 // pred_check
        %p438 = pneg %p222
      $region38: #{deformable_decoder_forward.6} parent=11 // pred_check_branch
        %440 = sbr.rel (%p438) target = $region40
      $region39: #{deformable_decoder_forward.6} parent=11 // pred_region
        _
      $region40: #{deformable_decoder_forward.6} parent=11 // pred_fallthru
        _
      // Predicated region
      $region41: #{deformable_decoder_forward.6} parent=11 // pred_check
        %p441 = pneg %p243
      $region42: #{deformable_decoder_forward.6} parent=11 // pred_check_branch
        %443 = sbr.rel (%p441) target = $region44
      $region43: #{deformable_decoder_forward.6} parent=11 // pred_region
        _
      $region44: #{deformable_decoder_forward.6} parent=11 // pred_fallthru
        _
      // Predicated region
      $region45: #{deformable_decoder_forward.6} parent=11 // pred_check
        %p444 = pneg %p264
      $region46: #{deformable_decoder_forward.6} parent=11 // pred_check_branch
        %446 = sbr.rel (%p444) target = $region48
      $region47: #{deformable_decoder_forward.6} parent=11 // pred_region
        _
      $region48: #{deformable_decoder_forward.6} parent=11 // pred_fallthru
        _
      // Predicated region
      $region49: #{deformable_decoder_forward.6} parent=11 // pred_check
        %p447 = pneg %p285
      $region50: #{deformable_decoder_forward.6} parent=11 // pred_check_branch
        %449 = sbr.rel (%p447) target = $region52
      $region51: #{deformable_decoder_forward.6} parent=11 // pred_region
        _
      $region52: #{deformable_decoder_forward.6} parent=11 // pred_fallthru
        _
      // Predicated region
      $region53: #{deformable_decoder_forward.6} parent=11 // pred_check
        %p450 = pneg %p306
      $region54: #{deformable_decoder_forward.6} parent=11 // pred_check_branch
        %452 = sbr.rel (%p450) target = $region56
      $region55: #{deformable_decoder_forward.6} parent=11 // pred_region
        _
      $region56: #{deformable_decoder_forward.6} parent=11 // pred_fallthru
        _
      // Predicated region
      $region57: #{deformable_decoder_forward.6} parent=11 // pred_check
        %p453 = pneg %p327
      $region58: #{deformable_decoder_forward.6} parent=11 // pred_check_branch
        %455 = sbr.rel (%p453) target = $region60
      $region59: #{deformable_decoder_forward.6} parent=11 // pred_region
        _
      $region60: #{deformable_decoder_forward.6} parent=11 // pred_fallthru
        _
    $region12: #{deformable_decoder_forward.6} parent=5 // pred_fallthru
      _
    %p456 = scmp.lt.s32.totalorder %s23, 2
    // Predicated region
    $region61: #{deformable_decoder_forward.6} parent=5 // pred_check
      %p457 = pneg %p456
    $region62: #{deformable_decoder_forward.6} parent=5 // pred_check_branch
      %459 = sbr.rel (%p457) target = $region64
    $region63: #{deformable_decoder_forward.6} parent=5 // pred_region
      // Predicated region
      $region65: #{deformable_decoder_forward.6} parent=63 // pred_check
        %p460 = pneg %p43
      $region66: #{deformable_decoder_forward.6} parent=63 // pred_check_branch
        %462 = sbr.rel (%p460) target = $region68
      $region67: #{deformable_decoder_forward.6} parent=63 // pred_region
        %p463 = scmp.lt.s32.totalorder %s23, 1
        %s464 = scalar_select %p463, %s23, 1
        %s465 = smul.addr %s464, 4
        %s466 = smul.addr %s465, 8
        %s467 = scalar_lea.vmem %s0, %s466
      $region68: #{deformable_decoder_forward.6} parent=63 // pred_fallthru
        _
      // Predicated region
      $region69: #{deformable_decoder_forward.6} parent=63 // pred_check
        %p468 = pneg %p69
      $region70: #{deformable_decoder_forward.6} parent=63 // pred_check_branch
        %470 = sbr.rel (%p468) target = $region72
      $region71: #{deformable_decoder_forward.6} parent=63 // pred_region
        %p471 = scmp.lt.s32.totalorder %s23, 1
        %s472 = scalar_select %p471, %s23, 1
        %s473 = smul.addr %s472, 4
        %s474 = smul.addr %s473, 8
        %s475 = scalar_lea.vmem %s1, %s474
      $region72: #{deformable_decoder_forward.6} parent=63 // pred_fallthru
        _
    $region64: #{deformable_decoder_forward.6} parent=5 // pred_fallthru
      _
    %p476 = scmp.le.s32.totalorder 1, %s23
    %p477 = scmp.lt.s32.totalorder %s23, 3
    %p478 = pnand %p476, %p477
    %p479 = pneg %p478
    // Predicated region
    $region73: #{deformable_decoder_forward.6} parent=5 // pred_check
      _
    $region74: #{deformable_decoder_forward.6} parent=5 // pred_check_branch
      %481 = sbr.rel (%p478) target = $region76
    $region75: #{deformable_decoder_forward.6} parent=5 // pred_region
      %s482 = ssub.s32 %s23, 1
      %p483 = scmp.lt.s32.totalorder %s28, 1
      %s484 = scalar_select %p483, %s28, 1
      %s485 = smul.addr %s484, 4
      %s486 = smul.addr %s485, 8
      %s487 = scalar_lea.vmem %s0, %s486
      %p488 = pneg %p49
      %p489 = pneg %p46
      %p490 = scmp.lt.s32.totalorder %s28, 1
      %s491 = scalar_select %p490, %s28, 1
      %s492 = smul.addr %s491, 4
      %s493 = smul.addr %s492, 8
      %s494 = scalar_lea.vmem %s1, %s493
      %p495 = pneg %p75
      %p496 = pneg %p72
      %p497 = pneg %p96
      %p498 = pneg %p93
      %p499 = pneg %p117
      %p500 = pneg %p114
      %p501 = pneg %p138
      %p502 = pneg %p135
      %p503 = pneg %p159
      %p504 = pneg %p156
      %p505 = pneg %p180
      %p506 = pneg %p177
      %p507 = pneg %p201
      %p508 = pneg %p198
      %p509 = pneg %p222
      %p510 = pneg %p219
      %p511 = pneg %p243
      %p512 = pneg %p240
      %p513 = pneg %p264
      %p514 = pneg %p261
      %p515 = pneg %p285
      %p516 = pneg %p282
      %p517 = pneg %p306
      %p518 = pneg %p303
      %p519 = pneg %p327
      %p520 = pneg %p324
      %p521 = pneg %p353
      %p522 = pneg %p350
      %p523 = scmp.lt.s32.totalorder %s28, 1
      %s524 = scalar_select %p523, %s28, 1
      %s525 = smul.addr %s524, 4
      %s526 = smul.addr %s525, 8
      %s527 = scalar_lea.vmem %s14, %s526
      %p528 = pneg %p379
      %p529 = pneg %p376
      %p530 = scmp.lt.s32.totalorder %s28, 1
      %s531 = scalar_select %p530, %s28, 1
      %s532 = smul.addr %s531, 4
      %s533 = smul.addr %s532, 8
      %s534 = scalar_lea.vmem %s15, %s533
      %p535 = pneg %p405
      %p536 = pneg %p402
      %p537 = scmp.lt.s32.totalorder %s28, 1
      %s538 = scalar_select %p537, %s28, 1
      %s539 = smul.addr %s538, 4
      %s540 = smul.addr %s539, 8
      %s541 = scalar_lea.vmem %s16, %s540
      %p542 = scmp.lt.s32.totalorder %s28, 1
      %s543 = scalar_select %p542, %s28, 1
      %s544 = smul.addr %s543, 4
      %s545 = smul.addr %s544, 8
      %s546 = scalar_lea.vmem %s0, %s545
      %p547 = scmp.lt.s32.totalorder %s28, 1
      %s548 = scalar_select %p547, %s28, 1
      %s549 = smul.addr %s548, 4
      %s550 = smul.addr %s549, 8
      %s551 = scalar_lea.vmem %s1, %s550
      %p552 = scmp.lt.s32.totalorder %s28, 1
      %s553 = scalar_select %p552, %s28, 1
      %s554 = smul.addr %s553, 4
      %s555 = smul.addr %s554, 8
      %s556 = scalar_lea.vmem %s14, %s555
      %p557 = scmp.lt.s32.totalorder %s28, 1
      %s558 = scalar_select %p557, %s28, 1
      %s559 = smul.addr %s558, 4
      %s560 = smul.addr %s559, 8
      %s561 = scalar_lea.vmem %s15, %s560
      %p562 = scmp.lt.s32.totalorder %s28, 1
      %s563 = scalar_select %p562, %s28, 1
      %s564 = smul.addr %s563, 4
      %s565 = smul.addr %s564, 8
      %s566 = scalar_lea.vmem %s16, %s565
      %v568 = vld [vmem:[%s546] sm:$0xff]
      %v569 = vld [vmem:[%s546 + $0x8] sm:$0xff]
      %v570 = vld [vmem:[%s546 + $0x10] sm:$0xff]
      %v571 = vld [vmem:[%s546 + $0x18] sm:$0xff]
      %v572 = vld [vmem:[%s551] sm:$0xff]
      %v573 = vld [vmem:[%s551 + $0x8] sm:$0xff]
      %v574 = vld [vmem:[%s551 + $0x10] sm:$0xff]
      %v575 = vld [vmem:[%s551 + $0x18] sm:$0xff]
      %v576 = vadd.f32 %v568, %v572
      %v577 = vadd.f32 %v569, %v573
      %v578 = vadd.f32 %v570, %v574
      %v579 = vadd.f32 %v571, %v575
      %v580 = vpack.c.bf16 %v577, %v576
      %v581 = vpack.c.bf16 %v579, %v578
      %v582 = vld [vmem:[%s2] sm:$0xf]
      %v583 = vld [vmem:[%s2 + $0x4] sm:$0xf]
      %v584 = vld [vmem:[%s2 + $0x8] sm:$0xf]
      %v585 = vld [vmem:[%s2 + $0xc] sm:$0xf]
      %v586 = vld [vmem:[%s2 + $0x10] sm:$0xf]
      %v587 = vld [vmem:[%s2 + $0x14] sm:$0xf]
      %v588 = vld [vmem:[%s2 + $0x18] sm:$0xf]
      %v589 = vld [vmem:[%s2 + $0x1c] sm:$0xf]
      %v590 = vld [vmem:[%s3] sm:$0x1]
      %v592 = vlaneseq
      %v593 = vshrl.u32 %v592, 7
      %v594 = vsub.s32 0, %v593
      %v595 = vrot.slane %v590, %v594
      %v605 = vunpack.c.l.b16 %v582
      %v606 = vunpack.c.l.b16 %v583
      %v607 = vunpack.c.l.b16 %v584
      %v608 = vunpack.c.l.b16 %v585
      %v609 = vunpack.c.l.b16 %v586
      %v610 = vunpack.c.l.b16 %v587
      %v611 = vunpack.c.l.b16 %v588
      %v612 = vunpack.c.l.b16 %v589
      %v613 = vpack.c.b16 %v606, %v605
      %v614 = vpack.c.b16 %v608, %v607
      %v615 = vpack.c.b16 %v610, %v609
      %v616 = vpack.c.b16 %v612, %v611
      %vm621 = vcmask 523264
      %v623 = vsel %vm621, %v580, 0
      %v626 = vsel %vm621, %v581, 0
      %628 = vmatprep.subr.bf16.mxu0 0
      %629 = vmatpush1.bf16.msra.mxu0 %v613
      %630 = vmatprep.subr.bf16.mxu0 0
      %631 = vmatpush1.bf16.msra.mxu0 %v614
      %632 = vmatprep.subr.bf16.mxu0 0
      %633 = vmatpush1.bf16.msra.mxu0 %v615
      %634 = vmatprep.subr.bf16.mxu0 0
      %635 = vmatpush1.bf16.msra.mxu0 %v616
      %636 = vmatprep.subr.bf16.mxu0 0
      %637 = vmatpush1.bf16.msra.mxu0 0
      %638 = vmatprep.subr.bf16.mxu0 0
      %639 = vmatpush1.bf16.msra.mxu0 0
      %640 = vmatprep.subr.bf16.mxu0 0
      %641 = vmatpush1.bf16.msra.mxu0 0
      %642 = vmatprep.subr.bf16.mxu0 0
      %643 = vmatpush1.bf16.msra.mxu0 0
      %644 = vmatprep.subr.bf16.mxu0 0
      %645 = vmatpush1.bf16.msra.mxu0 0
      %646 = vmatprep.subr.bf16.mxu0 0
      %647 = vmatpush1.bf16.msra.mxu0 0
      %648 = vmatprep.subr.bf16.mxu0 0
      %649 = vmatpush1.bf16.msra.mxu0 0
      %650 = vmatprep.subr.bf16.mxu0 0
      %651 = vmatpush1.bf16.msra.mxu0 0
      %652 = vmatprep.subr.bf16.mxu0 0
      %653 = vmatpush1.bf16.msra.mxu0 0
      %654 = vmatprep.subr.bf16.mxu0 0
      %655 = vmatpush1.bf16.msra.mxu0 0
      %656 = vmatprep.subr.bf16.mxu0 0
      %657 = vmatpush1.bf16.msra.mxu0 0
      %658 = vmatprep.subr.bf16.mxu0 0
      %659 = vmatpush1.bf16.msra.mxu0 0
      %660 = vmatprep.mubr.bf16.mxu0 0
      %661 = vmatmul.mubr.bf16.gmra.mrb[0].mxu0 %v623
      %v662 = vpop.f32.mrb[0].mxu0
      %v663 = vadd.f32 %v595, %v662
      %v664 = vpop.f32.mrb[0].mxu0
      %v665 = vpop.f32.mrb[0].mxu0
      %v666 = vadd.f32 %v595, %v665
      %v667 = vpop.f32.mrb[0].mxu0
      %668 = vmatprep.mubr.bf16.mxu0 0
      %669 = vmatmul.mubr.bf16.gmra.mrb[0].mxu0 %v626
      %v670 = vpop.f32.mrb[0].mxu0
      %v671 = vadd.f32 %v595, %v670
      %v672 = vpop.f32.mrb[0].mxu0
      %v673 = vpop.f32.mrb[0].mxu0
      %v674 = vadd.f32 %v595, %v673
      %v675 = vpop.f32.mrb[0].mxu0
      %676 = vdwg.mxu0
      %v677 = vpack.c.bf16 %v569, %v568
      %v678 = vpack.c.bf16 %v571, %v570
      %v679 = vld [vmem:[%s4] sm:$0xf]
      %v680 = vld [vmem:[%s4 + $0x4] sm:$0xf]
      %v681 = vld [vmem:[%s4 + $0x8] sm:$0xf]
      %v682 = vld [vmem:[%s4 + $0xc] sm:$0xf]
      %v683 = vld [vmem:[%s4 + $0x10] sm:$0xf]
      %v684 = vld [vmem:[%s4 + $0x14] sm:$0xf]
      %v685 = vld [vmem:[%s4 + $0x18] sm:$0xf]
      %v686 = vld [vmem:[%s4 + $0x1c] sm:$0xf]
      %v687 = vld [vmem:[%s5] sm:$0x1]
      %v689 = vlaneseq
      %v690 = vshrl.u32 %v689, 7
      %v691 = vsub.s32 0, %v690
      %v692 = vrot.slane %v687, %v691
      %v702 = vunpack.c.l.b16 %v679
      %v703 = vunpack.c.l.b16 %v680
      %v704 = vunpack.c.l.b16 %v681
      %v705 = vunpack.c.l.b16 %v682
      %v706 = vunpack.c.l.b16 %v683
      %v707 = vunpack.c.l.b16 %v684
      %v708 = vunpack.c.l.b16 %v685
      %v709 = vunpack.c.l.b16 %v686
      %v710 = vpack.c.b16 %v703, %v702
      %v711 = vpack.c.b16 %v705, %v704
      %v712 = vpack.c.b16 %v707, %v706
      %v713 = vpack.c.b16 %v709, %v708
      %v719 = vsel %vm621, %v677, 0
      %v722 = vsel %vm621, %v678, 0
      %724 = vmatprep.subr.bf16.mxu0 0
      %725 = vmatpush1.bf16.msra.mxu0 %v710
      %726 = vmatprep.subr.bf16.mxu0 0
      %727 = vmatpush1.bf16.msra.mxu0 %v711
      %728 = vmatprep.subr.bf16.mxu0 0
      %729 = vmatpush1.bf16.msra.mxu0 %v712
      %730 = vmatprep.subr.bf16.mxu0 0
      %731 = vmatpush1.bf16.msra.mxu0 %v713
      %732 = vmatprep.subr.bf16.mxu0 0
      %733 = vmatpush1.bf16.msra.mxu0 0
      %734 = vmatprep.subr.bf16.mxu0 0
      %735 = vmatpush1.bf16.msra.mxu0 0
      %736 = vmatprep.subr.bf16.mxu0 0
      %737 = vmatpush1.bf16.msra.mxu0 0
      %738 = vmatprep.subr.bf16.mxu0 0
      %739 = vmatpush1.bf16.msra.mxu0 0
      %740 = vmatprep.subr.bf16.mxu0 0
      %741 = vmatpush1.bf16.msra.mxu0 0
      %742 = vmatprep.subr.bf16.mxu0 0
      %743 = vmatpush1.bf16.msra.mxu0 0
      %744 = vmatprep.subr.bf16.mxu0 0
      %745 = vmatpush1.bf16.msra.mxu0 0
      %746 = vmatprep.subr.bf16.mxu0 0
      %747 = vmatpush1.bf16.msra.mxu0 0
      %748 = vmatprep.subr.bf16.mxu0 0
      %749 = vmatpush1.bf16.msra.mxu0 0
      %750 = vmatprep.subr.bf16.mxu0 0
      %751 = vmatpush1.bf16.msra.mxu0 0
      %752 = vmatprep.subr.bf16.mxu0 0
      %753 = vmatpush1.bf16.msra.mxu0 0
      %754 = vmatprep.subr.bf16.mxu0 0
      %755 = vmatpush1.bf16.msra.mxu0 0
      %756 = vmatprep.mubr.bf16.mxu0 0
      %757 = vmatmul.mubr.bf16.gmra.mrb[0].mxu0 %v719
      %v758 = vpop.f32.mrb[0].mxu0
      %v759 = vadd.f32 %v692, %v758
      %v760 = vpop.f32.mrb[0].mxu0
      %v761 = vpop.f32.mrb[0].mxu0
      %v762 = vadd.f32 %v692, %v761
      %v763 = vpop.f32.mrb[0].mxu0
      %764 = vmatprep.mubr.bf16.mxu0 0
      %765 = vmatmul.mubr.bf16.gmra.mrb[0].mxu0 %v722
      %v766 = vpop.f32.mrb[0].mxu0
      %v767 = vadd.f32 %v692, %v766
      %v768 = vpop.f32.mrb[0].mxu0
      %v769 = vpop.f32.mrb[0].mxu0
      %v770 = vadd.f32 %v692, %v769
      %v771 = vpop.f32.mrb[0].mxu0
      %772 = vdwg.mxu0
      %v773 = vpack.c.bf16 %v666, %v663
      %v774 = vpack.c.bf16 %v674, %v671
      %v775 = vpack.c.bf16 %v762, %v759
      %v776 = vpack.c.bf16 %v770, %v767
      %779 = vrot.lane.b32.xlu0 %v773, 64
      %v780 = vpop.permute.xlu0 %779
      %781 = vrot.lane.b32.xlu0 %v774, 64
      %v782 = vpop.permute.xlu0 %781
      %vm783 = vcmask 130048
      %v785 = vsel %vm783, %v773, 0
      %v788 = vsel %vm783, %v774, 0
      %v791 = vsel %vm783, %v780, 0
      %v794 = vsel %vm783, %v782, 0
      %796 = vmatprep.subr.bf16.mxu0 0
      %797 = vmatpush1.bf16.xpose.msra.mxu0 %v791
      %798 = vmatprep.subr.bf16.mxu0 0
      %799 = vmatpush1.bf16.xpose.msra.mxu0 %v794
      %800 = vmatprep.subr.bf16.mxu0 0
      %801 = vmatpush1.bf16.xpose.msra.mxu0 0
      %802 = vmatprep.subr.bf16.mxu0 0
      %803 = vmatpush1.bf16.xpose.msra.mxu0 0
      %804 = vmatprep.subr.bf16.mxu0 0
      %805 = vmatpush1.bf16.xpose.msra.mxu0 0
      %806 = vmatprep.subr.bf16.mxu0 0
      %807 = vmatpush1.bf16.xpose.msra.mxu0 0
      %808 = vmatprep.subr.bf16.mxu0 0
      %809 = vmatpush1.bf16.xpose.msra.mxu0 0
      %810 = vmatprep.subr.bf16.mxu0 0
      %811 = vmatpush1.bf16.xpose.msra.mxu0 0
      %812 = vmatprep.subr.bf16.mxu0 0
      %813 = vmatpush1.bf16.xpose.msra.mxu0 0
      %814 = vmatprep.subr.bf16.mxu0 0
      %815 = vmatpush1.bf16.xpose.msra.mxu0 0
      %816 = vmatprep.subr.bf16.mxu0 0
      %817 = vmatpush1.bf16.xpose.msra.mxu0 0
      %818 = vmatprep.subr.bf16.mxu0 0
      %819 = vmatpush1.bf16.xpose.msra.mxu0 0
      %820 = vmatprep.subr.bf16.mxu0 0
      %821 = vmatpush1.bf16.xpose.msra.mxu0 0
      %822 = vmatprep.subr.bf16.mxu0 0
      %823 = vmatpush1.bf16.xpose.msra.mxu0 0
      %824 = vmatprep.subr.bf16.mxu0 0
      %825 = vmatpush1.bf16.xpose.msra.mxu0 0
      %826 = vmatprep.subr.bf16.mxu0 0
      %827 = vmatpush1.bf16.xpose.msra.mxu0 0
      %828 = vmatprep.mubr.bf16.mxu0 0
      %829 = vmatmul.mubr.bf16.gmra.mrb[0].mxu0 %v785
      %v830 = vpop.f32.mrb[0].mxu0
      %v831 = vadd.f32 0.0, %v830
      %v832 = vpop.f32.mrb[0].mxu0
      %v833 = vpop.f32.mrb[0].mxu0
      %v834 = vadd.f32 0.0, %v833
      %v835 = vpop.f32.mrb[0].mxu0
      %836 = vmatprep.mubr.bf16.mxu0 0
      %837 = vmatmul.mubr.bf16.gmra.mrb[0].mxu0 %v788
      %v838 = vpop.f32.mrb[0].mxu0
      %v839 = vadd.f32 0.0, %v838
      %v840 = vpop.f32.mrb[0].mxu0
      %v841 = vpop.f32.mrb[0].mxu0
      %v842 = vadd.f32 0.0, %v841
      %v843 = vpop.f32.mrb[0].mxu0
      %844 = vdwg.mxu0
      %v845 = vmul.f32 %v831, 0.25
      %v846 = vmul.f32 %v834, 0.25
      %v847 = vmul.f32 %v839, 0.25
      %v848 = vmul.f32 %v842, 0.25
      %vm849 = vcmask 261120
      %v850 = vsel %vm849, %v845, -inf
      %851 = vmax.xlane.f32.xlu0 %v850
      %v852 = vpop.xlane.xlu0 %851
      %v853 = vsel %vm849, %v846, -inf
      %854 = vmax.xlane.f32.xlu0 %v853
      %v855 = vpop.xlane.xlu0 %854
      %v856 = vsel %vm849, %v847, -inf
      %857 = vmax.xlane.f32.xlu0 %v856
      %v858 = vpop.xlane.xlu0 %857
      %v859 = vsel %vm849, %v848, -inf
      %860 = vmax.xlane.f32.xlu0 %v859
      %v861 = vpop.xlane.xlu0 %860
      %v862 = vsub.f32 %v845, %v852
      %v863 = vsub.f32 %v846, %v855
      %v864 = vsub.f32 %v847, %v858
      %v865 = vsub.f32 %v848, %v861
      %v866 = vmul.f32 %v862, 1.442695
      %v867 = vpow.pop %v866
      %v868 = vmul.f32 %v863, 1.442695
      %v869 = vpow.pop %v868
      %v870 = vmul.f32 %v864, 1.442695
      %v871 = vpow.pop %v870
      %v872 = vmul.f32 %v865, 1.442695
      %v873 = vpow.pop %v872
      %v874 = vsel %vm849, %v867, 0.0
      %875 = vadd.xlane.f32.xlu0 %v874
      %v876 = vpop.xlane.xlu0 %875
      %v877 = vsel %vm849, %v869, 0.0
      %878 = vadd.xlane.f32.xlu0 %v877
      %v879 = vpop.xlane.xlu0 %878
      %v880 = vsel %vm849, %v871, 0.0
      %881 = vadd.xlane.f32.xlu0 %v880
      %v882 = vpop.xlane.xlu0 %881
      %v883 = vsel %vm849, %v873, 0.0
      %884 = vadd.xlane.f32.xlu0 %v883
      %v885 = vpop.xlane.xlu0 %884
      %v886 = vrcp.pop %v876
      %v887 = vrcp.pop %v879
      %v888 = vrcp.pop %v882
      %v889 = vrcp.pop %v885
      %v890 = vmul.f32 %v867, %v886
      %v891 = vmul.f32 %v869, %v887
      %v892 = vmul.f32 %v871, %v888
      %v893 = vmul.f32 %v873, %v889
      %v894 = vpack.c.bf16 %v891, %v890
      %v895 = vpack.c.bf16 %v893, %v892
      %v897 = vsel %vm849, %v894, 0
      %v900 = vsel %vm849, %v895, 0
      %902 = vmatprep.subr.bf16.mxu0 0
      %903 = vmatpush1.bf16.msra.mxu0 %v775
      %904 = vmatprep.subr.bf16.mxu0 0
      %905 = vmatpush1.bf16.msra.mxu0 %v776
      %906 = vmatprep.subr.bf16.mxu0 0
      %907 = vmatpush1.bf16.msra.mxu0 0
      %908 = vmatprep.subr.bf16.mxu0 0
      %909 = vmatpush1.bf16.msra.mxu0 0
      %910 = vmatprep.subr.bf16.mxu0 0
      %911 = vmatpush1.bf16.msra.mxu0 0
      %912 = vmatprep.subr.bf16.mxu0 0
      %913 = vmatpush1.bf16.msra.mxu0 0
      %914 = vmatprep.subr.bf16.mxu0 0
      %915 = vmatpush1.bf16.msra.mxu0 0
      %916 = vmatprep.subr.bf16.mxu0 0
      %917 = vmatpush1.bf16.msra.mxu0 0
      %918 = vmatprep.subr.bf16.mxu0 0
      %919 = vmatpush1.bf16.msra.mxu0 0
      %920 = vmatprep.subr.bf16.mxu0 0
      %921 = vmatpush1.bf16.msra.mxu0 0
      %922 = vmatprep.subr.bf16.mxu0 0
      %923 = vmatpush1.bf16.msra.mxu0 0
      %924 = vmatprep.subr.bf16.mxu0 0
      %925 = vmatpush1.bf16.msra.mxu0 0
      %926 = vmatprep.subr.bf16.mxu0 0
      %927 = vmatpush1.bf16.msra.mxu0 0
      %928 = vmatprep.subr.bf16.mxu0 0
      %929 = vmatpush1.bf16.msra.mxu0 0
      %930 = vmatprep.subr.bf16.mxu0 0
      %931 = vmatpush1.bf16.msra.mxu0 0
      %932 = vmatprep.subr.bf16.mxu0 0
      %933 = vmatpush1.bf16.msra.mxu0 0
      %934 = vmatprep.mubr.bf16.mxu0 0
      %935 = vmatmul.mubr.bf16.gmra.mrb[0].mxu0 %v897
      %v936 = vpop.f32.mrb[0].mxu0
      %v937 = vadd.f32 0.0, %v936
      %v938 = vpop.f32.mrb[0].mxu0
      %v939 = vpop.f32.mrb[0].mxu0
      %v940 = vadd.f32 0.0, %v939
      %v941 = vpop.f32.mrb[0].mxu0
      %942 = vmatprep.mubr.bf16.mxu0 0
      %943 = vmatmul.mubr.bf16.gmra.mrb[0].mxu0 %v900
      %v944 = vpop.f32.mrb[0].mxu0
      %v945 = vadd.f32 0.0, %v944
      %v946 = vpop.f32.mrb[0].mxu0
      %v947 = vpop.f32.mrb[0].mxu0
      %v948 = vadd.f32 0.0, %v947
      %v949 = vpop.f32.mrb[0].mxu0
      %950 = vdwg.mxu0
      %951 = vst.msk [vmem:[#allocation2] sm:$0xff] %vm783, %v937
      %952 = vst.msk [vmem:[#allocation2 + $0x8] sm:$0xff] %vm783, %v940
      %953 = vst.msk [vmem:[#allocation2 + $0x10] sm:$0xff] %vm783, %v945
      %954 = vst.msk [vmem:[#allocation2 + $0x18] sm:$0xff] %vm783, %v948
      %955 = vrot.lane.b32.xlu0 %v773, 112
      %v956 = vpop.permute.xlu0 %955
      %957 = vrot.lane.b32.xlu0 %v774, 112
      %v958 = vpop.permute.xlu0 %957
      %959 = vrot.lane.b32.xlu0 %v773, 48
      %v960 = vpop.permute.xlu0 %959
      %961 = vrot.lane.b32.xlu0 %v774, 48
      %v962 = vpop.permute.xlu0 %961
      %v964 = vsel %vm783, %v956, 0
      %v967 = vsel %vm783, %v958, 0
      %v970 = vsel %vm783, %v960, 0
      %v973 = vsel %vm783, %v962, 0
      %975 = vmatprep.subr.bf16.mxu0 0
      %976 = vmatpush1.bf16.xpose.msra.mxu0 %v970
      %977 = vmatprep.subr.bf16.mxu0 0
      %978 = vmatpush1.bf16.xpose.msra.mxu0 %v973
      %979 = vmatprep.subr.bf16.mxu0 0
      %980 = vmatpush1.bf16.xpose.msra.mxu0 0
      %981 = vmatprep.subr.bf16.mxu0 0
      %982 = vmatpush1.bf16.xpose.msra.mxu0 0
      %983 = vmatprep.subr.bf16.mxu0 0
      %984 = vmatpush1.bf16.xpose.msra.mxu0 0
      %985 = vmatprep.subr.bf16.mxu0 0
      %986 = vmatpush1.bf16.xpose.msra.mxu0 0
      %987 = vmatprep.subr.bf16.mxu0 0
      %988 = vmatpush1.bf16.xpose.msra.mxu0 0
      %989 = vmatprep.subr.bf16.mxu0 0
      %990 = vmatpush1.bf16.xpose.msra.mxu0 0
      %991 = vmatprep.subr.bf16.mxu0 0
      %992 = vmatpush1.bf16.xpose.msra.mxu0 0
      %993 = vmatprep.subr.bf16.mxu0 0
      %994 = vmatpush1.bf16.xpose.msra.mxu0 0
      %995 = vmatprep.subr.bf16.mxu0 0
      %996 = vmatpush1.bf16.xpose.msra.mxu0 0
      %997 = vmatprep.subr.bf16.mxu0 0
      %998 = vmatpush1.bf16.xpose.msra.mxu0 0
      %999 = vmatprep.subr.bf16.mxu0 0
      %1000 = vmatpush1.bf16.xpose.msra.mxu0 0
      %1001 = vmatprep.subr.bf16.mxu0 0
      %1002 = vmatpush1.bf16.xpose.msra.mxu0 0
      %1003 = vmatprep.subr.bf16.mxu0 0
      %1004 = vmatpush1.bf16.xpose.msra.mxu0 0
      %1005 = vmatprep.subr.bf16.mxu0 0
      %1006 = vmatpush1.bf16.xpose.msra.mxu0 0
      %1007 = vmatprep.mubr.bf16.mxu0 0
      %1008 = vmatmul.mubr.bf16.gmra.mrb[0].mxu0 %v964
      %v1009 = vpop.f32.mrb[0].mxu0
      %v1010 = vadd.f32 0.0, %v1009
      %v1011 = vpop.f32.mrb[0].mxu0
      %v1012 = vpop.f32.mrb[0].mxu0
      %v1013 = vadd.f32 0.0, %v1012
      %v1014 = vpop.f32.mrb[0].mxu0
      %1015 = vmatprep.mubr.bf16.mxu0 0
      %1016 = vmatmul.mubr.bf16.gmra.mrb[0].mxu0 %v967
      %v1017 = vpop.f32.mrb[0].mxu0
      %v1018 = vadd.f32 0.0, %v1017
      %v1019 = vpop.f32.mrb[0].mxu0
      %v1020 = vpop.f32.mrb[0].mxu0
      %v1021 = vadd.f32 0.0, %v1020
      %v1022 = vpop.f32.mrb[0].mxu0
      %1023 = vdwg.mxu0
      %v1024 = vmul.f32 %v1010, 0.25
      %v1025 = vmul.f32 %v1013, 0.25
      %v1026 = vmul.f32 %v1018, 0.25
      %v1027 = vmul.f32 %v1021, 0.25
      %v1028 = vsel %vm849, %v1024, -inf
      %1029 = vmax.xlane.f32.xlu0 %v1028
      %v1030 = vpop.xlane.xlu0 %1029
      %v1031 = vsel %vm849, %v1025, -inf
      %1032 = vmax.xlane.f32.xlu0 %v1031
      %v1033 = vpop.xlane.xlu0 %1032
      %v1034 = vsel %vm849, %v1026, -inf
      %1035 = vmax.xlane.f32.xlu0 %v1034
      %v1036 = vpop.xlane.xlu0 %1035
      %v1037 = vsel %vm849, %v1027, -inf
      %1038 = vmax.xlane.f32.xlu0 %v1037
      %v1039 = vpop.xlane.xlu0 %1038
      %v1040 = vsub.f32 %v1024, %v1030
      %v1041 = vsub.f32 %v1025, %v1033
      %v1042 = vsub.f32 %v1026, %v1036
      %v1043 = vsub.f32 %v1027, %v1039
      %v1044 = vmul.f32 %v1040, 1.442695
      %v1045 = vpow.pop %v1044
      %v1046 = vmul.f32 %v1041, 1.442695
      %v1047 = vpow.pop %v1046
      %v1048 = vmul.f32 %v1042, 1.442695
      %v1049 = vpow.pop %v1048
      %v1050 = vmul.f32 %v1043, 1.442695
      %v1051 = vpow.pop %v1050
      %v1052 = vsel %vm849, %v1045, 0.0
      %1053 = vadd.xlane.f32.xlu0 %v1052
      %v1054 = vpop.xlane.xlu0 %1053
      %v1055 = vsel %vm849, %v1047, 0.0
      %1056 = vadd.xlane.f32.xlu0 %v1055
      %v1057 = vpop.xlane.xlu0 %1056
      %v1058 = vsel %vm849, %v1049, 0.0
      %1059 = vadd.xlane.f32.xlu0 %v1058
      %v1060 = vpop.xlane.xlu0 %1059
      %v1061 = vsel %vm849, %v1051, 0.0
      %1062 = vadd.xlane.f32.xlu0 %v1061
      %v1063 = vpop.xlane.xlu0 %1062
      %v1064 = vrcp.pop %v1054
      %v1065 = vrcp.pop %v1057
      %v1066 = vrcp.pop %v1060
      %v1067 = vrcp.pop %v1063
      %v1068 = vmul.f32 %v1045, %v1064
      %v1069 = vmul.f32 %v1047, %v1065
      %v1070 = vmul.f32 %v1049, %v1066
      %v1071 = vmul.f32 %v1051, %v1067
      %v1072 = vpack.c.bf16 %v1069, %v1068
      %v1073 = vpack.c.bf16 %v1071, %v1070
      %1076 = vrot.lane.b32.xlu0 %v775, 112
      %v1077 = vpop.permute.xlu0 %1076
      %1078 = vrot.lane.b32.xlu0 %v776, 112
      %v1079 = vpop.permute.xlu0 %1078
      %v1083 = vsel %vm849, %v1072, 0
      %v1086 = vsel %vm849, %v1073, 0
      %1088 = vmatprep.subr.bf16.mxu0 0
      %1089 = vmatpush1.bf16.msra.mxu0 %v1077
      %1090 = vmatprep.subr.bf16.mxu0 0
      %1091 = vmatpush1.bf16.msra.mxu0 %v1079
      %1092 = vmatprep.subr.bf16.mxu0 0
      %1093 = vmatpush1.bf16.msra.mxu0 0
      %1094 = vmatprep.subr.bf16.mxu0 0
      %1095 = vmatpush1.bf16.msra.mxu0 0
      %1096 = vmatprep.subr.bf16.mxu0 0
      %1097 = vmatpush1.bf16.msra.mxu0 0
      %1098 = vmatprep.subr.bf16.mxu0 0
      %1099 = vmatpush1.bf16.msra.mxu0 0
      %1100 = vmatprep.subr.bf16.mxu0 0
      %1101 = vmatpush1.bf16.msra.mxu0 0
      %1102 = vmatprep.subr.bf16.mxu0 0
      %1103 = vmatpush1.bf16.msra.mxu0 0
      %1104 = vmatprep.subr.bf16.mxu0 0
      %1105 = vmatpush1.bf16.msra.mxu0 0
      %1106 = vmatprep.subr.bf16.mxu0 0
      %1107 = vmatpush1.bf16.msra.mxu0 0
      %1108 = vmatprep.subr.bf16.mxu0 0
      %1109 = vmatpush1.bf16.msra.mxu0 0
      %1110 = vmatprep.subr.bf16.mxu0 0
      %1111 = vmatpush1.bf16.msra.mxu0 0
      %1112 = vmatprep.subr.bf16.mxu0 0
      %1113 = vmatpush1.bf16.msra.mxu0 0
      %1114 = vmatprep.subr.bf16.mxu0 0
      %1115 = vmatpush1.bf16.msra.mxu0 0
      %1116 = vmatprep.subr.bf16.mxu0 0
      %1117 = vmatpush1.bf16.msra.mxu0 0
      %1118 = vmatprep.subr.bf16.mxu0 0
      %1119 = vmatpush1.bf16.msra.mxu0 0
      %1120 = vmatprep.mubr.bf16.mxu0 0
      %1121 = vmatmul.mubr.bf16.gmra.mrb[0].mxu0 %v1083
      %v1122 = vpop.f32.mrb[0].mxu0
      %v1123 = vadd.f32 0.0, %v1122
      %v1124 = vpop.f32.mrb[0].mxu0
      %v1125 = vpop.f32.mrb[0].mxu0
      %v1126 = vadd.f32 0.0, %v1125
      %v1127 = vpop.f32.mrb[0].mxu0
      %1128 = vmatprep.mubr.bf16.mxu0 0
      %1129 = vmatmul.mubr.bf16.gmra.mrb[0].mxu0 %v1086
      %v1130 = vpop.f32.mrb[0].mxu0
      %v1131 = vadd.f32 0.0, %v1130
      %v1132 = vpop.f32.mrb[0].mxu0
      %v1133 = vpop.f32.mrb[0].mxu0
      %v1134 = vadd.f32 0.0, %v1133
      %v1135 = vpop.f32.mrb[0].mxu0
      %1136 = vdwg.mxu0
      %1141 = vrot.lane.b32.xlu0 %v1123, 16
      %v1142 = vpop.permute.xlu0 %1141
      %1143 = vrot.lane.b32.xlu0 %v1126, 16
      %v1144 = vpop.permute.xlu0 %1143
      %1145 = vrot.lane.b32.xlu0 %v1131, 16
      %v1146 = vpop.permute.xlu0 %1145
      %1147 = vrot.lane.b32.xlu0 %v1134, 16
      %v1148 = vpop.permute.xlu0 %1147
      %vm1153 = vcmask 261248
      %1154 = vst.msk [vmem:[#allocation2] sm:$0xff] %vm1153, %v1142
      %1155 = vst.msk [vmem:[#allocation2 + $0x8] sm:$0xff] %vm1153, %v1144
      %1156 = vst.msk [vmem:[#allocation2 + $0x10] sm:$0xff] %vm1153, %v1146
      %1157 = vst.msk [vmem:[#allocation2 + $0x18] sm:$0xff] %vm1153, %v1148
      %1158 = vrot.lane.b32.xlu0 %v773, 96
      %v1159 = vpop.permute.xlu0 %1158
      %1160 = vrot.lane.b32.xlu0 %v774, 96
      %v1161 = vpop.permute.xlu0 %1160
      %1162 = vrot.lane.b32.xlu0 %v773, 32
      %v1163 = vpop.permute.xlu0 %1162
      %1164 = vrot.lane.b32.xlu0 %v774, 32
      %v1165 = vpop.permute.xlu0 %1164
      %v1167 = vsel %vm783, %v1159, 0
      %v1170 = vsel %vm783, %v1161, 0
      %v1173 = vsel %vm783, %v1163, 0
      %v1176 = vsel %vm783, %v1165, 0
      %1178 = vmatprep.subr.bf16.mxu0 0
      %1179 = vmatpush1.bf16.xpose.msra.mxu0 %v1173
      %1180 = vmatprep.subr.bf16.mxu0 0
      %1181 = vmatpush1.bf16.xpose.msra.mxu0 %v1176
      %1182 = vmatprep.subr.bf16.mxu0 0
      %1183 = vmatpush1.bf16.xpose.msra.mxu0 0
      %1184 = vmatprep.subr.bf16.mxu0 0
      %1185 = vmatpush1.bf16.xpose.msra.mxu0 0
      %1186 = vmatprep.subr.bf16.mxu0 0
      %1187 = vmatpush1.bf16.xpose.msra.mxu0 0
      %1188 = vmatprep.subr.bf16.mxu0 0
      %1189 = vmatpush1.bf16.xpose.msra.mxu0 0
      %1190 = vmatprep.subr.bf16.mxu0 0
      %1191 = vmatpush1.bf16.xpose.msra.mxu0 0
      %1192 = vmatprep.subr.bf16.mxu0 0
      %1193 = vmatpush1.bf16.xpose.msra.mxu0 0
      %1194 = vmatprep.subr.bf16.mxu0 0
      %1195 = vmatpush1.bf16.xpose.msra.mxu0 0
      %1196 = vmatprep.subr.bf16.mxu0 0
      %1197 = vmatpush1.bf16.xpose.msra.mxu0 0
      %1198 = vmatprep.subr.bf16.mxu0 0
      %1199 = vmatpush1.bf16.xpose.msra.mxu0 0
      %1200 = vmatprep.subr.bf16.mxu0 0
      %1201 = vmatpush1.bf16.xpose.msra.mxu0 0
      %1202 = vmatprep.subr.bf16.mxu0 0
      %1203 = vmatpush1.bf16.xpose.msra.mxu0 0
      %1204 = vmatprep.subr.bf16.mxu0 0
      %1205 = vmatpush1.bf16.xpose.msra.mxu0 0
      %1206 = vmatprep.subr.bf16.mxu0 0
      %1207 = vmatpush1.bf16.xpose.msra.mxu0 0
      %1208 = vmatprep.subr.bf16.mxu0 0
      %1209 = vmatpush1.bf16.xpose.msra.mxu0 0
      %1210 = vmatprep.mubr.bf16.mxu0 0
      %1211 = vmatmul.mubr.bf16.gmra.mrb[0].mxu0 %v1167
      %v1212 = vpop.f32.mrb[0].mxu0
      %v1213 = vadd.f32 0.0, %v1212
      %v1214 = vpop.f32.mrb[0].mxu0
      %v1215 = vpop.f32.mrb[0].mxu0
      %v1216 = vadd.f32 0.0, %v1215
      %v1217 = vpop.f32.mrb[0].mxu0
      %1218 = vmatprep.mubr.bf16.mxu0 0
      %1219 = vmatmul.mubr.bf16.gmra.mrb[0].mxu0 %v1170
      %v1220 = vpop.f32.mrb[0].mxu0
      %v1221 = vadd.f32 0.0, %v1220
      %v1222 = vpop.f32.mrb[0].mxu0
      %v1223 = vpop.f32.mrb[0].mxu0
      %v1224 = vadd.f32 0.0, %v1223
      %v1225 = vpop.f32.mrb[0].mxu0
      %1226 = vdwg.mxu0
      %v1227 = vmul.f32 %v1213, 0.25
      %v1228 = vmul.f32 %v1216, 0.25
      %v1229 = vmul.f32 %v1221, 0.25
      %v1230 = vmul.f32 %v1224, 0.25
      %v1231 = vsel %vm849, %v1227, -inf
      %1232 = vmax.xlane.f32.xlu0 %v1231
      %v1233 = vpop.xlane.xlu0 %1232
      %v1234 = vsel %vm849, %v1228, -inf
      %1235 = vmax.xlane.f32.xlu0 %v1234
      %v1236 = vpop.xlane.xlu0 %1235
      %v1237 = vsel %vm849, %v1229, -inf
      %1238 = vmax.xlane.f32.xlu0 %v1237
      %v1239 = vpop.xlane.xlu0 %1238
      %v1240 = vsel %vm849, %v1230, -inf
      %1241 = vmax.xlane.f32.xlu0 %v1240
      %v1242 = vpop.xlane.xlu0 %1241
      %v1243 = vsub.f32 %v1227, %v1233
      %v1244 = vsub.f32 %v1228, %v1236
      %v1245 = vsub.f32 %v1229, %v1239
      %v1246 = vsub.f32 %v1230, %v1242
      %v1247 = vmul.f32 %v1243, 1.442695
      %v1248 = vpow.pop %v1247
      %v1249 = vmul.f32 %v1244, 1.442695
      %v1250 = vpow.pop %v1249
      %v1251 = vmul.f32 %v1245, 1.442695
      %v1252 = vpow.pop %v1251
      %v1253 = vmul.f32 %v1246, 1.442695
      %v1254 = vpow.pop %v1253
      %v1255 = vsel %vm849, %v1248, 0.0
      %1256 = vadd.xlane.f32.xlu0 %v1255
      %v1257 = vpop.xlane.xlu0 %1256
      %v1258 = vsel %vm849, %v1250, 0.0
      %1259 = vadd.xlane.f32.xlu0 %v1258
      %v1260 = vpop.xlane.xlu0 %1259
      %v1261 = vsel %vm849, %v1252, 0.0
      %1262 = vadd.xlane.f32.xlu0 %v1261
      %v1263 = vpop.xlane.xlu0 %1262
      %v1264 = vsel %vm849, %v1254, 0.0
      %1265 = vadd.xlane.f32.xlu0 %v1264
      %v1266 = vpop.xlane.xlu0 %1265
      %v1267 = vrcp.pop %v1257
      %v1268 = vrcp.pop %v1260
      %v1269 = vrcp.pop %v1263
      %v1270 = vrcp.pop %v1266
      %v1271 = vmul.f32 %v1248, %v1267
      %v1272 = vmul.f32 %v1250, %v1268
      %v1273 = vmul.f32 %v1252, %v1269
      %v1274 = vmul.f32 %v1254, %v1270
      %v1275 = vpack.c.bf16 %v1272, %v1271
      %v1276 = vpack.c.bf16 %v1274, %v1273
      %1277 = vrot.lane.b32.xlu0 %v775, 96
      %v1278 = vpop.permute.xlu0 %1277
      %1279 = vrot.lane.b32.xlu0 %v776, 96
      %v1280 = vpop.permute.xlu0 %1279
      %v1284 = vsel %vm849, %v1275, 0
      %v1287 = vsel %vm849, %v1276, 0
      %1289 = vmatprep.subr.bf16.mxu0 0
      %1290 = vmatpush1.bf16.msra.mxu0 %v1278
      %1291 = vmatprep.subr.bf16.mxu0 0
      %1292 = vmatpush1.bf16.msra.mxu0 %v1280
      %1293 = vmatprep.subr.bf16.mxu0 0
      %1294 = vmatpush1.bf16.msra.mxu0 0
      %1295 = vmatprep.subr.bf16.mxu0 0
      %1296 = vmatpush1.bf16.msra.mxu0 0
      %1297 = vmatprep.subr.bf16.mxu0 0
      %1298 = vmatpush1.bf16.msra.mxu0 0
      %1299 = vmatprep.subr.bf16.mxu0 0
      %1300 = vmatpush1.bf16.msra.mxu0 0
      %1301 = vmatprep.subr.bf16.mxu0 0
      %1302 = vmatpush1.bf16.msra.mxu0 0
      %1303 = vmatprep.subr.bf16.mxu0 0
      %1304 = vmatpush1.bf16.msra.mxu0 0
      %1305 = vmatprep.subr.bf16.mxu0 0
      %1306 = vmatpush1.bf16.msra.mxu0 0
      %1307 = vmatprep.subr.bf16.mxu0 0
      %1308 = vmatpush1.bf16.msra.mxu0 0
      %1309 = vmatprep.subr.bf16.mxu0 0
      %1310 = vmatpush1.bf16.msra.mxu0 0
      %1311 = vmatprep.subr.bf16.mxu0 0
      %1312 = vmatpush1.bf16.msra.mxu0 0
      %1313 = vmatprep.subr.bf16.mxu0 0
      %1314 = vmatpush1.bf16.msra.mxu0 0
      %1315 = vmatprep.subr.bf16.mxu0 0
      %1316 = vmatpush1.bf16.msra.mxu0 0
      %1317 = vmatprep.subr.bf16.mxu0 0
      %1318 = vmatpush1.bf16.msra.mxu0 0
      %1319 = vmatprep.subr.bf16.mxu0 0
      %1320 = vmatpush1.bf16.msra.mxu0 0
      %1321 = vmatprep.mubr.bf16.mxu0 0
      %1322 = vmatmul.mubr.bf16.gmra.mrb[0].mxu0 %v1284
      %v1323 = vpop.f32.mrb[0].mxu0
      %v1324 = vadd.f32 0.0, %v1323
      %v1325 = vpop.f32.mrb[0].mxu0
      %v1326 = vpop.f32.mrb[0].mxu0
      %v1327 = vadd.f32 0.0, %v1326
      %v1328 = vpop.f32.mrb[0].mxu0
      %1329 = vmatprep.mubr.bf16.mxu0 0
      %1330 = vmatmul.mubr.bf16.gmra.mrb[0].mxu0 %v1287
      %v1331 = vpop.f32.mrb[0].mxu0
      %v1332 = vadd.f32 0.0, %v1331
      %v1333 = vpop.f32.mrb[0].mxu0
      %v1334 = vpop.f32.mrb[0].mxu0
      %v1335 = vadd.f32 0.0, %v1334
      %v1336 = vpop.f32.mrb[0].mxu0
      %1337 = vdwg.mxu0
      %1342 = vrot.lane.b32.xlu0 %v1324, 32
      %v1343 = vpop.permute.xlu0 %1342
      %1344 = vrot.lane.b32.xlu0 %v1327, 32
      %v1345 = vpop.permute.xlu0 %1344
      %1346 = vrot.lane.b32.xlu0 %v1332, 32
      %v1347 = vpop.permute.xlu0 %1346
      %1348 = vrot.lane.b32.xlu0 %v1335, 32
      %v1349 = vpop.permute.xlu0 %1348
      %vm1354 = vcmask 392448
      %1355 = vst.msk [vmem:[#allocation2] sm:$0xff] %vm1354, %v1343
      %1356 = vst.msk [vmem:[#allocation2 + $0x8] sm:$0xff] %vm1354, %v1345
      %1357 = vst.msk [vmem:[#allocation2 + $0x10] sm:$0xff] %vm1354, %v1347
      %1358 = vst.msk [vmem:[#allocation2 + $0x18] sm:$0xff] %vm1354, %v1349
      %1359 = vrot.lane.b32.xlu0 %v773, 80
      %v1360 = vpop.permute.xlu0 %1359
      %1361 = vrot.lane.b32.xlu0 %v774, 80
      %v1362 = vpop.permute.xlu0 %1361
      %1363 = vrot.lane.b32.xlu0 %v773, 16
      %v1364 = vpop.permute.xlu0 %1363
      %1365 = vrot.lane.b32.xlu0 %v774, 16
      %v1366 = vpop.permute.xlu0 %1365
      %v1368 = vsel %vm783, %v1360, 0
      %v1371 = vsel %vm783, %v1362, 0
      %v1374 = vsel %vm783, %v1364, 0
      %v1377 = vsel %vm783, %v1366, 0
      %1379 = vmatprep.subr.bf16.mxu0 0
      %1380 = vmatpush1.bf16.xpose.msra.mxu0 %v1374
      %1381 = vmatprep.subr.bf16.mxu0 0
      %1382 = vmatpush1.bf16.xpose.msra.mxu0 %v1377
      %1383 = vmatprep.subr.bf16.mxu0 0
      %1384 = vmatpush1.bf16.xpose.msra.mxu0 0
      %1385 = vmatprep.subr.bf16.mxu0 0
      %1386 = vmatpush1.bf16.xpose.msra.mxu0 0
      %1387 = vmatprep.subr.bf16.mxu0 0
      %1388 = vmatpush1.bf16.xpose.msra.mxu0 0
      %1389 = vmatprep.subr.bf16.mxu0 0
      %1390 = vmatpush1.bf16.xpose.msra.mxu0 0
      %1391 = vmatprep.subr.bf16.mxu0 0
      %1392 = vmatpush1.bf16.xpose.msra.mxu0 0
      %1393 = vmatprep.subr.bf16.mxu0 0
      %1394 = vmatpush1.bf16.xpose.msra.mxu0 0
      %1395 = vmatprep.subr.bf16.mxu0 0
      %1396 = vmatpush1.bf16.xpose.msra.mxu0 0
      %1397 = vmatprep.subr.bf16.mxu0 0
      %1398 = vmatpush1.bf16.xpose.msra.mxu0 0
      %1399 = vmatprep.subr.bf16.mxu0 0
      %1400 = vmatpush1.bf16.xpose.msra.mxu0 0
      %1401 = vmatprep.subr.bf16.mxu0 0
      %1402 = vmatpush1.bf16.xpose.msra.mxu0 0
      %1403 = vmatprep.subr.bf16.mxu0 0
      %1404 = vmatpush1.bf16.xpose.msra.mxu0 0
      %1405 = vmatprep.subr.bf16.mxu0 0
      %1406 = vmatpush1.bf16.xpose.msra.mxu0 0
      %1407 = vmatprep.subr.bf16.mxu0 0
      %1408 = vmatpush1.bf16.xpose.msra.mxu0 0
      %1409 = vmatprep.subr.bf16.mxu0 0
      %1410 = vmatpush1.bf16.xpose.msra.mxu0 0
      %1411 = vmatprep.mubr.bf16.mxu0 0
      %1412 = vmatmul.mubr.bf16.gmra.mrb[0].mxu0 %v1368
      %v1413 = vpop.f32.mrb[0].mxu0
      %v1414 = vadd.f32 0.0, %v1413
      %v1415 = vpop.f32.mrb[0].mxu0
      %v1416 = vpop.f32.mrb[0].mxu0
      %v1417 = vadd.f32 0.0, %v1416
      %v1418 = vpop.f32.mrb[0].mxu0
      %1419 = vmatprep.mubr.bf16.mxu0 0
      %1420 = vmatmul.mubr.bf16.gmra.mrb[0].mxu0 %v1371
      %v1421 = vpop.f32.mrb[0].mxu0
      %v1422 = vadd.f32 0.0, %v1421
      %v1423 = vpop.f32.mrb[0].mxu0
      %v1424 = vpop.f32.mrb[0].mxu0
      %v1425 = vadd.f32 0.0, %v1424
      %v1426 = vpop.f32.mrb[0].mxu0
      %1427 = vdwg.mxu0
      %v1428 = vmul.f32 %v1414, 0.25
      %v1429 = vmul.f32 %v1417, 0.25
      %v1430 = vmul.f32 %v1422, 0.25
      %v1431 = vmul.f32 %v1425, 0.25
      %v1432 = vsel %vm849, %v1428, -inf
      %1433 = vmax.xlane.f32.xlu0 %v1432
      %v1434 = vpop.xlane.xlu0 %1433
      %v1435 = vsel %vm849, %v1429, -inf
      %1436 = vmax.xlane.f32.xlu0 %v1435
      %v1437 = vpop.xlane.xlu0 %1436
      %v1438 = vsel %vm849, %v1430, -inf
      %1439 = vmax.xlane.f32.xlu0 %v1438
      %v1440 = vpop.xlane.xlu0 %1439
      %v1441 = vsel %vm849, %v1431, -inf
      %1442 = vmax.xlane.f32.xlu0 %v1441
      %v1443 = vpop.xlane.xlu0 %1442
      %v1444 = vsub.f32 %v1428, %v1434
      %v1445 = vsub.f32 %v1429, %v1437
      %v1446 = vsub.f32 %v1430, %v1440
      %v1447 = vsub.f32 %v1431, %v1443
      %v1448 = vmul.f32 %v1444, 1.442695
      %v1449 = vpow.pop %v1448
      %v1450 = vmul.f32 %v1445, 1.442695
      %v1451 = vpow.pop %v1450
      %v1452 = vmul.f32 %v1446, 1.442695
      %v1453 = vpow.pop %v1452
      %v1454 = vmul.f32 %v1447, 1.442695
      %v1455 = vpow.pop %v1454
      %v1456 = vsel %vm849, %v1449, 0.0
      %1457 = vadd.xlane.f32.xlu0 %v1456
      %v1458 = vpop.xlane.xlu0 %1457
      %v1459 = vsel %vm849, %v1451, 0.0
      %1460 = vadd.xlane.f32.xlu0 %v1459
      %v1461 = vpop.xlane.xlu0 %1460
      %v1462 = vsel %vm849, %v1453, 0.0
      %1463 = vadd.xlane.f32.xlu0 %v1462
      %v1464 = vpop.xlane.xlu0 %1463
      %v1465 = vsel %vm849, %v1455, 0.0
      %1466 = vadd.xlane.f32.xlu0 %v1465
      %v1467 = vpop.xlane.xlu0 %1466
      %v1468 = vrcp.pop %v1458
      %v1469 = vrcp.pop %v1461
      %v1470 = vrcp.pop %v1464
      %v1471 = vrcp.pop %v1467
      %v1472 = vmul.f32 %v1449, %v1468
      %v1473 = vmul.f32 %v1451, %v1469
      %v1474 = vmul.f32 %v1453, %v1470
      %v1475 = vmul.f32 %v1455, %v1471
      %v1476 = vpack.c.bf16 %v1473, %v1472
      %v1477 = vpack.c.bf16 %v1475, %v1474
      %1478 = vrot.lane.b32.xlu0 %v775, 80
      %v1479 = vpop.permute.xlu0 %1478
      %1480 = vrot.lane.b32.xlu0 %v776, 80
      %v1481 = vpop.permute.xlu0 %1480
      %v1485 = vsel %vm849, %v1476, 0
      %v1488 = vsel %vm849, %v1477, 0
      %1490 = vmatprep.subr.bf16.mxu0 0
      %1491 = vmatpush1.bf16.msra.mxu0 %v1479
      %1492 = vmatprep.subr.bf16.mxu0 0
      %1493 = vmatpush1.bf16.msra.mxu0 %v1481
      %1494 = vmatprep.subr.bf16.mxu0 0
      %1495 = vmatpush1.bf16.msra.mxu0 0
      %1496 = vmatprep.subr.bf16.mxu0 0
      %1497 = vmatpush1.bf16.msra.mxu0 0
      %1498 = vmatprep.subr.bf16.mxu0 0
      %1499 = vmatpush1.bf16.msra.mxu0 0
      %1500 = vmatprep.subr.bf16.mxu0 0
      %1501 = vmatpush1.bf16.msra.mxu0 0
      %1502 = vmatprep.subr.bf16.mxu0 0
      %1503 = vmatpush1.bf16.msra.mxu0 0
      %1504 = vmatprep.subr.bf16.mxu0 0
      %1505 = vmatpush1.bf16.msra.mxu0 0
      %1506 = vmatprep.subr.bf16.mxu0 0
      %1507 = vmatpush1.bf16.msra.mxu0 0
      %1508 = vmatprep.subr.bf16.mxu0 0
      %1509 = vmatpush1.bf16.msra.mxu0 0
      %1510 = vmatprep.subr.bf16.mxu0 0
      %1511 = vmatpush1.bf16.msra.mxu0 0
      %1512 = vmatprep.subr.bf16.mxu0 0
      %1513 = vmatpush1.bf16.msra.mxu0 0
      %1514 = vmatprep.subr.bf16.mxu0 0
      %1515 = vmatpush1.bf16.msra.mxu0 0
      %1516 = vmatprep.subr.bf16.mxu0 0
      %1517 = vmatpush1.bf16.msra.mxu0 0
      %1518 = vmatprep.subr.bf16.mxu0 0
      %1519 = vmatpush1.bf16.msra.mxu0 0
      %1520 = vmatprep.subr.bf16.mxu0 0
      %1521 = vmatpush1.bf16.msra.mxu0 0
      %1522 = vmatprep.mubr.bf16.mxu0 0
      %1523 = vmatmul.mubr.bf16.gmra.mrb[0].mxu0 %v1485
      %v1524 = vpop.f32.mrb[0].mxu0
      %v1525 = vadd.f32 0.0, %v1524
      %v1526 = vpop.f32.mrb[0].mxu0
      %v1527 = vpop.f32.mrb[0].mxu0
      %v1528 = vadd.f32 0.0, %v1527
      %v1529 = vpop.f32.mrb[0].mxu0
      %1530 = vmatprep.mubr.bf16.mxu0 0
      %1531 = vmatmul.mubr.bf16.gmra.mrb[0].mxu0 %v1488
      %v1532 = vpop.f32.mrb[0].mxu0
      %v1533 = vadd.f32 0.0, %v1532
      %v1534 = vpop.f32.mrb[0].mxu0
      %v1535 = vpop.f32.mrb[0].mxu0
      %v1536 = vadd.f32 0.0, %v1535
      %v1537 = vpop.f32.mrb[0].mxu0
      %1538 = vdwg.mxu0
      %1543 = vrot.lane.b32.xlu0 %v1525, 48
      %v1544 = vpop.permute.xlu0 %1543
      %1545 = vrot.lane.b32.xlu0 %v1528, 48
      %v1546 = vpop.permute.xlu0 %1545
      %1547 = vrot.lane.b32.xlu0 %v1533, 48
      %v1548 = vpop.permute.xlu0 %1547
      %1549 = vrot.lane.b32.xlu0 %v1536, 48
      %v1550 = vpop.permute.xlu0 %1549
      %vm1555 = vcmask 523648
      %1556 = vst.msk [vmem:[#allocation2] sm:$0xff] %vm1555, %v1544
      %1557 = vst.msk [vmem:[#allocation2 + $0x8] sm:$0xff] %vm1555, %v1546
      %1558 = vst.msk [vmem:[#allocation2 + $0x10] sm:$0xff] %vm1555, %v1548
      %1559 = vst.msk [vmem:[#allocation2 + $0x18] sm:$0xff] %vm1555, %v1550
      %v1560 = vld [vmem:[#allocation2] sm:$0xff]
      %v1561 = vld [vmem:[#allocation2 + $0x8] sm:$0xff]
      %v1562 = vld [vmem:[#allocation2 + $0x10] sm:$0xff]
      %v1563 = vld [vmem:[#allocation2 + $0x18] sm:$0xff]
      %v1564 = vpack.c.bf16 %v1561, %v1560
      %v1565 = vpack.c.bf16 %v1563, %v1562
      %v1566 = vld [vmem:[%s6] sm:$0xf]
      %v1567 = vld [vmem:[%s6 + $0x4] sm:$0xf]
      %v1568 = vld [vmem:[%s6 + $0x8] sm:$0xf]
      %v1569 = vld [vmem:[%s6 + $0xc] sm:$0xf]
      %v1570 = vld [vmem:[%s6 + $0x10] sm:$0xf]
      %v1571 = vld [vmem:[%s6 + $0x14] sm:$0xf]
      %v1572 = vld [vmem:[%s6 + $0x18] sm:$0xf]
      %v1573 = vld [vmem:[%s6 + $0x1c] sm:$0xf]
      %v1574 = vld [vmem:[%s7] sm:$0x1]
      %v1576 = vlaneseq
      %v1577 = vshrl.u32 %v1576, 7
      %v1578 = vsub.s32 0, %v1577
      %v1579 = vrot.slane %v1574, %v1578
      %v1589 = vunpack.c.l.b16 %v1566
      %v1590 = vunpack.c.l.b16 %v1567
      %v1591 = vunpack.c.l.b16 %v1568
      %v1592 = vunpack.c.l.b16 %v1569
      %v1593 = vunpack.c.l.b16 %v1570
      %v1594 = vunpack.c.l.b16 %v1571
      %v1595 = vunpack.c.l.b16 %v1572
      %v1596 = vunpack.c.l.b16 %v1573
      %v1597 = vpack.c.b16 %v1590, %v1589
      %v1598 = vpack.c.b16 %v1592, %v1591
      %v1599 = vpack.c.b16 %v1594, %v1593
      %v1600 = vpack.c.b16 %v1596, %v1595
      %v1606 = vsel %vm621, %v1564, 0
      %v1609 = vsel %vm621, %v1565, 0
      %1611 = vmatprep.subr.bf16.mxu0 0
      %1612 = vmatpush1.bf16.msra.mxu0 %v1597
      %1613 = vmatprep.subr.bf16.mxu0 0
      %1614 = vmatpush1.bf16.msra.mxu0 %v1598
      %1615 = vmatprep.subr.bf16.mxu0 0
      %1616 = vmatpush1.bf16.msra.mxu0 %v1599
      %1617 = vmatprep.subr.bf16.mxu0 0
      %1618 = vmatpush1.bf16.msra.mxu0 %v1600
      %1619 = vmatprep.subr.bf16.mxu0 0
      %1620 = vmatpush1.bf16.msra.mxu0 0
      %1621 = vmatprep.subr.bf16.mxu0 0
      %1622 = vmatpush1.bf16.msra.mxu0 0
      %1623 = vmatprep.subr.bf16.mxu0 0
      %1624 = vmatpush1.bf16.msra.mxu0 0
      %1625 = vmatprep.subr.bf16.mxu0 0
      %1626 = vmatpush1.bf16.msra.mxu0 0
      %1627 = vmatprep.subr.bf16.mxu0 0
      %1628 = vmatpush1.bf16.msra.mxu0 0
      %1629 = vmatprep.subr.bf16.mxu0 0
      %1630 = vmatpush1.bf16.msra.mxu0 0
      %1631 = vmatprep.subr.bf16.mxu0 0
      %1632 = vmatpush1.bf16.msra.mxu0 0
      %1633 = vmatprep.subr.bf16.mxu0 0
      %1634 = vmatpush1.bf16.msra.mxu0 0
      %1635 = vmatprep.subr.bf16.mxu0 0
      %1636 = vmatpush1.bf16.msra.mxu0 0
      %1637 = vmatprep.subr.bf16.mxu0 0
      %1638 = vmatpush1.bf16.msra.mxu0 0
      %1639 = vmatprep.subr.bf16.mxu0 0
      %1640 = vmatpush1.bf16.msra.mxu0 0
      %1641 = vmatprep.subr.bf16.mxu0 0
      %1642 = vmatpush1.bf16.msra.mxu0 0
      %1643 = vmatprep.mubr.bf16.mxu0 0
      %1644 = vmatmul.mubr.bf16.gmra.mrb[0].mxu0 %v1606
      %v1645 = vpop.f32.mrb[0].mxu0
      %v1646 = vadd.f32 %v1579, %v1645
      %v1647 = vpop.f32.mrb[0].mxu0
      %v1648 = vpop.f32.mrb[0].mxu0
      %v1649 = vadd.f32 %v1579, %v1648
      %v1650 = vpop.f32.mrb[0].mxu0
      %1651 = vmatprep.mubr.bf16.mxu0 0
      %1652 = vmatmul.mubr.bf16.gmra.mrb[0].mxu0 %v1609
      %v1653 = vpop.f32.mrb[0].mxu0
      %v1654 = vadd.f32 %v1579, %v1653
      %v1655 = vpop.f32.mrb[0].mxu0
      %v1656 = vpop.f32.mrb[0].mxu0
      %v1657 = vadd.f32 %v1579, %v1656
      %v1658 = vpop.f32.mrb[0].mxu0
      %1659 = vdwg.mxu0
      %v1660 = vadd.f32 %v568, %v1646
      %v1661 = vadd.f32 %v569, %v1649
      %v1662 = vadd.f32 %v570, %v1654
      %v1663 = vadd.f32 %v571, %v1657
      %v1664 = vld [vmem:[%s8] sm:$0x1]
      %v1665 = vld [vmem:[%s9] sm:$0x1]
      %v1666 = vsel %vm621, %v1660, 0.0
      %1667 = vadd.xlane.f32.xlu0 %v1666
      %v1668 = vpop.xlane.xlu0 %1667
      %v1669 = vsel %vm621, %v1661, 0.0
      %1670 = vadd.xlane.f32.xlu0 %v1669
      %v1671 = vpop.xlane.xlu0 %1670
      %v1672 = vsel %vm621, %v1662, 0.0
      %1673 = vadd.xlane.f32.xlu0 %v1672
      %v1674 = vpop.xlane.xlu0 %1673
      %v1675 = vsel %vm621, %v1663, 0.0
      %1676 = vadd.xlane.f32.xlu0 %v1675
      %v1677 = vpop.xlane.xlu0 %1676
      %v1678 = vrcp.pop 64.0
      %v1679 = vmul.f32 %v1668, %v1678
      %v1680 = vmul.f32 %v1671, %v1678
      %v1681 = vmul.f32 %v1674, %v1678
      %v1682 = vmul.f32 %v1677, %v1678
      %v1683 = vsub.f32 %v1660, %v1679
      %v1684 = vsub.f32 %v1661, %v1680
      %v1685 = vsub.f32 %v1662, %v1681
      %v1686 = vsub.f32 %v1663, %v1682
      %v1687 = vmul.f32 %v1683, %v1683
      %v1688 = vmul.f32 %v1684, %v1684
      %v1689 = vmul.f32 %v1685, %v1685
      %v1690 = vmul.f32 %v1686, %v1686
      %v1691 = vsel %vm621, %v1687, 0.0
      %1692 = vadd.xlane.f32.xlu0 %v1691
      %v1693 = vpop.xlane.xlu0 %1692
      %v1694 = vsel %vm621, %v1688, 0.0
      %1695 = vadd.xlane.f32.xlu0 %v1694
      %v1696 = vpop.xlane.xlu0 %1695
      %v1697 = vsel %vm621, %v1689, 0.0
      %1698 = vadd.xlane.f32.xlu0 %v1697
      %v1699 = vpop.xlane.xlu0 %1698
      %v1700 = vsel %vm621, %v1690, 0.0
      %1701 = vadd.xlane.f32.xlu0 %v1700
      %v1702 = vpop.xlane.xlu0 %1701
      %v1703 = vmul.f32 %v1693, %v1678
      %v1704 = vmul.f32 %v1696, %v1678
      %v1705 = vmul.f32 %v1699, %v1678
      %v1706 = vmul.f32 %v1702, %v1678
      %v1707 = vadd.f32 %v1703, 1e-05
      %v1708 = vadd.f32 %v1704, 1e-05
      %v1709 = vadd.f32 %v1705, 1e-05
      %v1710 = vadd.f32 %v1706, 1e-05
      %v1711 = vrsqrt.pop %v1707
      %v1712 = vrsqrt.pop %v1708
      %v1713 = vrsqrt.pop %v1709
      %v1714 = vrsqrt.pop %v1710
      %v1715 = vmul.f32 %v1683, %v1711
      %v1716 = vmul.f32 %v1684, %v1712
      %v1717 = vmul.f32 %v1685, %v1713
      %v1718 = vmul.f32 %v1686, %v1714
      %v1720 = vlaneseq
      %v1721 = vshrl.u32 %v1720, 7
      %v1722 = vsub.s32 0, %v1721
      %v1723 = vrot.slane %v1664, %v1722
      %v1725 = vmul.f32 %v1715, %v1723
      %v1726 = vmul.f32 %v1716, %v1723
      %v1727 = vmul.f32 %v1717, %v1723
      %v1728 = vmul.f32 %v1718, %v1723
      %v1730 = vlaneseq
      %v1731 = vshrl.u32 %v1730, 7
      %v1732 = vsub.s32 0, %v1731
      %v1733 = vrot.slane %v1665, %v1732
      %v1735 = vadd.f32 %v1725, %v1733
      %v1736 = vadd.f32 %v1726, %v1733
      %v1737 = vadd.f32 %v1727, %v1733
      %v1738 = vadd.f32 %v1728, %v1733
      %1739 = vst.msk [vmem:[%s556] sm:$0xff] %vm621, %v1735
      %1740 = vst.msk [vmem:[%s556 + $0x8] sm:$0xff] %vm621, %v1736
      %1741 = vst.msk [vmem:[%s556 + $0x10] sm:$0xff] %vm621, %v1737
      %1742 = vst.msk [vmem:[%s556 + $0x18] sm:$0xff] %vm621, %v1738
      %v1743 = vadd.f32 %v1735, %v572
      %v1744 = vadd.f32 %v1736, %v573
      %v1745 = vadd.f32 %v1737, %v574
      %v1746 = vadd.f32 %v1738, %v575
      %v1747 = vpack.c.bf16 %v1744, %v1743
      %v1748 = vpack.c.bf16 %v1746, %v1745
      %v1749 = vld [vmem:[%s10] sm:$0xf]
      %v1750 = vld [vmem:[%s10 + $0x4] sm:$0xf]
      %v1751 = vld [vmem:[%s10 + $0x8] sm:$0xf]
      %v1752 = vld [vmem:[%s10 + $0xc] sm:$0xf]
      %v1753 = vld [vmem:[%s10 + $0x10] sm:$0xf]
      %v1754 = vld [vmem:[%s10 + $0x14] sm:$0xf]
      %v1755 = vld [vmem:[%s10 + $0x18] sm:$0xf]
      %v1756 = vld [vmem:[%s10 + $0x1c] sm:$0xf]
      %v1757 = vld [vmem:[%s11] sm:$0x1]
      %v1759 = vlaneseq
      %v1760 = vshrl.u32 %v1759, 7
      %v1761 = vsub.s32 0, %v1760
      %v1762 = vrot.slane %v1757, %v1761
      %v1772 = vunpack.c.l.b16 %v1749
      %v1773 = vunpack.c.l.b16 %v1750
      %v1774 = vunpack.c.l.b16 %v1751
      %v1775 = vunpack.c.l.b16 %v1752
      %v1776 = vunpack.c.l.b16 %v1753
      %v1777 = vunpack.c.l.b16 %v1754
      %v1778 = vunpack.c.l.b16 %v1755
      %v1779 = vunpack.c.l.b16 %v1756
      %v1780 = vpack.c.b16 %v1773, %v1772
      %v1781 = vpack.c.b16 %v1775, %v1774
      %v1782 = vpack.c.b16 %v1777, %v1776
      %v1783 = vpack.c.b16 %v1779, %v1778
      %v1789 = vsel %vm621, %v1747, 0
      %v1792 = vsel %vm621, %v1748, 0
      %1794 = vmatprep.subr.bf16.mxu0 0
      %1795 = vmatpush1.bf16.msra.mxu0 %v1780
      %1796 = vmatprep.subr.bf16.mxu0 0
      %1797 = vmatpush1.bf16.msra.mxu0 %v1781
      %1798 = vmatprep.subr.bf16.mxu0 0
      %1799 = vmatpush1.bf16.msra.mxu0 %v1782
      %1800 = vmatprep.subr.bf16.mxu0 0
      %1801 = vmatpush1.bf16.msra.mxu0 %v1783
      %1802 = vmatprep.subr.bf16.mxu0 0
      %1803 = vmatpush1.bf16.msra.mxu0 0
      %1804 = vmatprep.subr.bf16.mxu0 0
      %1805 = vmatpush1.bf16.msra.mxu0 0
      %1806 = vmatprep.subr.bf16.mxu0 0
      %1807 = vmatpush1.bf16.msra.mxu0 0
      %1808 = vmatprep.subr.bf16.mxu0 0
      %1809 = vmatpush1.bf16.msra.mxu0 0
      %1810 = vmatprep.subr.bf16.mxu0 0
      %1811 = vmatpush1.bf16.msra.mxu0 0
      %1812 = vmatprep.subr.bf16.mxu0 0
      %1813 = vmatpush1.bf16.msra.mxu0 0
      %1814 = vmatprep.subr.bf16.mxu0 0
      %1815 = vmatpush1.bf16.msra.mxu0 0
      %1816 = vmatprep.subr.bf16.mxu0 0
      %1817 = vmatpush1.bf16.msra.mxu0 0
      %1818 = vmatprep.subr.bf16.mxu0 0
      %1819 = vmatpush1.bf16.msra.mxu0 0
      %1820 = vmatprep.subr.bf16.mxu0 0
      %1821 = vmatpush1.bf16.msra.mxu0 0
      %1822 = vmatprep.subr.bf16.mxu0 0
      %1823 = vmatpush1.bf16.msra.mxu0 0
      %1824 = vmatprep.subr.bf16.mxu0 0
      %1825 = vmatpush1.bf16.msra.mxu0 0
      %1826 = vmatprep.mubr.bf16.mxu0 0
      %1827 = vmatmul.mubr.bf16.gmra.mrb[0].mxu0 %v1789
      %v1828 = vpop.f32.mrb[0].mxu0
      %v1829 = vadd.f32 %v1762, %v1828
      %v1830 = vpop.f32.mrb[0].mxu0
      %v1831 = vpop.f32.mrb[0].mxu0
      %v1832 = vadd.f32 %v1762, %v1831
      %v1833 = vpop.f32.mrb[0].mxu0
      %1834 = vmatprep.mubr.bf16.mxu0 0
      %1835 = vmatmul.mubr.bf16.gmra.mrb[0].mxu0 %v1792
      %v1836 = vpop.f32.mrb[0].mxu0
      %v1837 = vadd.f32 %v1762, %v1836
      %v1838 = vpop.f32.mrb[0].mxu0
      %v1839 = vpop.f32.mrb[0].mxu0
      %v1840 = vadd.f32 %v1762, %v1839
      %v1841 = vpop.f32.mrb[0].mxu0
      %1842 = vdwg.mxu0
      %1843 = vst.msk [vmem:[%s561] sm:$0xff] %vm849, %v1829
      %1844 = vst.msk [vmem:[%s561 + $0x8] sm:$0xff] %vm849, %v1832
      %1845 = vst.msk [vmem:[%s561 + $0x10] sm:$0xff] %vm849, %v1837
      %1846 = vst.msk [vmem:[%s561 + $0x18] sm:$0xff] %vm849, %v1840
      %v1847 = vld [vmem:[%s12] sm:$0xf]
      %v1848 = vld [vmem:[%s12 + $0x4] sm:$0xf]
      %v1849 = vld [vmem:[%s12 + $0x8] sm:$0xf]
      %v1850 = vld [vmem:[%s12 + $0xc] sm:$0xf]
      %v1851 = vld [vmem:[%s12 + $0x10] sm:$0xf]
      %v1852 = vld [vmem:[%s12 + $0x14] sm:$0xf]
      %v1853 = vld [vmem:[%s12 + $0x18] sm:$0xf]
      %v1854 = vld [vmem:[%s12 + $0x1c] sm:$0xf]
      %v1855 = vld [vmem:[%s13] sm:$0x1]
      %v1857 = vlaneseq
      %v1858 = vshrl.u32 %v1857, 7
      %v1859 = vsub.s32 0, %v1858
      %v1860 = vrot.slane %v1855, %v1859
      %v1870 = vunpack.c.l.b16 %v1847
      %v1871 = vunpack.c.l.b16 %v1848
      %v1872 = vunpack.c.l.b16 %v1849
      %v1873 = vunpack.c.l.b16 %v1850
      %v1874 = vunpack.c.l.b16 %v1851
      %v1875 = vunpack.c.l.b16 %v1852
      %v1876 = vunpack.c.l.b16 %v1853
      %v1877 = vunpack.c.l.b16 %v1854
      %v1878 = vpack.c.b16 %v1871, %v1870
      %v1879 = vpack.c.b16 %v1873, %v1872
      %v1880 = vpack.c.b16 %v1875, %v1874
      %v1881 = vpack.c.b16 %v1877, %v1876
      %1886 = vmatprep.subr.bf16.mxu0 0
      %1887 = vmatpush1.bf16.msra.mxu0 %v1878
      %1888 = vmatprep.subr.bf16.mxu0 0
      %1889 = vmatpush1.bf16.msra.mxu0 %v1879
      %1890 = vmatprep.subr.bf16.mxu0 0
      %1891 = vmatpush1.bf16.msra.mxu0 %v1880
      %1892 = vmatprep.subr.bf16.mxu0 0
      %1893 = vmatpush1.bf16.msra.mxu0 %v1881
      %1894 = vmatprep.subr.bf16.mxu0 0
      %1895 = vmatpush1.bf16.msra.mxu0 0
      %1896 = vmatprep.subr.bf16.mxu0 0
      %1897 = vmatpush1.bf16.msra.mxu0 0
      %1898 = vmatprep.subr.bf16.mxu0 0
      %1899 = vmatpush1.bf16.msra.mxu0 0
      %1900 = vmatprep.subr.bf16.mxu0 0
      %1901 = vmatpush1.bf16.msra.mxu0 0
      %1902 = vmatprep.subr.bf16.mxu0 0
      %1903 = vmatpush1.bf16.msra.mxu0 0
      %1904 = vmatprep.subr.bf16.mxu0 0
      %1905 = vmatpush1.bf16.msra.mxu0 0
      %1906 = vmatprep.subr.bf16.mxu0 0
      %1907 = vmatpush1.bf16.msra.mxu0 0
      %1908 = vmatprep.subr.bf16.mxu0 0
      %1909 = vmatpush1.bf16.msra.mxu0 0
      %1910 = vmatprep.subr.bf16.mxu0 0
      %1911 = vmatpush1.bf16.msra.mxu0 0
      %1912 = vmatprep.subr.bf16.mxu0 0
      %1913 = vmatpush1.bf16.msra.mxu0 0
      %1914 = vmatprep.subr.bf16.mxu0 0
      %1915 = vmatpush1.bf16.msra.mxu0 0
      %1916 = vmatprep.subr.bf16.mxu0 0
      %1917 = vmatpush1.bf16.msra.mxu0 0
      %1918 = vmatprep.mubr.bf16.mxu0 0
      %1919 = vmatmul.mubr.bf16.gmra.mrb[0].mxu0 %v1789
      %v1920 = vpop.f32.mrb[0].mxu0
      %v1921 = vadd.f32 %v1860, %v1920
      %v1922 = vpop.f32.mrb[0].mxu0
      %v1923 = vpop.f32.mrb[0].mxu0
      %v1924 = vadd.f32 %v1860, %v1923
      %v1925 = vpop.f32.mrb[0].mxu0
      %1926 = vmatprep.mubr.bf16.mxu0 0
      %1927 = vmatmul.mubr.bf16.gmra.mrb[0].mxu0 %v1792
      %v1928 = vpop.f32.mrb[0].mxu0
      %v1929 = vadd.f32 %v1860, %v1928
      %v1930 = vpop.f32.mrb[0].mxu0
      %v1931 = vpop.f32.mrb[0].mxu0
      %v1932 = vadd.f32 %v1860, %v1931
      %v1933 = vpop.f32.mrb[0].mxu0
      %1934 = vdwg.mxu0
      %1935 = vst.msk [vmem:[%s566] sm:$0xff] %vm783, %v1921
      %1936 = vst.msk [vmem:[%s566 + $0x8] sm:$0xff] %vm783, %v1924
      %1937 = vst.msk [vmem:[%s566 + $0x10] sm:$0xff] %vm783, %v1929
      %1938 = vst.msk [vmem:[%s566 + $0x18] sm:$0xff] %vm783, %v1932
      %p1939 = scmp.lt.s32.totalorder %s28, 1
      %s1940 = scalar_select %p1939, %s28, 1
      %s1941 = smul.addr %s1940, 4
      %s1942 = smul.addr %s1941, 8
      %s1943 = scalar_lea.vmem %s14, %s1942
      %p1944 = scmp.lt.s32.totalorder %s28, 1
      %s1945 = scalar_select %p1944, %s28, 1
      %s1946 = smul.addr %s1945, 4
      %s1947 = smul.addr %s1946, 8
      %s1948 = scalar_lea.vmem %s15, %s1947
      %p1949 = scmp.lt.s32.totalorder %s28, 1
      %s1950 = scalar_select %p1949, %s28, 1
      %s1951 = smul.addr %s1950, 4
      %s1952 = smul.addr %s1951, 8
      %s1953 = scalar_lea.vmem %s16, %s1952
      // Predicated region
      $region77: #{deformable_decoder_forward.6} parent=75 // pred_check
        %p1954 = pneg %p350
      $region78: #{deformable_decoder_forward.6} parent=75 // pred_check_branch
        %1956 = sbr.rel (%p1954) target = $region80
      $region79: #{deformable_decoder_forward.6} parent=75 // pred_region
        _
      $region80: #{deformable_decoder_forward.6} parent=75 // pred_fallthru
        _
      // Predicated region
      $region81: #{deformable_decoder_forward.6} parent=75 // pred_check
        %p1957 = pneg %p376
      $region82: #{deformable_decoder_forward.6} parent=75 // pred_check_branch
        %1959 = sbr.rel (%p1957) target = $region84
      $region83: #{deformable_decoder_forward.6} parent=75 // pred_region
        _
      $region84: #{deformable_decoder_forward.6} parent=75 // pred_fallthru
        _
      // Predicated region
      $region85: #{deformable_decoder_forward.6} parent=75 // pred_check
        %p1960 = pneg %p402
      $region86: #{deformable_decoder_forward.6} parent=75 // pred_check_branch
        %1962 = sbr.rel (%p1960) target = $region88
      $region87: #{deformable_decoder_forward.6} parent=75 // pred_region
        _
      $region88: #{deformable_decoder_forward.6} parent=75 // pred_fallthru
        _
    $region76: #{deformable_decoder_forward.6} parent=5 // pred_fallthru
      _
    %p1963 = scmp.le.s32.totalorder 2, %s23
    // Predicated region
    $region89: #{deformable_decoder_forward.6} parent=5 // pred_check
      %p1964 = pneg %p1963
    $region90: #{deformable_decoder_forward.6} parent=5 // pred_check_branch
      %1966 = sbr.rel (%p1964) target = $region92
    $region91: #{deformable_decoder_forward.6} parent=5 // pred_region
      %s1967 = ssub.s32 %s23, 2
      // Predicated region
      $region93: #{deformable_decoder_forward.6} parent=91 // pred_check
        %p1968 = pneg %p356
      $region94: #{deformable_decoder_forward.6} parent=91 // pred_check_branch
        %1970 = sbr.rel (%p1968) target = $region96
      $region95: #{deformable_decoder_forward.6} parent=91 // pred_region
        %p1971 = scmp.lt.s32.totalorder %s29, 1
        %s1972 = scalar_select %p1971, %s29, 1
        %s1973 = smul.addr %s1972, 4
        %s1974 = smul.addr %s1973, 8
        %s1975 = scalar_lea.vmem %s14, %s1974
      $region96: #{deformable_decoder_forward.6} parent=91 // pred_fallthru
        _
      // Predicated region
      $region97: #{deformable_decoder_forward.6} parent=91 // pred_check
        %p1976 = pneg %p382
      $region98: #{deformable_decoder_forward.6} parent=91 // pred_check_branch
        %1978 = sbr.rel (%p1976) target = $region100
      $region99: #{deformable_decoder_forward.6} parent=91 // pred_region
        %p1979 = scmp.lt.s32.totalorder %s29, 1
        %s1980 = scalar_select %p1979, %s29, 1
        %s1981 = smul.addr %s1980, 4
        %s1982 = smul.addr %s1981, 8
        %s1983 = scalar_lea.vmem %s15, %s1982
      $region100: #{deformable_decoder_forward.6} parent=91 // pred_fallthru
        _
      // Predicated region
      $region101: #{deformable_decoder_forward.6} parent=91 // pred_check
        %p1984 = pneg %p408
      $region102: #{deformable_decoder_forward.6} parent=91 // pred_check_branch
        %1986 = sbr.rel (%p1984) target = $region104
      $region103: #{deformable_decoder_forward.6} parent=91 // pred_region
        %p1987 = scmp.lt.s32.totalorder %s29, 1
        %s1988 = scalar_select %p1987, %s29, 1
        %s1989 = smul.addr %s1988, 4
        %s1990 = smul.addr %s1989, 8
        %s1991 = scalar_lea.vmem %s16, %s1990
      $region104: #{deformable_decoder_forward.6} parent=91 // pred_fallthru
        _
    $region92: #{deformable_decoder_forward.6} parent=5 // pred_fallthru
      _
  $region6: #{deformable_decoder_forward.6} parent=0 // loop_footer
    %s27 = sadd.s32 1, %s23
  $region7: #{deformable_decoder_forward.6} parent=0 // loop_footer_branch
    %22 = sbr.rel target = $region3
  $region8: #{deformable_decoder_forward.6} parent=0 // loop_exit
    _

// kernel: deformable_decoder_forward.8
$region0: #{deformable_decoder_forward.8}
  #allocation0 [shape = 'u32[]', space=smem, size = 0x4, offset = 0x4, fixed_abs, tag = 'smem constant byte address 0x4 - core index']
  #allocation1 [shape = 'u32[144,128]{1,0:T(1,128)}', space=vmem, size = 0x12000, scoped, tag = 'internal scratch']
  #allocation2 [shape = 'f32[32,64]{1,0:T(8,128)}', space=vmem, size = 0x4000, scoped, tag = 'scratch operand']
  %s0 = inlined_call_operand.vmem [shape: f32[64,16], index: 0, kind: input, shape index: {}]
  %s1 = inlined_call_operand.vmem [shape: f32[64,256], index: 1, kind: input, shape index: {}]
  %s2 = inlined_call_operand.vmem [shape: f32[64,64], index: 2, kind: input, shape index: {}]
  %s3 = inlined_call_operand.vmem [shape: bf16[64,64], index: 3, kind: input, shape index: {}]
  %s4 = inlined_call_operand.vmem [shape: f32[1,64], index: 4, kind: input, shape index: {}]
  %s5 = inlined_call_operand.vmem [shape: f32[1,64], index: 5, kind: input, shape index: {}]
  %s6 = inlined_call_operand.vmem [shape: f32[1,64], index: 6, kind: input, shape index: {}]
  %s7 = inlined_call_operand.vmem [shape: bf16[64,128], index: 7, kind: input, shape index: {}]
  %s8 = inlined_call_operand.vmem [shape: f32[1,128], index: 8, kind: input, shape index: {}]
  %s9 = inlined_call_operand.vmem [shape: bf16[128,64], index: 9, kind: input, shape index: {}]
  %s10 = inlined_call_operand.vmem [shape: f32[1,64], index: 10, kind: input, shape index: {}]
  %s11 = inlined_call_operand.vmem [shape: f32[1,64], index: 11, kind: input, shape index: {}]
  %s12 = inlined_call_operand.vmem [shape: f32[1,64], index: 12, kind: input, shape index: {}]
  %s13 = inlined_call_operand.vmem [shape: f32[64,64], index: 13, kind: output, shape index: {0}]
  %s14 = inlined_call_operand.vmem [shape: f32[64,16], index: 14, kind: output, shape index: {1}]
  %15 = xla_tuple %s13, %s14
  %s16 = sld [smem:[#allocation0]]
  $region93: #{deformable_decoder_forward.8} parent=0
    _
  %s18 = ssub.s32 1, %s16
  %s19 = scalar_select 0, %s18, %s16
  loop: start=0, step=1, limit=4
  $region2: #{deformable_decoder_forward.8} parent=0 // loop_pre_header
    _
  $region3: #{deformable_decoder_forward.8} parent=0 // loop_header
    %s21 = sphi 0, %s25
    %p22 = scmp.ge.s32.totalorder %s21, 4
    %s31 = sphi 0, %s33
    %s34 = sphi 0, %s31
    %s35 = sphi 0, %s34
    %s51 = sphi 0, %s35
    %s57 = sphi 0, %s59
    %s60 = sphi 0, %s57
    %s61 = sphi 0, %s60
    %s77 = sphi 0, %s61
    %s83 = sphi 0, %s85
    %s86 = sphi 0, %s83
    %s87 = sphi 0, %s86
    %s103 = sphi 0, %s87
    %s107 = sphi 0, %s107
    %s109 = sphi 0, %s107
    %s110 = sphi 0, %s109
    %s124 = sphi 0, %s110
    %s128 = sphi 0, %s128
    %s130 = sphi 0, %s128
    %s131 = sphi 0, %s130
    %s145 = sphi 0, %s131
    %s149 = sphi 0, %s149
    %s151 = sphi 0, %s149
    %s152 = sphi 0, %s151
    %s166 = sphi 0, %s152
    %s170 = sphi 0, %s170
    %s172 = sphi 0, %s170
    %s173 = sphi 0, %s172
    %s187 = sphi 0, %s173
    %s191 = sphi 0, %s191
    %s193 = sphi 0, %s191
    %s194 = sphi 0, %s193
    %s208 = sphi 0, %s194
    %s212 = sphi 0, %s212
    %s214 = sphi 0, %s212
    %s215 = sphi 0, %s214
    %s229 = sphi 0, %s215
    %s233 = sphi 0, %s233
    %s235 = sphi 0, %s233
    %s236 = sphi 0, %s235
    %s250 = sphi 0, %s236
    %s254 = sphi 0, %s254
    %s256 = sphi 0, %s254
    %s257 = sphi 0, %s256
    %s271 = sphi 0, %s257
    %s275 = sphi 0, %s275
    %s277 = sphi 0, %s275
    %s278 = sphi 0, %s277
    %s292 = sphi 0, %s278
    %s296 = sphi 0, %s296
    %s298 = sphi 0, %s296
    %s299 = sphi 0, %s298
    %s313 = sphi 0, %s299
    %s319 = sphi 0, %s321
    %s322 = sphi 0, %s319
    %s323 = sphi 0, %s322
    %s339 = sphi 0, %s323
    %s345 = sphi 0, %s347
    %s348 = sphi 0, %s345
    %s349 = sphi 0, %s348
    %s365 = sphi 0, %s349
  $region4: #{deformable_decoder_forward.8} parent=0 // loop_header_branch
    %24 = sbr.rel (%p22) target = $region8
  $region5: #{deformable_decoder_forward.8} parent=0 // loop_body
    %s26 = ssub.s32 %s21, 1
    %s27 = ssub.s32 %s21, 2
    %s28 = sadd.s32 %s21, 1
    %s29 = ssub.s32 %s21, %s28
    %p30 = scmp.eq.s32.totalorder %s29, 0
    %s32 = sadd.s32 %s31, 1
    %s33 = scalar_select %p30, %s31, %s32
    %p36 = pneg %p30
    %p37 = scmp.eq.s32.totalorder %s21, 1
    %p38 = por %p36, %p37
    %p39 = scmp.ne.s32.totalorder %s31, %s34
    %p40 = scmp.eq.s32.totalorder %s21, 0
    %p41 = por %p39, %p40
    %p42 = scmp.ne.s32.totalorder %s31, %s34
    %p43 = scmp.eq.s32.totalorder %s26, 1
    %p44 = por %p42, %p43
    %p45 = scmp.ne.s32.totalorder %s34, %s35
    %p46 = scmp.eq.s32.totalorder %s26, 0
    %p47 = por %p45, %p46
    %p48 = scmp.ne.s32.totalorder %s34, %s35
    %p49 = scmp.eq.s32.totalorder %s27, 1
    %p50 = por %p48, %p49
    %p52 = scmp.ne.s32.totalorder %s35, %s51
    %p53 = scmp.eq.s32.totalorder %s27, 0
    %p54 = por %p52, %p53
    %s55 = ssub.s32 %s21, %s28
    %p56 = scmp.eq.s32.totalorder %s55, 0
    %s58 = sadd.s32 %s57, 1
    %s59 = scalar_select %p56, %s57, %s58
    %p62 = pneg %p56
    %p63 = scmp.eq.s32.totalorder %s21, 1
    %p64 = por %p62, %p63
    %p65 = scmp.ne.s32.totalorder %s57, %s60
    %p66 = scmp.eq.s32.totalorder %s21, 0
    %p67 = por %p65, %p66
    %p68 = scmp.ne.s32.totalorder %s57, %s60
    %p69 = scmp.eq.s32.totalorder %s26, 1
    %p70 = por %p68, %p69
    %p71 = scmp.ne.s32.totalorder %s60, %s61
    %p72 = scmp.eq.s32.totalorder %s26, 0
    %p73 = por %p71, %p72
    %p74 = scmp.ne.s32.totalorder %s60, %s61
    %p75 = scmp.eq.s32.totalorder %s27, 1
    %p76 = por %p74, %p75
    %p78 = scmp.ne.s32.totalorder %s61, %s77
    %p79 = scmp.eq.s32.totalorder %s27, 0
    %p80 = por %p78, %p79
    %s81 = ssub.s32 %s21, %s28
    %p82 = scmp.eq.s32.totalorder %s81, 0
    %s84 = sadd.s32 %s83, 1
    %s85 = scalar_select %p82, %s83, %s84
    %p88 = pneg %p82
    %p89 = scmp.eq.s32.totalorder %s21, 1
    %p90 = por %p88, %p89
    %p91 = scmp.ne.s32.totalorder %s83, %s86
    %p92 = scmp.eq.s32.totalorder %s21, 0
    %p93 = por %p91, %p92
    %p94 = scmp.ne.s32.totalorder %s83, %s86
    %p95 = scmp.eq.s32.totalorder %s26, 1
    %p96 = por %p94, %p95
    %p97 = scmp.ne.s32.totalorder %s86, %s87
    %p98 = scmp.eq.s32.totalorder %s26, 0
    %p99 = por %p97, %p98
    %p100 = scmp.ne.s32.totalorder %s86, %s87
    %p101 = scmp.eq.s32.totalorder %s27, 1
    %p102 = por %p100, %p101
    %p104 = scmp.ne.s32.totalorder %s87, %s103
    %p105 = scmp.eq.s32.totalorder %s27, 0
    %p106 = por %p104, %p105
    %s108 = sadd.s32 %s107, 1
    %p111 = scmp.eq.s32.totalorder %s21, 1
    %p112 = scmp.ne.s32.totalorder %s107, %s109
    %p113 = scmp.eq.s32.totalorder %s21, 0
    %p114 = por %p112, %p113
    %p115 = scmp.ne.s32.totalorder %s107, %s109
    %p116 = scmp.eq.s32.totalorder %s26, 1
    %p117 = por %p115, %p116
    %p118 = scmp.ne.s32.totalorder %s109, %s110
    %p119 = scmp.eq.s32.totalorder %s26, 0
    %p120 = por %p118, %p119
    %p121 = scmp.ne.s32.totalorder %s109, %s110
    %p122 = scmp.eq.s32.totalorder %s27, 1
    %p123 = por %p121, %p122
    %p125 = scmp.ne.s32.totalorder %s110, %s124
    %p126 = scmp.eq.s32.totalorder %s27, 0
    %p127 = por %p125, %p126
    %s129 = sadd.s32 %s128, 1
    %p132 = scmp.eq.s32.totalorder %s21, 1
    %p133 = scmp.ne.s32.totalorder %s128, %s130
    %p134 = scmp.eq.s32.totalorder %s21, 0
    %p135 = por %p133, %p134
    %p136 = scmp.ne.s32.totalorder %s128, %s130
    %p137 = scmp.eq.s32.totalorder %s26, 1
    %p138 = por %p136, %p137
    %p139 = scmp.ne.s32.totalorder %s130, %s131
    %p140 = scmp.eq.s32.totalorder %s26, 0
    %p141 = por %p139, %p140
    %p142 = scmp.ne.s32.totalorder %s130, %s131
    %p143 = scmp.eq.s32.totalorder %s27, 1
    %p144 = por %p142, %p143
    %p146 = scmp.ne.s32.totalorder %s131, %s145
    %p147 = scmp.eq.s32.totalorder %s27, 0
    %p148 = por %p146, %p147
    %s150 = sadd.s32 %s149, 1
    %p153 = scmp.eq.s32.totalorder %s21, 1
    %p154 = scmp.ne.s32.totalorder %s149, %s151
    %p155 = scmp.eq.s32.totalorder %s21, 0
    %p156 = por %p154, %p155
    %p157 = scmp.ne.s32.totalorder %s149, %s151
    %p158 = scmp.eq.s32.totalorder %s26, 1
    %p159 = por %p157, %p158
    %p160 = scmp.ne.s32.totalorder %s151, %s152
    %p161 = scmp.eq.s32.totalorder %s26, 0
    %p162 = por %p160, %p161
    %p163 = scmp.ne.s32.totalorder %s151, %s152
    %p164 = scmp.eq.s32.totalorder %s27, 1
    %p165 = por %p163, %p164
    %p167 = scmp.ne.s32.totalorder %s152, %s166
    %p168 = scmp.eq.s32.totalorder %s27, 0
    %p169 = por %p167, %p168
    %s171 = sadd.s32 %s170, 1
    %p174 = scmp.eq.s32.totalorder %s21, 1
    %p175 = scmp.ne.s32.totalorder %s170, %s172
    %p176 = scmp.eq.s32.totalorder %s21, 0
    %p177 = por %p175, %p176
    %p178 = scmp.ne.s32.totalorder %s170, %s172
    %p179 = scmp.eq.s32.totalorder %s26, 1
    %p180 = por %p178, %p179
    %p181 = scmp.ne.s32.totalorder %s172, %s173
    %p182 = scmp.eq.s32.totalorder %s26, 0
    %p183 = por %p181, %p182
    %p184 = scmp.ne.s32.totalorder %s172, %s173
    %p185 = scmp.eq.s32.totalorder %s27, 1
    %p186 = por %p184, %p185
    %p188 = scmp.ne.s32.totalorder %s173, %s187
    %p189 = scmp.eq.s32.totalorder %s27, 0
    %p190 = por %p188, %p189
    %s192 = sadd.s32 %s191, 1
    %p195 = scmp.eq.s32.totalorder %s21, 1
    %p196 = scmp.ne.s32.totalorder %s191, %s193
    %p197 = scmp.eq.s32.totalorder %s21, 0
    %p198 = por %p196, %p197
    %p199 = scmp.ne.s32.totalorder %s191, %s193
    %p200 = scmp.eq.s32.totalorder %s26, 1
    %p201 = por %p199, %p200
    %p202 = scmp.ne.s32.totalorder %s193, %s194
    %p203 = scmp.eq.s32.totalorder %s26, 0
    %p204 = por %p202, %p203
    %p205 = scmp.ne.s32.totalorder %s193, %s194
    %p206 = scmp.eq.s32.totalorder %s27, 1
    %p207 = por %p205, %p206
    %p209 = scmp.ne.s32.totalorder %s194, %s208
    %p210 = scmp.eq.s32.totalorder %s27, 0
    %p211 = por %p209, %p210
    %s213 = sadd.s32 %s212, 1
    %p216 = scmp.eq.s32.totalorder %s21, 1
    %p217 = scmp.ne.s32.totalorder %s212, %s214
    %p218 = scmp.eq.s32.totalorder %s21, 0
    %p219 = por %p217, %p218
    %p220 = scmp.ne.s32.totalorder %s212, %s214
    %p221 = scmp.eq.s32.totalorder %s26, 1
    %p222 = por %p220, %p221
    %p223 = scmp.ne.s32.totalorder %s214, %s215
    %p224 = scmp.eq.s32.totalorder %s26, 0
    %p225 = por %p223, %p224
    %p226 = scmp.ne.s32.totalorder %s214, %s215
    %p227 = scmp.eq.s32.totalorder %s27, 1
    %p228 = por %p226, %p227
    %p230 = scmp.ne.s32.totalorder %s215, %s229
    %p231 = scmp.eq.s32.totalorder %s27, 0
    %p232 = por %p230, %p231
    %s234 = sadd.s32 %s233, 1
    %p237 = scmp.eq.s32.totalorder %s21, 1
    %p238 = scmp.ne.s32.totalorder %s233, %s235
    %p239 = scmp.eq.s32.totalorder %s21, 0
    %p240 = por %p238, %p239
    %p241 = scmp.ne.s32.totalorder %s233, %s235
    %p242 = scmp.eq.s32.totalorder %s26, 1
    %p243 = por %p241, %p242
    %p244 = scmp.ne.s32.totalorder %s235, %s236
    %p245 = scmp.eq.s32.totalorder %s26, 0
    %p246 = por %p244, %p245
    %p247 = scmp.ne.s32.totalorder %s235, %s236
    %p248 = scmp.eq.s32.totalorder %s27, 1
    %p249 = por %p247, %p248
    %p251 = scmp.ne.s32.totalorder %s236, %s250
    %p252 = scmp.eq.s32.totalorder %s27, 0
    %p253 = por %p251, %p252
    %s255 = sadd.s32 %s254, 1
    %p258 = scmp.eq.s32.totalorder %s21, 1
    %p259 = scmp.ne.s32.totalorder %s254, %s256
    %p260 = scmp.eq.s32.totalorder %s21, 0
    %p261 = por %p259, %p260
    %p262 = scmp.ne.s32.totalorder %s254, %s256
    %p263 = scmp.eq.s32.totalorder %s26, 1
    %p264 = por %p262, %p263
    %p265 = scmp.ne.s32.totalorder %s256, %s257
    %p266 = scmp.eq.s32.totalorder %s26, 0
    %p267 = por %p265, %p266
    %p268 = scmp.ne.s32.totalorder %s256, %s257
    %p269 = scmp.eq.s32.totalorder %s27, 1
    %p270 = por %p268, %p269
    %p272 = scmp.ne.s32.totalorder %s257, %s271
    %p273 = scmp.eq.s32.totalorder %s27, 0
    %p274 = por %p272, %p273
    %s276 = sadd.s32 %s275, 1
    %p279 = scmp.eq.s32.totalorder %s21, 1
    %p280 = scmp.ne.s32.totalorder %s275, %s277
    %p281 = scmp.eq.s32.totalorder %s21, 0
    %p282 = por %p280, %p281
    %p283 = scmp.ne.s32.totalorder %s275, %s277
    %p284 = scmp.eq.s32.totalorder %s26, 1
    %p285 = por %p283, %p284
    %p286 = scmp.ne.s32.totalorder %s277, %s278
    %p287 = scmp.eq.s32.totalorder %s26, 0
    %p288 = por %p286, %p287
    %p289 = scmp.ne.s32.totalorder %s277, %s278
    %p290 = scmp.eq.s32.totalorder %s27, 1
    %p291 = por %p289, %p290
    %p293 = scmp.ne.s32.totalorder %s278, %s292
    %p294 = scmp.eq.s32.totalorder %s27, 0
    %p295 = por %p293, %p294
    %s297 = sadd.s32 %s296, 1
    %p300 = scmp.eq.s32.totalorder %s21, 1
    %p301 = scmp.ne.s32.totalorder %s296, %s298
    %p302 = scmp.eq.s32.totalorder %s21, 0
    %p303 = por %p301, %p302
    %p304 = scmp.ne.s32.totalorder %s296, %s298
    %p305 = scmp.eq.s32.totalorder %s26, 1
    %p306 = por %p304, %p305
    %p307 = scmp.ne.s32.totalorder %s298, %s299
    %p308 = scmp.eq.s32.totalorder %s26, 0
    %p309 = por %p307, %p308
    %p310 = scmp.ne.s32.totalorder %s298, %s299
    %p311 = scmp.eq.s32.totalorder %s27, 1
    %p312 = por %p310, %p311
    %p314 = scmp.ne.s32.totalorder %s299, %s313
    %p315 = scmp.eq.s32.totalorder %s27, 0
    %p316 = por %p314, %p315
    %s317 = ssub.s32 %s21, %s28
    %p318 = scmp.eq.s32.totalorder %s317, 0
    %s320 = sadd.s32 %s319, 1
    %s321 = scalar_select %p318, %s319, %s320
    %p324 = pneg %p318
    %p325 = scmp.eq.s32.totalorder %s21, 1
    %p326 = por %p324, %p325
    %p327 = scmp.ne.s32.totalorder %s319, %s322
    %p328 = scmp.eq.s32.totalorder %s21, 0
    %p329 = por %p327, %p328
    %p330 = scmp.ne.s32.totalorder %s319, %s322
    %p331 = scmp.eq.s32.totalorder %s26, 1
    %p332 = por %p330, %p331
    %p333 = scmp.ne.s32.totalorder %s322, %s323
    %p334 = scmp.eq.s32.totalorder %s26, 0
    %p335 = por %p333, %p334
    %p336 = scmp.ne.s32.totalorder %s322, %s323
    %p337 = scmp.eq.s32.totalorder %s27, 1
    %p338 = por %p336, %p337
    %p340 = scmp.ne.s32.totalorder %s323, %s339
    %p341 = scmp.eq.s32.totalorder %s27, 0
    %p342 = por %p340, %p341
    %s343 = ssub.s32 %s21, %s28
    %p344 = scmp.eq.s32.totalorder %s343, 0
    %s346 = sadd.s32 %s345, 1
    %s347 = scalar_select %p344, %s345, %s346
    %p350 = pneg %p344
    %p351 = scmp.eq.s32.totalorder %s21, 1
    %p352 = por %p350, %p351
    %p353 = scmp.ne.s32.totalorder %s345, %s348
    %p354 = scmp.eq.s32.totalorder %s21, 0
    %p355 = por %p353, %p354
    %p356 = scmp.ne.s32.totalorder %s345, %s348
    %p357 = scmp.eq.s32.totalorder %s26, 1
    %p358 = por %p356, %p357
    %p359 = scmp.ne.s32.totalorder %s348, %s349
    %p360 = scmp.eq.s32.totalorder %s26, 0
    %p361 = por %p359, %p360
    %p362 = scmp.ne.s32.totalorder %s348, %s349
    %p363 = scmp.eq.s32.totalorder %s27, 1
    %p364 = por %p362, %p363
    %p366 = scmp.ne.s32.totalorder %s349, %s365
    %p367 = scmp.eq.s32.totalorder %s27, 0
    %p368 = por %p366, %p367
    %p369 = scmp.le.s32.totalorder 1, %s21
    %p370 = scmp.lt.s32.totalorder %s21, 3
    %p371 = pnand %p369, %p370
    %p372 = pneg %p371
    // Predicated region
    $region9: #{deformable_decoder_forward.8} parent=5 // pred_check
      _
    $region10: #{deformable_decoder_forward.8} parent=5 // pred_check_branch
      %374 = sbr.rel (%p371) target = $region12
    $region11: #{deformable_decoder_forward.8} parent=5 // pred_region
      %s375 = ssub.s32 %s21, 1
      // Predicated region
      $region13: #{deformable_decoder_forward.8} parent=11 // pred_check
        %p376 = pneg %p120
      $region14: #{deformable_decoder_forward.8} parent=11 // pred_check_branch
        %378 = sbr.rel (%p376) target = $region16
      $region15: #{deformable_decoder_forward.8} parent=11 // pred_region
        _
      $region16: #{deformable_decoder_forward.8} parent=11 // pred_fallthru
        _
      // Predicated region
      $region17: #{deformable_decoder_forward.8} parent=11 // pred_check
        %p379 = pneg %p141
      $region18: #{deformable_decoder_forward.8} parent=11 // pred_check_branch
        %381 = sbr.rel (%p379) target = $region20
      $region19: #{deformable_decoder_forward.8} parent=11 // pred_region
        _
      $region20: #{deformable_decoder_forward.8} parent=11 // pred_fallthru
        _
      // Predicated region
      $region21: #{deformable_decoder_forward.8} parent=11 // pred_check
        %p382 = pneg %p162
      $region22: #{deformable_decoder_forward.8} parent=11 // pred_check_branch
        %384 = sbr.rel (%p382) target = $region24
      $region23: #{deformable_decoder_forward.8} parent=11 // pred_region
        _
      $region24: #{deformable_decoder_forward.8} parent=11 // pred_fallthru
        _
      // Predicated region
      $region25: #{deformable_decoder_forward.8} parent=11 // pred_check
        %p385 = pneg %p183
      $region26: #{deformable_decoder_forward.8} parent=11 // pred_check_branch
        %387 = sbr.rel (%p385) target = $region28
      $region27: #{deformable_decoder_forward.8} parent=11 // pred_region
        _
      $region28: #{deformable_decoder_forward.8} parent=11 // pred_fallthru
        _
      // Predicated region
      $region29: #{deformable_decoder_forward.8} parent=11 // pred_check
        %p388 = pneg %p204
      $region30: #{deformable_decoder_forward.8} parent=11 // pred_check_branch
        %390 = sbr.rel (%p388) target = $region32
      $region31: #{deformable_decoder_forward.8} parent=11 // pred_region
        _
      $region32: #{deformable_decoder_forward.8} parent=11 // pred_fallthru
        _
      // Predicated region
      $region33: #{deformable_decoder_forward.8} parent=11 // pred_check
        %p391 = pneg %p225
      $region34: #{deformable_decoder_forward.8} parent=11 // pred_check_branch
        %393 = sbr.rel (%p391) target = $region36
      $region35: #{deformable_decoder_forward.8} parent=11 // pred_region
        _
      $region36: #{deformable_decoder_forward.8} parent=11 // pred_fallthru
        _
      // Predicated region
      $region37: #{deformable_decoder_forward.8} parent=11 // pred_check
        %p394 = pneg %p246
      $region38: #{deformable_decoder_forward.8} parent=11 // pred_check_branch
        %396 = sbr.rel (%p394) target = $region40
      $region39: #{deformable_decoder_forward.8} parent=11 // pred_region
        _
      $region40: #{deformable_decoder_forward.8} parent=11 // pred_fallthru
        _
      // Predicated region
      $region41: #{deformable_decoder_forward.8} parent=11 // pred_check
        %p397 = pneg %p267
      $region42: #{deformable_decoder_forward.8} parent=11 // pred_check_branch
        %399 = sbr.rel (%p397) target = $region44
      $region43: #{deformable_decoder_forward.8} parent=11 // pred_region
        _
      $region44: #{deformable_decoder_forward.8} parent=11 // pred_fallthru
        _
      // Predicated region
      $region45: #{deformable_decoder_forward.8} parent=11 // pred_check
        %p400 = pneg %p288
      $region46: #{deformable_decoder_forward.8} parent=11 // pred_check_branch
        %402 = sbr.rel (%p400) target = $region48
      $region47: #{deformable_decoder_forward.8} parent=11 // pred_region
        _
      $region48: #{deformable_decoder_forward.8} parent=11 // pred_fallthru
        _
      // Predicated region
      $region49: #{deformable_decoder_forward.8} parent=11 // pred_check
        %p403 = pneg %p309
      $region50: #{deformable_decoder_forward.8} parent=11 // pred_check_branch
        %405 = sbr.rel (%p403) target = $region52
      $region51: #{deformable_decoder_forward.8} parent=11 // pred_region
        _
      $region52: #{deformable_decoder_forward.8} parent=11 // pred_fallthru
        _
    $region12: #{deformable_decoder_forward.8} parent=5 // pred_fallthru
      _
    %p406 = scmp.lt.s32.totalorder %s21, 2
    // Predicated region
    $region53: #{deformable_decoder_forward.8} parent=5 // pred_check
      %p407 = pneg %p406
    $region54: #{deformable_decoder_forward.8} parent=5 // pred_check_branch
      %409 = sbr.rel (%p407) target = $region56
    $region55: #{deformable_decoder_forward.8} parent=5 // pred_region
      // Predicated region
      $region57: #{deformable_decoder_forward.8} parent=55 // pred_check
        %p410 = pneg %p41
      $region58: #{deformable_decoder_forward.8} parent=55 // pred_check_branch
        %412 = sbr.rel (%p410) target = $region60
      $region59: #{deformable_decoder_forward.8} parent=55 // pred_region
        %s413 = smul.u32 4, %s21
        %p414 = scmp.lt.s32.totalorder %s413, 7
        %s415 = scalar_select %p414, %s413, 7
        %s416 = smul.addr %s415, 8
        %s417 = scalar_lea.vmem %s0, %s416
        %s418 = smul.u32 4, %s21
      $region60: #{deformable_decoder_forward.8} parent=55 // pred_fallthru
        _
      // Predicated region
      $region61: #{deformable_decoder_forward.8} parent=55 // pred_check
        %p419 = pneg %p67
      $region62: #{deformable_decoder_forward.8} parent=55 // pred_check_branch
        %421 = sbr.rel (%p419) target = $region64
      $region63: #{deformable_decoder_forward.8} parent=55 // pred_region
        %s422 = smul.u32 4, %s21
        %p423 = scmp.lt.s32.totalorder %s422, 7
        %s424 = scalar_select %p423, %s422, 7
        %s425 = smul.addr %s424, 2
        %s426 = smul.addr %s425, 8
        %s427 = scalar_lea.vmem %s1, %s426
        %s428 = smul.u32 4, %s21
      $region64: #{deformable_decoder_forward.8} parent=55 // pred_fallthru
        _
      // Predicated region
      $region65: #{deformable_decoder_forward.8} parent=55 // pred_check
        %p429 = pneg %p93
      $region66: #{deformable_decoder_forward.8} parent=55 // pred_check_branch
        %431 = sbr.rel (%p429) target = $region68
      $region67: #{deformable_decoder_forward.8} parent=55 // pred_region
        %s432 = smul.u32 4, %s21
        %p433 = scmp.lt.s32.totalorder %s432, 7
        %s434 = scalar_select %p433, %s432, 7
        %s435 = smul.addr %s434, 8
        %s436 = scalar_lea.vmem %s2, %s435
        %s437 = smul.u32 4, %s21
      $region68: #{deformable_decoder_forward.8} parent=55 // pred_fallthru
        _
    $region56: #{deformable_decoder_forward.8} parent=5 // pred_fallthru
      _
    %p438 = scmp.le.s32.totalorder 1, %s21
    %p439 = scmp.lt.s32.totalorder %s21, 3
    %p440 = pnand %p438, %p439
    %p441 = pneg %p440
    // Predicated region
    $region69: #{deformable_decoder_forward.8} parent=5 // pred_check
      _
    $region70: #{deformable_decoder_forward.8} parent=5 // pred_check_branch
      %443 = sbr.rel (%p440) target = $region72
    $region71: #{deformable_decoder_forward.8} parent=5 // pred_region
      %s444 = ssub.s32 %s21, 1
      %s445 = smul.u32 4, %s26
      %p446 = scmp.lt.s32.totalorder %s445, 7
      %s447 = scalar_select %p446, %s445, 7
      %s448 = smul.addr %s447, 8
      %s449 = scalar_lea.vmem %s0, %s448
      %p450 = pneg %p47
      %p451 = pneg %p44
      %s452 = smul.u32 4, %s26
      %p453 = scmp.lt.s32.totalorder %s452, 7
      %s454 = scalar_select %p453, %s452, 7
      %s455 = smul.addr %s454, 2
      %s456 = smul.addr %s455, 8
      %s457 = scalar_lea.vmem %s1, %s456
      %p458 = pneg %p73
      %p459 = pneg %p70
      %s460 = smul.u32 4, %s26
      %p461 = scmp.lt.s32.totalorder %s460, 7
      %s462 = scalar_select %p461, %s460, 7
      %s463 = smul.addr %s462, 8
      %s464 = scalar_lea.vmem %s2, %s463
      %p465 = pneg %p99
      %p466 = pneg %p96
      %p467 = pneg %p120
      %p468 = pneg %p117
      %p469 = pneg %p141
      %p470 = pneg %p138
      %p471 = pneg %p162
      %p472 = pneg %p159
      %p473 = pneg %p183
      %p474 = pneg %p180
      %p475 = pneg %p204
      %p476 = pneg %p201
      %p477 = pneg %p225
      %p478 = pneg %p222
      %p479 = pneg %p246
      %p480 = pneg %p243
      %p481 = pneg %p267
      %p482 = pneg %p264
      %p483 = pneg %p288
      %p484 = pneg %p285
      %p485 = pneg %p309
      %p486 = pneg %p306
      %p487 = pneg %p335
      %p488 = pneg %p332
      %s489 = smul.u32 4, %s26
      %p490 = scmp.lt.s32.totalorder %s489, 7
      %s491 = scalar_select %p490, %s489, 7
      %s492 = smul.addr %s491, 8
      %s493 = scalar_lea.vmem %s13, %s492
      %p494 = pneg %p361
      %p495 = pneg %p358
      %s496 = smul.u32 4, %s26
      %p497 = scmp.lt.s32.totalorder %s496, 7
      %s498 = scalar_select %p497, %s496, 7
      %s499 = smul.addr %s498, 8
      %s500 = scalar_lea.vmem %s14, %s499
      %s501 = smul.u32 4, %s26
      %p502 = scmp.lt.s32.totalorder %s501, 7
      %s503 = scalar_select %p502, %s501, 7
      %s504 = smul.addr %s503, 8
      %s505 = scalar_lea.vmem %s0, %s504
      %s506 = smul.u32 4, %s26
      %s507 = smul.u32 4, %s26
      %p508 = scmp.lt.s32.totalorder %s507, 7
      %s509 = scalar_select %p508, %s507, 7
      %s510 = smul.addr %s509, 2
      %s511 = smul.addr %s510, 8
      %s512 = scalar_lea.vmem %s1, %s511
      %s513 = smul.u32 4, %s26
      %s514 = smul.u32 4, %s26
      %p515 = scmp.lt.s32.totalorder %s514, 7
      %s516 = scalar_select %p515, %s514, 7
      %s517 = smul.addr %s516, 8
      %s518 = scalar_lea.vmem %s2, %s517
      %s519 = smul.u32 4, %s26
      %s520 = smul.u32 4, %s26
      %p521 = scmp.lt.s32.totalorder %s520, 7
      %s522 = scalar_select %p521, %s520, 7
      %s523 = smul.addr %s522, 8
      %s524 = scalar_lea.vmem %s13, %s523
      %s525 = smul.u32 4, %s26
      %s526 = smul.u32 4, %s26
      %p527 = scmp.lt.s32.totalorder %s526, 7
      %s528 = scalar_select %p527, %s526, 7
      %s529 = smul.addr %s528, 8
      %s530 = scalar_lea.vmem %s14, %s529
      %s531 = smul.u32 4, %s26
      %v533 = vld [vmem:[%s505] sm:$0xff]
      %v534 = vld [vmem:[%s505 + $0x8] sm:$0xff]
      %v535 = vld [vmem:[%s505 + $0x10] sm:$0xff]
      %v536 = vld [vmem:[%s505 + $0x18] sm:$0xff]
      %v537 = vld [vmem:[%s512] sm:$0xff]
      %v538 = vld [vmem:[%s512 + $0x8] sm:$0xff]
      %v539 = vld [vmem:[%s512 + $0x10] sm:$0xff]
      %v540 = vld [vmem:[%s512 + $0x18] sm:$0xff]
      %v541 = vld [vmem:[%s512 + $0x20] sm:$0xff]
      %v542 = vld [vmem:[%s512 + $0x28] sm:$0xff]
      %v543 = vld [vmem:[%s512 + $0x30] sm:$0xff]
      %v544 = vld [vmem:[%s512 + $0x38] sm:$0xff]
      %vm545 = vcmask 31744
      %v546 = vsel %vm545, %v533, -inf
      %547 = vmax.xlane.f32.xlu0 %v546
      %v548 = vpop.xlane.xlu0 %547
      %v549 = vsel %vm545, %v534, -inf
      %550 = vmax.xlane.f32.xlu0 %v549
      %v551 = vpop.xlane.xlu0 %550
      %v552 = vsel %vm545, %v535, -inf
      %553 = vmax.xlane.f32.xlu0 %v552
      %v554 = vpop.xlane.xlu0 %553
      %v555 = vsel %vm545, %v536, -inf
      %556 = vmax.xlane.f32.xlu0 %v555
      %v557 = vpop.xlane.xlu0 %556
      %v558 = vsub.f32 %v533, %v548
      %v559 = vsub.f32 %v534, %v551
      %v560 = vsub.f32 %v535, %v554
      %v561 = vsub.f32 %v536, %v557
      %v562 = vmul.f32 %v558, 1.442695
      %v563 = vpow.pop %v562
      %v564 = vmul.f32 %v559, 1.442695
      %v565 = vpow.pop %v564
      %v566 = vmul.f32 %v560, 1.442695
      %v567 = vpow.pop %v566
      %v568 = vmul.f32 %v561, 1.442695
      %v569 = vpow.pop %v568
      %v570 = vsel %vm545, %v563, 0.0
      %571 = vadd.xlane.f32.xlu0 %v570
      %v572 = vpop.xlane.xlu0 %571
      %v573 = vsel %vm545, %v565, 0.0
      %574 = vadd.xlane.f32.xlu0 %v573
      %v575 = vpop.xlane.xlu0 %574
      %v576 = vsel %vm545, %v567, 0.0
      %577 = vadd.xlane.f32.xlu0 %v576
      %v578 = vpop.xlane.xlu0 %577
      %v579 = vsel %vm545, %v569, 0.0
      %580 = vadd.xlane.f32.xlu0 %v579
      %v581 = vpop.xlane.xlu0 %580
      %v582 = vrcp.pop %v572
      %v583 = vmul.f32 %v563, %v582
      %v584 = vrcp.pop %v575
      %v585 = vmul.f32 %v565, %v584
      %v586 = vrcp.pop %v578
      %v587 = vmul.f32 %v567, %v586
      %v588 = vrcp.pop %v581
      %v589 = vmul.f32 %v569, %v588
      %590 = vst.msk [vmem:[%s530] sm:$0xff] %vm545, %v583
      %591 = vst.msk [vmem:[%s530 + $0x8] sm:$0xff] %vm545, %v585
      %592 = vst.msk [vmem:[%s530 + $0x10] sm:$0xff] %vm545, %v587
      %593 = vst.msk [vmem:[%s530 + $0x18] sm:$0xff] %vm545, %v589
      %595 = vset.pattern.permute.xlu0 0
      %596 = vperm.xlu0 %595, %v583
      %v597 = vpop.permute.xlu0 %596
      %600 = vset.pattern.permute.xlu0 0
      %601 = vperm.xlu0 %600, %v585
      %v602 = vpop.permute.xlu0 %601
      %605 = vset.pattern.permute.xlu0 0
      %606 = vperm.xlu0 %605, %v587
      %v607 = vpop.permute.xlu0 %606
      %610 = vset.pattern.permute.xlu0 0
      %611 = vperm.xlu0 %610, %v589
      %v612 = vpop.permute.xlu0 %611
      %v614 = vmul.f32 %v597, %v537
      %v615 = vmul.f32 %v602, %v539
      %v616 = vmul.f32 %v607, %v541
      %v617 = vmul.f32 %v612, %v543
      %v618 = vadd.f32 %v614, 0.0
      %v619 = vadd.f32 %v615, 0.0
      %v620 = vadd.f32 %v616, 0.0
      %v621 = vadd.f32 %v617, 0.0
      %622 = vset.pattern.permute.xlu0 1
      %623 = vperm.xlu0 %622, %v583
      %v624 = vpop.permute.xlu0 %623
      %626 = vset.pattern.permute.xlu0 1
      %627 = vperm.xlu0 %626, %v585
      %v628 = vpop.permute.xlu0 %627
      %630 = vset.pattern.permute.xlu0 1
      %631 = vperm.xlu0 %630, %v587
      %v632 = vpop.permute.xlu0 %631
      %634 = vset.pattern.permute.xlu0 1
      %635 = vperm.xlu0 %634, %v589
      %v636 = vpop.permute.xlu0 %635
      %v638 = vmul.f32 %v624, %v537
      %v639 = vmul.f32 %v628, %v539
      %v640 = vmul.f32 %v632, %v541
      %v641 = vmul.f32 %v636, %v543
      %646 = vrot.lane.b32.xlu0 %v638, 64
      %v647 = vpop.permute.xlu0 %646
      %648 = vrot.lane.b32.xlu0 %v639, 64
      %v649 = vpop.permute.xlu0 %648
      %650 = vrot.lane.b32.xlu0 %v640, 64
      %v651 = vpop.permute.xlu0 %650
      %652 = vrot.lane.b32.xlu0 %v641, 64
      %v653 = vpop.permute.xlu0 %652
      %v658 = vadd.f32 %v618, %v647
      %v659 = vadd.f32 %v619, %v649
      %v660 = vadd.f32 %v620, %v651
      %v661 = vadd.f32 %v621, %v653
      %662 = vset.pattern.permute.xlu0 2
      %663 = vperm.xlu0 %662, %v583
      %v664 = vpop.permute.xlu0 %663
      %666 = vset.pattern.permute.xlu0 2
      %667 = vperm.xlu0 %666, %v585
      %v668 = vpop.permute.xlu0 %667
      %670 = vset.pattern.permute.xlu0 2
      %671 = vperm.xlu0 %670, %v587
      %v672 = vpop.permute.xlu0 %671
      %674 = vset.pattern.permute.xlu0 2
      %675 = vperm.xlu0 %674, %v589
      %v676 = vpop.permute.xlu0 %675
      %v678 = vmul.f32 %v664, %v538
      %v679 = vmul.f32 %v668, %v540
      %v680 = vmul.f32 %v672, %v542
      %v681 = vmul.f32 %v676, %v544
      %v682 = vadd.f32 %v658, %v678
      %v683 = vadd.f32 %v659, %v679
      %v684 = vadd.f32 %v660, %v680
      %v685 = vadd.f32 %v661, %v681
      %686 = vset.pattern.permute.xlu0 3
      %687 = vperm.xlu0 %686, %v583
      %v688 = vpop.permute.xlu0 %687
      %690 = vset.pattern.permute.xlu0 3
      %691 = vperm.xlu0 %690, %v585
      %v692 = vpop.permute.xlu0 %691
      %694 = vset.pattern.permute.xlu0 3
      %695 = vperm.xlu0 %694, %v587
      %v696 = vpop.permute.xlu0 %695
      %698 = vset.pattern.permute.xlu0 3
      %699 = vperm.xlu0 %698, %v589
      %v700 = vpop.permute.xlu0 %699
      %v702 = vmul.f32 %v688, %v538
      %v703 = vmul.f32 %v692, %v540
      %v704 = vmul.f32 %v696, %v542
      %v705 = vmul.f32 %v700, %v544
      %710 = vrot.lane.b32.xlu0 %v702, 64
      %v711 = vpop.permute.xlu0 %710
      %712 = vrot.lane.b32.xlu0 %v703, 64
      %v713 = vpop.permute.xlu0 %712
      %714 = vrot.lane.b32.xlu0 %v704, 64
      %v715 = vpop.permute.xlu0 %714
      %716 = vrot.lane.b32.xlu0 %v705, 64
      %v717 = vpop.permute.xlu0 %716
      %v722 = vadd.f32 %v682, %v711
      %v723 = vadd.f32 %v683, %v713
      %v724 = vadd.f32 %v684, %v715
      %v725 = vadd.f32 %v685, %v717
      %vm726 = vcmask 130048
      %727 = vst.msk [vmem:[#allocation2] sm:$0xff] %vm726, %v722
      %728 = vst.msk [vmem:[#allocation2 + $0x8] sm:$0xff] %vm726, %v723
      %729 = vst.msk [vmem:[#allocation2 + $0x10] sm:$0xff] %vm726, %v724
      %730 = vst.msk [vmem:[#allocation2 + $0x18] sm:$0xff] %vm726, %v725
      %vm731 = vcmask 64544
      %v732 = vsel %vm731, %v533, -inf
      %733 = vmax.xlane.f32.xlu0 %v732
      %v734 = vpop.xlane.xlu0 %733
      %v735 = vsel %vm731, %v534, -inf
      %736 = vmax.xlane.f32.xlu0 %v735
      %v737 = vpop.xlane.xlu0 %736
      %v738 = vsel %vm731, %v535, -inf
      %739 = vmax.xlane.f32.xlu0 %v738
      %v740 = vpop.xlane.xlu0 %739
      %v741 = vsel %vm731, %v536, -inf
      %742 = vmax.xlane.f32.xlu0 %v741
      %v743 = vpop.xlane.xlu0 %742
      %v744 = vsub.f32 %v533, %v734
      %v745 = vsub.f32 %v534, %v737
      %v746 = vsub.f32 %v535, %v740
      %v747 = vsub.f32 %v536, %v743
      %v748 = vmul.f32 %v744, 1.442695
      %v749 = vpow.pop %v748
      %v750 = vmul.f32 %v745, 1.442695
      %v751 = vpow.pop %v750
      %v752 = vmul.f32 %v746, 1.442695
      %v753 = vpow.pop %v752
      %v754 = vmul.f32 %v747, 1.442695
      %v755 = vpow.pop %v754
      %760 = vrot.lane.b32.xlu0 %v749, 124
      %v761 = vpop.permute.xlu0 %760
      %762 = vrot.lane.b32.xlu0 %v751, 124
      %v763 = vpop.permute.xlu0 %762
      %764 = vrot.lane.b32.xlu0 %v753, 124
      %v765 = vpop.permute.xlu0 %764
      %766 = vrot.lane.b32.xlu0 %v755, 124
      %v767 = vpop.permute.xlu0 %766
      %v772 = vsel %vm545, %v761, 0.0
      %773 = vadd.xlane.f32.xlu0 %v772
      %v774 = vpop.xlane.xlu0 %773
      %v775 = vsel %vm545, %v763, 0.0
      %776 = vadd.xlane.f32.xlu0 %v775
      %v777 = vpop.xlane.xlu0 %776
      %v778 = vsel %vm545, %v765, 0.0
      %779 = vadd.xlane.f32.xlu0 %v778
      %v780 = vpop.xlane.xlu0 %779
      %v781 = vsel %vm545, %v767, 0.0
      %782 = vadd.xlane.f32.xlu0 %v781
      %v783 = vpop.xlane.xlu0 %782
      %v784 = vrcp.pop %v774
      %v785 = vmul.f32 %v749, %v784
      %v786 = vrcp.pop %v777
      %v787 = vmul.f32 %v751, %v786
      %v788 = vrcp.pop %v780
      %v789 = vmul.f32 %v753, %v788
      %v790 = vrcp.pop %v783
      %v791 = vmul.f32 %v755, %v790
      %792 = vst.msk [vmem:[%s530] sm:$0xff] %vm731, %v785
      %793 = vst.msk [vmem:[%s530 + $0x8] sm:$0xff] %vm731, %v787
      %794 = vst.msk [vmem:[%s530 + $0x10] sm:$0xff] %vm731, %v789
      %795 = vst.msk [vmem:[%s530 + $0x18] sm:$0xff] %vm731, %v791
      %797 = vset.pattern.permute.xlu0 4
      %798 = vperm.xlu0 %797, %v785
      %v799 = vpop.permute.xlu0 %798
      %802 = vset.pattern.permute.xlu0 4
      %803 = vperm.xlu0 %802, %v787
      %v804 = vpop.permute.xlu0 %803
      %807 = vset.pattern.permute.xlu0 4
      %808 = vperm.xlu0 %807, %v789
      %v809 = vpop.permute.xlu0 %808
      %812 = vset.pattern.permute.xlu0 4
      %813 = vperm.xlu0 %812, %v791
      %v814 = vpop.permute.xlu0 %813
      %v816 = vmul.f32 %v799, %v537
      %v817 = vmul.f32 %v804, %v539
      %v818 = vmul.f32 %v809, %v541
      %v819 = vmul.f32 %v814, %v543
      %v820 = vadd.f32 %v816, 0.0
      %v821 = vadd.f32 %v817, 0.0
      %v822 = vadd.f32 %v818, 0.0
      %v823 = vadd.f32 %v819, 0.0
      %824 = vset.pattern.permute.xlu0 5
      %825 = vperm.xlu0 %824, %v785
      %v826 = vpop.permute.xlu0 %825
      %828 = vset.pattern.permute.xlu0 5
      %829 = vperm.xlu0 %828, %v787
      %v830 = vpop.permute.xlu0 %829
      %832 = vset.pattern.permute.xlu0 5
      %833 = vperm.xlu0 %832, %v789
      %v834 = vpop.permute.xlu0 %833
      %836 = vset.pattern.permute.xlu0 5
      %837 = vperm.xlu0 %836, %v791
      %v838 = vpop.permute.xlu0 %837
      %v840 = vmul.f32 %v826, %v537
      %v841 = vmul.f32 %v830, %v539
      %v842 = vmul.f32 %v834, %v541
      %v843 = vmul.f32 %v838, %v543
      %848 = vrot.lane.b32.xlu0 %v840, 64
      %v849 = vpop.permute.xlu0 %848
      %850 = vrot.lane.b32.xlu0 %v841, 64
      %v851 = vpop.permute.xlu0 %850
      %852 = vrot.lane.b32.xlu0 %v842, 64
      %v853 = vpop.permute.xlu0 %852
      %854 = vrot.lane.b32.xlu0 %v843, 64
      %v855 = vpop.permute.xlu0 %854
      %v860 = vadd.f32 %v820, %v849
      %v861 = vadd.f32 %v821, %v851
      %v862 = vadd.f32 %v822, %v853
      %v863 = vadd.f32 %v823, %v855
      %864 = vset.pattern.permute.xlu0 6
      %865 = vperm.xlu0 %864, %v785
      %v866 = vpop.permute.xlu0 %865
      %868 = vset.pattern.permute.xlu0 6
      %869 = vperm.xlu0 %868, %v787
      %v870 = vpop.permute.xlu0 %869
      %872 = vset.pattern.permute.xlu0 6
      %873 = vperm.xlu0 %872, %v789
      %v874 = vpop.permute.xlu0 %873
      %876 = vset.pattern.permute.xlu0 6
      %877 = vperm.xlu0 %876, %v791
      %v878 = vpop.permute.xlu0 %877
      %v880 = vmul.f32 %v866, %v538
      %v881 = vmul.f32 %v870, %v540
      %v882 = vmul.f32 %v874, %v542
      %v883 = vmul.f32 %v878, %v544
      %v884 = vadd.f32 %v860, %v880
      %v885 = vadd.f32 %v861, %v881
      %v886 = vadd.f32 %v862, %v882
      %v887 = vadd.f32 %v863, %v883
      %888 = vset.pattern.permute.xlu0 7
      %889 = vperm.xlu0 %888, %v785
      %v890 = vpop.permute.xlu0 %889
      %892 = vset.pattern.permute.xlu0 7
      %893 = vperm.xlu0 %892, %v787
      %v894 = vpop.permute.xlu0 %893
      %896 = vset.pattern.permute.xlu0 7
      %897 = vperm.xlu0 %896, %v789
      %v898 = vpop.permute.xlu0 %897
      %900 = vset.pattern.permute.xlu0 7
      %901 = vperm.xlu0 %900, %v791
      %v902 = vpop.permute.xlu0 %901
      %v904 = vmul.f32 %v890, %v538
      %v905 = vmul.f32 %v894, %v540
      %v906 = vmul.f32 %v898, %v542
      %v907 = vmul.f32 %v902, %v544
      %912 = vrot.lane.b32.xlu0 %v904, 64
      %v913 = vpop.permute.xlu0 %912
      %914 = vrot.lane.b32.xlu0 %v905, 64
      %v915 = vpop.permute.xlu0 %914
      %916 = vrot.lane.b32.xlu0 %v906, 64
      %v917 = vpop.permute.xlu0 %916
      %918 = vrot.lane.b32.xlu0 %v907, 64
      %v919 = vpop.permute.xlu0 %918
      %v924 = vadd.f32 %v884, %v913
      %v925 = vadd.f32 %v885, %v915
      %v926 = vadd.f32 %v886, %v917
      %v927 = vadd.f32 %v887, %v919
      %vm928 = vcmask 261248
      %929 = vst.msk [vmem:[#allocation2] sm:$0xff] %vm928, %v924
      %930 = vst.msk [vmem:[#allocation2 + $0x8] sm:$0xff] %vm928, %v925
      %931 = vst.msk [vmem:[#allocation2 + $0x10] sm:$0xff] %vm928, %v926
      %932 = vst.msk [vmem:[#allocation2 + $0x18] sm:$0xff] %vm928, %v927
      %vm933 = vcmask 97344
      %v934 = vsel %vm933, %v533, -inf
      %935 = vmax.xlane.f32.xlu0 %v934
      %v936 = vpop.xlane.xlu0 %935
      %v937 = vsel %vm933, %v534, -inf
      %938 = vmax.xlane.f32.xlu0 %v937
      %v939 = vpop.xlane.xlu0 %938
      %v940 = vsel %vm933, %v535, -inf
      %941 = vmax.xlane.f32.xlu0 %v940
      %v942 = vpop.xlane.xlu0 %941
      %v943 = vsel %vm933, %v536, -inf
      %944 = vmax.xlane.f32.xlu0 %v943
      %v945 = vpop.xlane.xlu0 %944
      %v946 = vsub.f32 %v533, %v936
      %v947 = vsub.f32 %v534, %v939
      %v948 = vsub.f32 %v535, %v942
      %v949 = vsub.f32 %v536, %v945
      %v950 = vmul.f32 %v946, 1.442695
      %v951 = vpow.pop %v950
      %v952 = vmul.f32 %v947, 1.442695
      %v953 = vpow.pop %v952
      %v954 = vmul.f32 %v948, 1.442695
      %v955 = vpow.pop %v954
      %v956 = vmul.f32 %v949, 1.442695
      %v957 = vpow.pop %v956
      %962 = vrot.lane.b32.xlu0 %v951, 120
      %v963 = vpop.permute.xlu0 %962
      %964 = vrot.lane.b32.xlu0 %v953, 120
      %v965 = vpop.permute.xlu0 %964
      %966 = vrot.lane.b32.xlu0 %v955, 120
      %v967 = vpop.permute.xlu0 %966
      %968 = vrot.lane.b32.xlu0 %v957, 120
      %v969 = vpop.permute.xlu0 %968
      %v974 = vsel %vm545, %v963, 0.0
      %975 = vadd.xlane.f32.xlu0 %v974
      %v976 = vpop.xlane.xlu0 %975
      %v977 = vsel %vm545, %v965, 0.0
      %978 = vadd.xlane.f32.xlu0 %v977
      %v979 = vpop.xlane.xlu0 %978
      %v980 = vsel %vm545, %v967, 0.0
      %981 = vadd.xlane.f32.xlu0 %v980
      %v982 = vpop.xlane.xlu0 %981
      %v983 = vsel %vm545, %v969, 0.0
      %984 = vadd.xlane.f32.xlu0 %v983
      %v985 = vpop.xlane.xlu0 %984
      %v986 = vrcp.pop %v976
      %v987 = vmul.f32 %v951, %v986
      %v988 = vrcp.pop %v979
      %v989 = vmul.f32 %v953, %v988
      %v990 = vrcp.pop %v982
      %v991 = vmul.f32 %v955, %v990
      %v992 = vrcp.pop %v985
      %v993 = vmul.f32 %v957, %v992
      %994 = vst.msk [vmem:[%s530] sm:$0xff] %vm933, %v987
      %995 = vst.msk [vmem:[%s530 + $0x8] sm:$0xff] %vm933, %v989
      %996 = vst.msk [vmem:[%s530 + $0x10] sm:$0xff] %vm933, %v991
      %997 = vst.msk [vmem:[%s530 + $0x18] sm:$0xff] %vm933, %v993
      %999 = vset.pattern.permute.xlu0 8
      %1000 = vperm.xlu0 %999, %v987
      %v1001 = vpop.permute.xlu0 %1000
      %1004 = vset.pattern.permute.xlu0 8
      %1005 = vperm.xlu0 %1004, %v989
      %v1006 = vpop.permute.xlu0 %1005
      %1009 = vset.pattern.permute.xlu0 8
      %1010 = vperm.xlu0 %1009, %v991
      %v1011 = vpop.permute.xlu0 %1010
      %1014 = vset.pattern.permute.xlu0 8
      %1015 = vperm.xlu0 %1014, %v993
      %v1016 = vpop.permute.xlu0 %1015
      %v1018 = vmul.f32 %v1001, %v537
      %v1019 = vmul.f32 %v1006, %v539
      %v1020 = vmul.f32 %v1011, %v541
      %v1021 = vmul.f32 %v1016, %v543
      %v1022 = vadd.f32 %v1018, 0.0
      %v1023 = vadd.f32 %v1019, 0.0
      %v1024 = vadd.f32 %v1020, 0.0
      %v1025 = vadd.f32 %v1021, 0.0
      %1026 = vset.pattern.permute.xlu0 9
      %1027 = vperm.xlu0 %1026, %v987
      %v1028 = vpop.permute.xlu0 %1027
      %1030 = vset.pattern.permute.xlu0 9
      %1031 = vperm.xlu0 %1030, %v989
      %v1032 = vpop.permute.xlu0 %1031
      %1034 = vset.pattern.permute.xlu0 9
      %1035 = vperm.xlu0 %1034, %v991
      %v1036 = vpop.permute.xlu0 %1035
      %1038 = vset.pattern.permute.xlu0 9
      %1039 = vperm.xlu0 %1038, %v993
      %v1040 = vpop.permute.xlu0 %1039
      %v1042 = vmul.f32 %v1028, %v537
      %v1043 = vmul.f32 %v1032, %v539
      %v1044 = vmul.f32 %v1036, %v541
      %v1045 = vmul.f32 %v1040, %v543
      %1050 = vrot.lane.b32.xlu0 %v1042, 64
      %v1051 = vpop.permute.xlu0 %1050
      %1052 = vrot.lane.b32.xlu0 %v1043, 64
      %v1053 = vpop.permute.xlu0 %1052
      %1054 = vrot.lane.b32.xlu0 %v1044, 64
      %v1055 = vpop.permute.xlu0 %1054
      %1056 = vrot.lane.b32.xlu0 %v1045, 64
      %v1057 = vpop.permute.xlu0 %1056
      %v1062 = vadd.f32 %v1022, %v1051
      %v1063 = vadd.f32 %v1023, %v1053
      %v1064 = vadd.f32 %v1024, %v1055
      %v1065 = vadd.f32 %v1025, %v1057
      %1066 = vset.pattern.permute.xlu0 10
      %1067 = vperm.xlu0 %1066, %v987
      %v1068 = vpop.permute.xlu0 %1067
      %1070 = vset.pattern.permute.xlu0 10
      %1071 = vperm.xlu0 %1070, %v989
      %v1072 = vpop.permute.xlu0 %1071
      %1074 = vset.pattern.permute.xlu0 10
      %1075 = vperm.xlu0 %1074, %v991
      %v1076 = vpop.permute.xlu0 %1075
      %1078 = vset.pattern.permute.xlu0 10
      %1079 = vperm.xlu0 %1078, %v993
      %v1080 = vpop.permute.xlu0 %1079
      %v1082 = vmul.f32 %v1068, %v538
      %v1083 = vmul.f32 %v1072, %v540
      %v1084 = vmul.f32 %v1076, %v542
      %v1085 = vmul.f32 %v1080, %v544
      %v1086 = vadd.f32 %v1062, %v1082
      %v1087 = vadd.f32 %v1063, %v1083
      %v1088 = vadd.f32 %v1064, %v1084
      %v1089 = vadd.f32 %v1065, %v1085
      %1090 = vset.pattern.permute.xlu0 11
      %1091 = vperm.xlu0 %1090, %v987
      %v1092 = vpop.permute.xlu0 %1091
      %1094 = vset.pattern.permute.xlu0 11
      %1095 = vperm.xlu0 %1094, %v989
      %v1096 = vpop.permute.xlu0 %1095
      %1098 = vset.pattern.permute.xlu0 11
      %1099 = vperm.xlu0 %1098, %v991
      %v1100 = vpop.permute.xlu0 %1099
      %1102 = vset.pattern.permute.xlu0 11
      %1103 = vperm.xlu0 %1102, %v993
      %v1104 = vpop.permute.xlu0 %1103
      %v1106 = vmul.f32 %v1092, %v538
      %v1107 = vmul.f32 %v1096, %v540
      %v1108 = vmul.f32 %v1100, %v542
      %v1109 = vmul.f32 %v1104, %v544
      %1114 = vrot.lane.b32.xlu0 %v1106, 64
      %v1115 = vpop.permute.xlu0 %1114
      %1116 = vrot.lane.b32.xlu0 %v1107, 64
      %v1117 = vpop.permute.xlu0 %1116
      %1118 = vrot.lane.b32.xlu0 %v1108, 64
      %v1119 = vpop.permute.xlu0 %1118
      %1120 = vrot.lane.b32.xlu0 %v1109, 64
      %v1121 = vpop.permute.xlu0 %1120
      %v1126 = vadd.f32 %v1086, %v1115
      %v1127 = vadd.f32 %v1087, %v1117
      %v1128 = vadd.f32 %v1088, %v1119
      %v1129 = vadd.f32 %v1089, %v1121
      %vm1130 = vcmask 392448
      %1131 = vst.msk [vmem:[#allocation2] sm:$0xff] %vm1130, %v1126
      %1132 = vst.msk [vmem:[#allocation2 + $0x8] sm:$0xff] %vm1130, %v1127
      %1133 = vst.msk [vmem:[#allocation2 + $0x10] sm:$0xff] %vm1130, %v1128
      %1134 = vst.msk [vmem:[#allocation2 + $0x18] sm:$0xff] %vm1130, %v1129
      %vm1135 = vcmask 130144
      %v1136 = vsel %vm1135, %v533, -inf
      %1137 = vmax.xlane.f32.xlu0 %v1136
      %v1138 = vpop.xlane.xlu0 %1137
      %v1139 = vsel %vm1135, %v534, -inf
      %1140 = vmax.xlane.f32.xlu0 %v1139
      %v1141 = vpop.xlane.xlu0 %1140
      %v1142 = vsel %vm1135, %v535, -inf
      %1143 = vmax.xlane.f32.xlu0 %v1142
      %v1144 = vpop.xlane.xlu0 %1143
      %v1145 = vsel %vm1135, %v536, -inf
      %1146 = vmax.xlane.f32.xlu0 %v1145
      %v1147 = vpop.xlane.xlu0 %1146
      %v1148 = vsub.f32 %v533, %v1138
      %v1149 = vsub.f32 %v534, %v1141
      %v1150 = vsub.f32 %v535, %v1144
      %v1151 = vsub.f32 %v536, %v1147
      %v1152 = vmul.f32 %v1148, 1.442695
      %v1153 = vpow.pop %v1152
      %v1154 = vmul.f32 %v1149, 1.442695
      %v1155 = vpow.pop %v1154
      %v1156 = vmul.f32 %v1150, 1.442695
      %v1157 = vpow.pop %v1156
      %v1158 = vmul.f32 %v1151, 1.442695
      %v1159 = vpow.pop %v1158
      %1164 = vrot.lane.b32.xlu0 %v1153, 116
      %v1165 = vpop.permute.xlu0 %1164
      %1166 = vrot.lane.b32.xlu0 %v1155, 116
      %v1167 = vpop.permute.xlu0 %1166
      %1168 = vrot.lane.b32.xlu0 %v1157, 116
      %v1169 = vpop.permute.xlu0 %1168
      %1170 = vrot.lane.b32.xlu0 %v1159, 116
      %v1171 = vpop.permute.xlu0 %1170
      %v1176 = vsel %vm545, %v1165, 0.0
      %1177 = vadd.xlane.f32.xlu0 %v1176
      %v1178 = vpop.xlane.xlu0 %1177
      %v1179 = vsel %vm545, %v1167, 0.0
      %1180 = vadd.xlane.f32.xlu0 %v1179
      %v1181 = vpop.xlane.xlu0 %1180
      %v1182 = vsel %vm545, %v1169, 0.0
      %1183 = vadd.xlane.f32.xlu0 %v1182
      %v1184 = vpop.xlane.xlu0 %1183
      %v1185 = vsel %vm545, %v1171, 0.0
      %1186 = vadd.xlane.f32.xlu0 %v1185
      %v1187 = vpop.xlane.xlu0 %1186
      %v1188 = vrcp.pop %v1178
      %v1189 = vmul.f32 %v1153, %v1188
      %v1190 = vrcp.pop %v1181
      %v1191 = vmul.f32 %v1155, %v1190
      %v1192 = vrcp.pop %v1184
      %v1193 = vmul.f32 %v1157, %v1192
      %v1194 = vrcp.pop %v1187
      %v1195 = vmul.f32 %v1159, %v1194
      %1196 = vst.msk [vmem:[%s530] sm:$0xff] %vm1135, %v1189
      %1197 = vst.msk [vmem:[%s530 + $0x8] sm:$0xff] %vm1135, %v1191
      %1198 = vst.msk [vmem:[%s530 + $0x10] sm:$0xff] %vm1135, %v1193
      %1199 = vst.msk [vmem:[%s530 + $0x18] sm:$0xff] %vm1135, %v1195
      %1201 = vset.pattern.permute.xlu0 12
      %1202 = vperm.xlu0 %1201, %v1189
      %v1203 = vpop.permute.xlu0 %1202
      %1206 = vset.pattern.permute.xlu0 12
      %1207 = vperm.xlu0 %1206, %v1191
      %v1208 = vpop.permute.xlu0 %1207
      %1211 = vset.pattern.permute.xlu0 12
      %1212 = vperm.xlu0 %1211, %v1193
      %v1213 = vpop.permute.xlu0 %1212
      %1216 = vset.pattern.permute.xlu0 12
      %1217 = vperm.xlu0 %1216, %v1195
      %v1218 = vpop.permute.xlu0 %1217
      %v1220 = vmul.f32 %v1203, %v537
      %v1221 = vmul.f32 %v1208, %v539
      %v1222 = vmul.f32 %v1213, %v541
      %v1223 = vmul.f32 %v1218, %v543
      %v1224 = vadd.f32 %v1220, 0.0
      %v1225 = vadd.f32 %v1221, 0.0
      %v1226 = vadd.f32 %v1222, 0.0
      %v1227 = vadd.f32 %v1223, 0.0
      %1228 = vset.pattern.permute.xlu0 13
      %1229 = vperm.xlu0 %1228, %v1189
      %v1230 = vpop.permute.xlu0 %1229
      %1232 = vset.pattern.permute.xlu0 13
      %1233 = vperm.xlu0 %1232, %v1191
      %v1234 = vpop.permute.xlu0 %1233
      %1236 = vset.pattern.permute.xlu0 13
      %1237 = vperm.xlu0 %1236, %v1193
      %v1238 = vpop.permute.xlu0 %1237
      %1240 = vset.pattern.permute.xlu0 13
      %1241 = vperm.xlu0 %1240, %v1195
      %v1242 = vpop.permute.xlu0 %1241
      %v1244 = vmul.f32 %v1230, %v537
      %v1245 = vmul.f32 %v1234, %v539
      %v1246 = vmul.f32 %v1238, %v541
      %v1247 = vmul.f32 %v1242, %v543
      %1252 = vrot.lane.b32.xlu0 %v1244, 64
      %v1253 = vpop.permute.xlu0 %1252
      %1254 = vrot.lane.b32.xlu0 %v1245, 64
      %v1255 = vpop.permute.xlu0 %1254
      %1256 = vrot.lane.b32.xlu0 %v1246, 64
      %v1257 = vpop.permute.xlu0 %1256
      %1258 = vrot.lane.b32.xlu0 %v1247, 64
      %v1259 = vpop.permute.xlu0 %1258
      %v1264 = vadd.f32 %v1224, %v1253
      %v1265 = vadd.f32 %v1225, %v1255
      %v1266 = vadd.f32 %v1226, %v1257
      %v1267 = vadd.f32 %v1227, %v1259
      %1268 = vset.pattern.permute.xlu0 14
      %1269 = vperm.xlu0 %1268, %v1189
      %v1270 = vpop.permute.xlu0 %1269
      %1272 = vset.pattern.permute.xlu0 14
      %1273 = vperm.xlu0 %1272, %v1191
      %v1274 = vpop.permute.xlu0 %1273
      %1276 = vset.pattern.permute.xlu0 14
      %1277 = vperm.xlu0 %1276, %v1193
      %v1278 = vpop.permute.xlu0 %1277
      %1280 = vset.pattern.permute.xlu0 14
      %1281 = vperm.xlu0 %1280, %v1195
      %v1282 = vpop.permute.xlu0 %1281
      %v1284 = vmul.f32 %v1270, %v538
      %v1285 = vmul.f32 %v1274, %v540
      %v1286 = vmul.f32 %v1278, %v542
      %v1287 = vmul.f32 %v1282, %v544
      %v1288 = vadd.f32 %v1264, %v1284
      %v1289 = vadd.f32 %v1265, %v1285
      %v1290 = vadd.f32 %v1266, %v1286
      %v1291 = vadd.f32 %v1267, %v1287
      %1292 = vset.pattern.permute.xlu0 15
      %1293 = vperm.xlu0 %1292, %v1189
      %v1294 = vpop.permute.xlu0 %1293
      %1296 = vset.pattern.permute.xlu0 15
      %1297 = vperm.xlu0 %1296, %v1191
      %v1298 = vpop.permute.xlu0 %1297
      %1300 = vset.pattern.permute.xlu0 15
      %1301 = vperm.xlu0 %1300, %v1193
      %v1302 = vpop.permute.xlu0 %1301
      %1304 = vset.pattern.permute.xlu0 15
      %1305 = vperm.xlu0 %1304, %v1195
      %v1306 = vpop.permute.xlu0 %1305
      %v1308 = vmul.f32 %v1294, %v538
      %v1309 = vmul.f32 %v1298, %v540
      %v1310 = vmul.f32 %v1302, %v542
      %v1311 = vmul.f32 %v1306, %v544
      %1316 = vrot.lane.b32.xlu0 %v1308, 64
      %v1317 = vpop.permute.xlu0 %1316
      %1318 = vrot.lane.b32.xlu0 %v1309, 64
      %v1319 = vpop.permute.xlu0 %1318
      %1320 = vrot.lane.b32.xlu0 %v1310, 64
      %v1321 = vpop.permute.xlu0 %1320
      %1322 = vrot.lane.b32.xlu0 %v1311, 64
      %v1323 = vpop.permute.xlu0 %1322
      %v1328 = vadd.f32 %v1288, %v1317
      %v1329 = vadd.f32 %v1289, %v1319
      %v1330 = vadd.f32 %v1290, %v1321
      %v1331 = vadd.f32 %v1291, %v1323
      %vm1332 = vcmask 523648
      %1333 = vst.msk [vmem:[#allocation2] sm:$0xff] %vm1332, %v1328
      %1334 = vst.msk [vmem:[#allocation2 + $0x8] sm:$0xff] %vm1332, %v1329
      %1335 = vst.msk [vmem:[#allocation2 + $0x10] sm:$0xff] %vm1332, %v1330
      %1336 = vst.msk [vmem:[#allocation2 + $0x18] sm:$0xff] %vm1332, %v1331
      %v1337 = vld [vmem:[#allocation2] sm:$0xff]
      %v1338 = vld [vmem:[#allocation2 + $0x8] sm:$0xff]
      %v1339 = vld [vmem:[#allocation2 + $0x10] sm:$0xff]
      %v1340 = vld [vmem:[#allocation2 + $0x18] sm:$0xff]
      %v1341 = vpack.c.bf16 %v1338, %v1337
      %v1342 = vpack.c.bf16 %v1340, %v1339
      %v1343 = vld [vmem:[%s3] sm:$0xf]
      %v1344 = vld [vmem:[%s3 + $0x4] sm:$0xf]
      %v1345 = vld [vmem:[%s3 + $0x8] sm:$0xf]
      %v1346 = vld [vmem:[%s3 + $0xc] sm:$0xf]
      %v1347 = vld [vmem:[%s3 + $0x10] sm:$0xf]
      %v1348 = vld [vmem:[%s3 + $0x14] sm:$0xf]
      %v1349 = vld [vmem:[%s3 + $0x18] sm:$0xf]
      %v1350 = vld [vmem:[%s3 + $0x1c] sm:$0xf]
      %v1351 = vld [vmem:[%s4] sm:$0x1]
      %v1353 = vlaneseq
      %v1354 = vshrl.u32 %v1353, 7
      %v1355 = vsub.s32 0, %v1354
      %v1356 = vrot.slane %v1351, %v1355
      %v1366 = vunpack.c.l.b16 %v1343
      %v1367 = vunpack.c.l.b16 %v1344
      %v1368 = vunpack.c.l.b16 %v1345
      %v1369 = vunpack.c.l.b16 %v1346
      %v1370 = vunpack.c.l.b16 %v1347
      %v1371 = vunpack.c.l.b16 %v1348
      %v1372 = vunpack.c.l.b16 %v1349
      %v1373 = vunpack.c.l.b16 %v1350
      %v1374 = vpack.c.b16 %v1367, %v1366
      %v1375 = vpack.c.b16 %v1369, %v1368
      %v1376 = vpack.c.b16 %v1371, %v1370
      %v1377 = vpack.c.b16 %v1373, %v1372
      %vm1382 = vcmask 523264
      %v1384 = vsel %vm1382, %v1341, 0
      %v1387 = vsel %vm1382, %v1342, 0
      %1389 = vmatprep.subr.bf16.mxu0 0
      %1390 = vmatpush1.bf16.msra.mxu0 %v1374
      %1391 = vmatprep.subr.bf16.mxu0 0
      %1392 = vmatpush1.bf16.msra.mxu0 %v1375
      %1393 = vmatprep.subr.bf16.mxu0 0
      %1394 = vmatpush1.bf16.msra.mxu0 %v1376
      %1395 = vmatprep.subr.bf16.mxu0 0
      %1396 = vmatpush1.bf16.msra.mxu0 %v1377
      %1397 = vmatprep.subr.bf16.mxu0 0
      %1398 = vmatpush1.bf16.msra.mxu0 0
      %1399 = vmatprep.subr.bf16.mxu0 0
      %1400 = vmatpush1.bf16.msra.mxu0 0
      %1401 = vmatprep.subr.bf16.mxu0 0
      %1402 = vmatpush1.bf16.msra.mxu0 0
      %1403 = vmatprep.subr.bf16.mxu0 0
      %1404 = vmatpush1.bf16.msra.mxu0 0
      %1405 = vmatprep.subr.bf16.mxu0 0
      %1406 = vmatpush1.bf16.msra.mxu0 0
      %1407 = vmatprep.subr.bf16.mxu0 0
      %1408 = vmatpush1.bf16.msra.mxu0 0
      %1409 = vmatprep.subr.bf16.mxu0 0
      %1410 = vmatpush1.bf16.msra.mxu0 0
      %1411 = vmatprep.subr.bf16.mxu0 0
      %1412 = vmatpush1.bf16.msra.mxu0 0
      %1413 = vmatprep.subr.bf16.mxu0 0
      %1414 = vmatpush1.bf16.msra.mxu0 0
      %1415 = vmatprep.subr.bf16.mxu0 0
      %1416 = vmatpush1.bf16.msra.mxu0 0
      %1417 = vmatprep.subr.bf16.mxu0 0
      %1418 = vmatpush1.bf16.msra.mxu0 0
      %1419 = vmatprep.subr.bf16.mxu0 0
      %1420 = vmatpush1.bf16.msra.mxu0 0
      %1421 = vmatprep.mubr.bf16.mxu0 0
      %1422 = vmatmul.mubr.bf16.gmra.mrb[0].mxu0 %v1384
      %v1423 = vpop.f32.mrb[0].mxu0
      %v1424 = vadd.f32 %v1356, %v1423
      %v1425 = vpop.f32.mrb[0].mxu0
      %v1426 = vpop.f32.mrb[0].mxu0
      %v1427 = vadd.f32 %v1356, %v1426
      %v1428 = vpop.f32.mrb[0].mxu0
      %1429 = vmatprep.mubr.bf16.mxu0 0
      %1430 = vmatmul.mubr.bf16.gmra.mrb[0].mxu0 %v1387
      %v1431 = vpop.f32.mrb[0].mxu0
      %v1432 = vadd.f32 %v1356, %v1431
      %v1433 = vpop.f32.mrb[0].mxu0
      %v1434 = vpop.f32.mrb[0].mxu0
      %v1435 = vadd.f32 %v1356, %v1434
      %v1436 = vpop.f32.mrb[0].mxu0
      %1437 = vdwg.mxu0
      %v1438 = vld [vmem:[%s518] sm:$0xff]
      %v1439 = vld [vmem:[%s518 + $0x8] sm:$0xff]
      %v1440 = vld [vmem:[%s518 + $0x10] sm:$0xff]
      %v1441 = vld [vmem:[%s518 + $0x18] sm:$0xff]
      %v1442 = vadd.f32 %v1424, %v1438
      %v1443 = vadd.f32 %v1427, %v1439
      %v1444 = vadd.f32 %v1432, %v1440
      %v1445 = vadd.f32 %v1435, %v1441
      %v1446 = vld [vmem:[%s5] sm:$0x1]
      %v1447 = vld [vmem:[%s6] sm:$0x1]
      %v1448 = vsel %vm1382, %v1442, 0.0
      %1449 = vadd.xlane.f32.xlu0 %v1448
      %v1450 = vpop.xlane.xlu0 %1449
      %v1451 = vsel %vm1382, %v1443, 0.0
      %1452 = vadd.xlane.f32.xlu0 %v1451
      %v1453 = vpop.xlane.xlu0 %1452
      %v1454 = vsel %vm1382, %v1444, 0.0
      %1455 = vadd.xlane.f32.xlu0 %v1454
      %v1456 = vpop.xlane.xlu0 %1455
      %v1457 = vsel %vm1382, %v1445, 0.0
      %1458 = vadd.xlane.f32.xlu0 %v1457
      %v1459 = vpop.xlane.xlu0 %1458
      %v1460 = vrcp.pop 64.0
      %v1461 = vmul.f32 %v1450, %v1460
      %v1462 = vmul.f32 %v1453, %v1460
      %v1463 = vmul.f32 %v1456, %v1460
      %v1464 = vmul.f32 %v1459, %v1460
      %v1465 = vsub.f32 %v1442, %v1461
      %v1466 = vsub.f32 %v1443, %v1462
      %v1467 = vsub.f32 %v1444, %v1463
      %v1468 = vsub.f32 %v1445, %v1464
      %v1469 = vmul.f32 %v1465, %v1465
      %v1470 = vmul.f32 %v1466, %v1466
      %v1471 = vmul.f32 %v1467, %v1467
      %v1472 = vmul.f32 %v1468, %v1468
      %v1473 = vsel %vm1382, %v1469, 0.0
      %1474 = vadd.xlane.f32.xlu0 %v1473
      %v1475 = vpop.xlane.xlu0 %1474
      %v1476 = vsel %vm1382, %v1470, 0.0
      %1477 = vadd.xlane.f32.xlu0 %v1476
      %v1478 = vpop.xlane.xlu0 %1477
      %v1479 = vsel %vm1382, %v1471, 0.0
      %1480 = vadd.xlane.f32.xlu0 %v1479
      %v1481 = vpop.xlane.xlu0 %1480
      %v1482 = vsel %vm1382, %v1472, 0.0
      %1483 = vadd.xlane.f32.xlu0 %v1482
      %v1484 = vpop.xlane.xlu0 %1483
      %v1485 = vmul.f32 %v1475, %v1460
      %v1486 = vmul.f32 %v1478, %v1460
      %v1487 = vmul.f32 %v1481, %v1460
      %v1488 = vmul.f32 %v1484, %v1460
      %v1489 = vadd.f32 %v1485, 1e-05
      %v1490 = vadd.f32 %v1486, 1e-05
      %v1491 = vadd.f32 %v1487, 1e-05
      %v1492 = vadd.f32 %v1488, 1e-05
      %v1493 = vrsqrt.pop %v1489
      %v1494 = vrsqrt.pop %v1490
      %v1495 = vrsqrt.pop %v1491
      %v1496 = vrsqrt.pop %v1492
      %v1497 = vmul.f32 %v1465, %v1493
      %v1498 = vmul.f32 %v1466, %v1494
      %v1499 = vmul.f32 %v1467, %v1495
      %v1500 = vmul.f32 %v1468, %v1496
      %v1502 = vlaneseq
      %v1503 = vshrl.u32 %v1502, 7
      %v1504 = vsub.s32 0, %v1503
      %v1505 = vrot.slane %v1446, %v1504
      %v1507 = vmul.f32 %v1497, %v1505
      %v1508 = vmul.f32 %v1498, %v1505
      %v1509 = vmul.f32 %v1499, %v1505
      %v1510 = vmul.f32 %v1500, %v1505
      %v1512 = vlaneseq
      %v1513 = vshrl.u32 %v1512, 7
      %v1514 = vsub.s32 0, %v1513
      %v1515 = vrot.slane %v1447, %v1514
      %v1517 = vadd.f32 %v1507, %v1515
      %v1518 = vadd.f32 %v1508, %v1515
      %v1519 = vadd.f32 %v1509, %v1515
      %v1520 = vadd.f32 %v1510, %v1515
      %v1521 = vpack.c.bf16 %v1518, %v1517
      %v1522 = vpack.c.bf16 %v1520, %v1519
      %v1523 = vld [vmem:[%s7] sm:$0xf]
      %v1524 = vld [vmem:[%s7 + $0x4] sm:$0xf]
      %v1525 = vld [vmem:[%s7 + $0x8] sm:$0xf]
      %v1526 = vld [vmem:[%s7 + $0xc] sm:$0xf]
      %v1527 = vld [vmem:[%s7 + $0x10] sm:$0xf]
      %v1528 = vld [vmem:[%s7 + $0x14] sm:$0xf]
      %v1529 = vld [vmem:[%s7 + $0x18] sm:$0xf]
      %v1530 = vld [vmem:[%s7 + $0x1c] sm:$0xf]
      %v1531 = vld [vmem:[%s8] sm:$0x1]
      %v1533 = vlaneseq
      %v1534 = vshrl.u32 %v1533, 7
      %v1535 = vsub.s32 0, %v1534
      %v1536 = vrot.slane %v1531, %v1535
      %v1546 = vunpack.c.l.b16 %v1523
      %v1547 = vunpack.c.l.b16 %v1524
      %v1548 = vunpack.c.l.b16 %v1525
      %v1549 = vunpack.c.l.b16 %v1526
      %v1550 = vunpack.c.l.b16 %v1527
      %v1551 = vunpack.c.l.b16 %v1528
      %v1552 = vunpack.c.l.b16 %v1529
      %v1553 = vunpack.c.l.b16 %v1530
      %v1554 = vpack.c.b16 %v1547, %v1546
      %v1555 = vpack.c.b16 %v1549, %v1548
      %v1556 = vpack.c.b16 %v1551, %v1550
      %v1557 = vpack.c.b16 %v1553, %v1552
      %v1563 = vsel %vm1382, %v1521, 0
      %v1566 = vsel %vm1382, %v1522, 0
      %1568 = vmatprep.subr.bf16.mxu0 0
      %1569 = vmatpush1.bf16.msra.mxu0 %v1554
      %1570 = vmatprep.subr.bf16.mxu0 0
      %1571 = vmatpush1.bf16.msra.mxu0 %v1555
      %1572 = vmatprep.subr.bf16.mxu0 0
      %1573 = vmatpush1.bf16.msra.mxu0 %v1556
      %1574 = vmatprep.subr.bf16.mxu0 0
      %1575 = vmatpush1.bf16.msra.mxu0 %v1557
      %1576 = vmatprep.subr.bf16.mxu0 0
      %1577 = vmatpush1.bf16.msra.mxu0 0
      %1578 = vmatprep.subr.bf16.mxu0 0
      %1579 = vmatpush1.bf16.msra.mxu0 0
      %1580 = vmatprep.subr.bf16.mxu0 0
      %1581 = vmatpush1.bf16.msra.mxu0 0
      %1582 = vmatprep.subr.bf16.mxu0 0
      %1583 = vmatpush1.bf16.msra.mxu0 0
      %1584 = vmatprep.subr.bf16.mxu0 0
      %1585 = vmatpush1.bf16.msra.mxu0 0
      %1586 = vmatprep.subr.bf16.mxu0 0
      %1587 = vmatpush1.bf16.msra.mxu0 0
      %1588 = vmatprep.subr.bf16.mxu0 0
      %1589 = vmatpush1.bf16.msra.mxu0 0
      %1590 = vmatprep.subr.bf16.mxu0 0
      %1591 = vmatpush1.bf16.msra.mxu0 0
      %1592 = vmatprep.subr.bf16.mxu0 0
      %1593 = vmatpush1.bf16.msra.mxu0 0
      %1594 = vmatprep.subr.bf16.mxu0 0
      %1595 = vmatpush1.bf16.msra.mxu0 0
      %1596 = vmatprep.subr.bf16.mxu0 0
      %1597 = vmatpush1.bf16.msra.mxu0 0
      %1598 = vmatprep.subr.bf16.mxu0 0
      %1599 = vmatpush1.bf16.msra.mxu0 0
      %1600 = vmatprep.mubr.bf16.mxu0 0
      %1601 = vmatmul.mubr.bf16.gmra.mrb[0].mxu0 %v1563
      %v1602 = vpop.f32.mrb[0].mxu0
      %v1603 = vadd.f32 %v1536, %v1602
      %v1604 = vpop.f32.mrb[0].mxu0
      %v1605 = vpop.f32.mrb[0].mxu0
      %v1606 = vadd.f32 %v1536, %v1605
      %v1607 = vpop.f32.mrb[0].mxu0
      %1608 = vmatprep.mubr.bf16.mxu0 0
      %1609 = vmatmul.mubr.bf16.gmra.mrb[0].mxu0 %v1566
      %v1610 = vpop.f32.mrb[0].mxu0
      %v1611 = vadd.f32 %v1536, %v1610
      %v1612 = vpop.f32.mrb[0].mxu0
      %v1613 = vpop.f32.mrb[0].mxu0
      %v1614 = vadd.f32 %v1536, %v1613
      %v1615 = vpop.f32.mrb[0].mxu0
      %1616 = vdwg.mxu0
      %v1617 = vmax.f32 %v1603, 0.0
      %v1618 = vmax.f32 %v1606, 0.0
      %v1619 = vmax.f32 %v1611, 0.0
      %v1620 = vmax.f32 %v1614, 0.0
      %v1621 = vpack.c.bf16 %v1618, %v1617
      %v1622 = vpack.c.bf16 %v1620, %v1619
      %v1623 = vld [vmem:[%s9] sm:$0xf]
      %v1624 = vld [vmem:[%s9 + $0x4] sm:$0xf]
      %v1625 = vld [vmem:[%s9 + $0x8] sm:$0xf]
      %v1626 = vld [vmem:[%s9 + $0xc] sm:$0xf]
      %v1627 = vld [vmem:[%s9 + $0x10] sm:$0xf]
      %v1628 = vld [vmem:[%s9 + $0x14] sm:$0xf]
      %v1629 = vld [vmem:[%s9 + $0x18] sm:$0xf]
      %v1630 = vld [vmem:[%s9 + $0x1c] sm:$0xf]
      %v1631 = vld [vmem:[%s9 + $0x20] sm:$0xf]
      %v1632 = vld [vmem:[%s9 + $0x24] sm:$0xf]
      %v1633 = vld [vmem:[%s9 + $0x28] sm:$0xf]
      %v1634 = vld [vmem:[%s9 + $0x2c] sm:$0xf]
      %v1635 = vld [vmem:[%s9 + $0x30] sm:$0xf]
      %v1636 = vld [vmem:[%s9 + $0x34] sm:$0xf]
      %v1637 = vld [vmem:[%s9 + $0x38] sm:$0xf]
      %v1638 = vld [vmem:[%s9 + $0x3c] sm:$0xf]
      %v1639 = vld [vmem:[%s10] sm:$0x1]
      %v1641 = vlaneseq
      %v1642 = vshrl.u32 %v1641, 7
      %v1643 = vsub.s32 0, %v1642
      %v1644 = vrot.slane %v1639, %v1643
      %v1662 = vunpack.c.l.b16 %v1623
      %v1663 = vunpack.c.l.b16 %v1624
      %v1664 = vunpack.c.l.b16 %v1625
      %v1665 = vunpack.c.l.b16 %v1626
      %v1666 = vunpack.c.l.b16 %v1627
      %v1667 = vunpack.c.l.b16 %v1628
      %v1668 = vunpack.c.l.b16 %v1629
      %v1669 = vunpack.c.l.b16 %v1630
      %v1670 = vunpack.c.l.b16 %v1631
      %v1671 = vunpack.c.l.b16 %v1632
      %v1672 = vunpack.c.l.b16 %v1633
      %v1673 = vunpack.c.l.b16 %v1634
      %v1674 = vunpack.c.l.b16 %v1635
      %v1675 = vunpack.c.l.b16 %v1636
      %v1676 = vunpack.c.l.b16 %v1637
      %v1677 = vunpack.c.l.b16 %v1638
      %v1678 = vpack.c.b16 %v1663, %v1662
      %v1679 = vpack.c.b16 %v1665, %v1664
      %v1680 = vpack.c.b16 %v1667, %v1666
      %v1681 = vpack.c.b16 %v1669, %v1668
      %v1682 = vpack.c.b16 %v1671, %v1670
      %v1683 = vpack.c.b16 %v1673, %v1672
      %v1684 = vpack.c.b16 %v1675, %v1674
      %v1685 = vpack.c.b16 %v1677, %v1676
      %1694 = vmatprep.subr.bf16.mxu0 0
      %1695 = vmatpush1.bf16.msra.mxu0 %v1678
      %1696 = vmatprep.subr.bf16.mxu0 0
      %1697 = vmatpush1.bf16.msra.mxu0 %v1679
      %1698 = vmatprep.subr.bf16.mxu0 0
      %1699 = vmatpush1.bf16.msra.mxu0 %v1680
      %1700 = vmatprep.subr.bf16.mxu0 0
      %1701 = vmatpush1.bf16.msra.mxu0 %v1681
      %1702 = vmatprep.subr.bf16.mxu0 0
      %1703 = vmatpush1.bf16.msra.mxu0 %v1682
      %1704 = vmatprep.subr.bf16.mxu0 0
      %1705 = vmatpush1.bf16.msra.mxu0 %v1683
      %1706 = vmatprep.subr.bf16.mxu0 0
      %1707 = vmatpush1.bf16.msra.mxu0 %v1684
      %1708 = vmatprep.subr.bf16.mxu0 0
      %1709 = vmatpush1.bf16.msra.mxu0 %v1685
      %1710 = vmatprep.subr.bf16.mxu0 0
      %1711 = vmatpush1.bf16.msra.mxu0 0
      %1712 = vmatprep.subr.bf16.mxu0 0
      %1713 = vmatpush1.bf16.msra.mxu0 0
      %1714 = vmatprep.subr.bf16.mxu0 0
      %1715 = vmatpush1.bf16.msra.mxu0 0
      %1716 = vmatprep.subr.bf16.mxu0 0
      %1717 = vmatpush1.bf16.msra.mxu0 0
      %1718 = vmatprep.subr.bf16.mxu0 0
      %1719 = vmatpush1.bf16.msra.mxu0 0
      %1720 = vmatprep.subr.bf16.mxu0 0
      %1721 = vmatpush1.bf16.msra.mxu0 0
      %1722 = vmatprep.subr.bf16.mxu0 0
      %1723 = vmatpush1.bf16.msra.mxu0 0
      %1724 = vmatprep.subr.bf16.mxu0 0
      %1725 = vmatpush1.bf16.msra.mxu0 0
      %1726 = vmatprep.mubr.bf16.mxu0 0
      %1727 = vmatmul.mubr.bf16.gmra.mrb[0].mxu0 %v1621
      %v1728 = vpop.f32.mrb[0].mxu0
      %v1729 = vadd.f32 %v1644, %v1728
      %v1730 = vpop.f32.mrb[0].mxu0
      %v1731 = vpop.f32.mrb[0].mxu0
      %v1732 = vadd.f32 %v1644, %v1731
      %v1733 = vpop.f32.mrb[0].mxu0
      %1734 = vmatprep.mubr.bf16.mxu0 0
      %1735 = vmatmul.mubr.bf16.gmra.mrb[0].mxu0 %v1622
      %v1736 = vpop.f32.mrb[0].mxu0
      %v1737 = vadd.f32 %v1644, %v1736
      %v1738 = vpop.f32.mrb[0].mxu0
      %v1739 = vpop.f32.mrb[0].mxu0
      %v1740 = vadd.f32 %v1644, %v1739
      %v1741 = vpop.f32.mrb[0].mxu0
      %1742 = vdwg.mxu0
      %v1743 = vadd.f32 %v1517, %v1729
      %v1744 = vadd.f32 %v1518, %v1732
      %v1745 = vadd.f32 %v1519, %v1737
      %v1746 = vadd.f32 %v1520, %v1740
      %v1747 = vld [vmem:[%s11] sm:$0x1]
      %v1748 = vld [vmem:[%s12] sm:$0x1]
      %v1749 = vsel %vm1382, %v1743, 0.0
      %1750 = vadd.xlane.f32.xlu0 %v1749
      %v1751 = vpop.xlane.xlu0 %1750
      %v1752 = vsel %vm1382, %v1744, 0.0
      %1753 = vadd.xlane.f32.xlu0 %v1752
      %v1754 = vpop.xlane.xlu0 %1753
      %v1755 = vsel %vm1382, %v1745, 0.0
      %1756 = vadd.xlane.f32.xlu0 %v1755
      %v1757 = vpop.xlane.xlu0 %1756
      %v1758 = vsel %vm1382, %v1746, 0.0
      %1759 = vadd.xlane.f32.xlu0 %v1758
      %v1760 = vpop.xlane.xlu0 %1759
      %v1761 = vmul.f32 %v1751, %v1460
      %v1762 = vmul.f32 %v1754, %v1460
      %v1763 = vmul.f32 %v1757, %v1460
      %v1764 = vmul.f32 %v1760, %v1460
      %v1765 = vsub.f32 %v1743, %v1761
      %v1766 = vsub.f32 %v1744, %v1762
      %v1767 = vsub.f32 %v1745, %v1763
      %v1768 = vsub.f32 %v1746, %v1764
      %v1769 = vmul.f32 %v1765, %v1765
      %v1770 = vmul.f32 %v1766, %v1766
      %v1771 = vmul.f32 %v1767, %v1767
      %v1772 = vmul.f32 %v1768, %v1768
      %v1773 = vsel %vm1382, %v1769, 0.0
      %1774 = vadd.xlane.f32.xlu0 %v1773
      %v1775 = vpop.xlane.xlu0 %1774
      %v1776 = vsel %vm1382, %v1770, 0.0
      %1777 = vadd.xlane.f32.xlu0 %v1776
      %v1778 = vpop.xlane.xlu0 %1777
      %v1779 = vsel %vm1382, %v1771, 0.0
      %1780 = vadd.xlane.f32.xlu0 %v1779
      %v1781 = vpop.xlane.xlu0 %1780
      %v1782 = vsel %vm1382, %v1772, 0.0
      %1783 = vadd.xlane.f32.xlu0 %v1782
      %v1784 = vpop.xlane.xlu0 %1783
      %v1785 = vmul.f32 %v1775, %v1460
      %v1786 = vmul.f32 %v1778, %v1460
      %v1787 = vmul.f32 %v1781, %v1460
      %v1788 = vmul.f32 %v1784, %v1460
      %v1789 = vadd.f32 %v1785, 1e-05
      %v1790 = vadd.f32 %v1786, 1e-05
      %v1791 = vadd.f32 %v1787, 1e-05
      %v1792 = vadd.f32 %v1788, 1e-05
      %v1793 = vrsqrt.pop %v1789
      %v1794 = vrsqrt.pop %v1790
      %v1795 = vrsqrt.pop %v1791
      %v1796 = vrsqrt.pop %v1792
      %v1797 = vmul.f32 %v1765, %v1793
      %v1798 = vmul.f32 %v1766, %v1794
      %v1799 = vmul.f32 %v1767, %v1795
      %v1800 = vmul.f32 %v1768, %v1796
      %v1802 = vlaneseq
      %v1803 = vshrl.u32 %v1802, 7
      %v1804 = vsub.s32 0, %v1803
      %v1805 = vrot.slane %v1747, %v1804
      %v1807 = vmul.f32 %v1797, %v1805
      %v1808 = vmul.f32 %v1798, %v1805
      %v1809 = vmul.f32 %v1799, %v1805
      %v1810 = vmul.f32 %v1800, %v1805
      %v1812 = vlaneseq
      %v1813 = vshrl.u32 %v1812, 7
      %v1814 = vsub.s32 0, %v1813
      %v1815 = vrot.slane %v1748, %v1814
      %v1817 = vadd.f32 %v1807, %v1815
      %v1818 = vadd.f32 %v1808, %v1815
      %v1819 = vadd.f32 %v1809, %v1815
      %v1820 = vadd.f32 %v1810, %v1815
      %1821 = vst.msk [vmem:[%s524] sm:$0xff] %vm1382, %v1817
      %1822 = vst.msk [vmem:[%s524 + $0x8] sm:$0xff] %vm1382, %v1818
      %1823 = vst.msk [vmem:[%s524 + $0x10] sm:$0xff] %vm1382, %v1819
      %1824 = vst.msk [vmem:[%s524 + $0x18] sm:$0xff] %vm1382, %v1820
      %s1825 = smul.u32 4, %s26
      %p1826 = scmp.lt.s32.totalorder %s1825, 7
      %s1827 = scalar_select %p1826, %s1825, 7
      %s1828 = smul.addr %s1827, 8
      %s1829 = scalar_lea.vmem %s13, %s1828
      %s1830 = smul.u32 4, %s26
      %p1831 = scmp.lt.s32.totalorder %s1830, 7
      %s1832 = scalar_select %p1831, %s1830, 7
      %s1833 = smul.addr %s1832, 8
      %s1834 = scalar_lea.vmem %s14, %s1833
      // Predicated region
      $region73: #{deformable_decoder_forward.8} parent=71 // pred_check
        %p1835 = pneg %p332
      $region74: #{deformable_decoder_forward.8} parent=71 // pred_check_branch
        %1837 = sbr.rel (%p1835) target = $region76
      $region75: #{deformable_decoder_forward.8} parent=71 // pred_region
        %s1838 = smul.u32 4, %s26
      $region76: #{deformable_decoder_forward.8} parent=71 // pred_fallthru
        _
      // Predicated region
      $region77: #{deformable_decoder_forward.8} parent=71 // pred_check
        %p1839 = pneg %p358
      $region78: #{deformable_decoder_forward.8} parent=71 // pred_check_branch
        %1841 = sbr.rel (%p1839) target = $region80
      $region79: #{deformable_decoder_forward.8} parent=71 // pred_region
        %s1842 = smul.u32 4, %s26
      $region80: #{deformable_decoder_forward.8} parent=71 // pred_fallthru
        _
    $region72: #{deformable_decoder_forward.8} parent=5 // pred_fallthru
      _
    %p1843 = scmp.le.s32.totalorder 2, %s21
    // Predicated region
    $region81: #{deformable_decoder_forward.8} parent=5 // pred_check
      %p1844 = pneg %p1843
    $region82: #{deformable_decoder_forward.8} parent=5 // pred_check_branch
      %1846 = sbr.rel (%p1844) target = $region84
    $region83: #{deformable_decoder_forward.8} parent=5 // pred_region
      %s1847 = ssub.s32 %s21, 2
      // Predicated region
      $region85: #{deformable_decoder_forward.8} parent=83 // pred_check
        %p1848 = pneg %p338
      $region86: #{deformable_decoder_forward.8} parent=83 // pred_check_branch
        %1850 = sbr.rel (%p1848) target = $region88
      $region87: #{deformable_decoder_forward.8} parent=83 // pred_region
        %s1851 = smul.u32 4, %s27
        %p1852 = scmp.lt.s32.totalorder %s1851, 7
        %s1853 = scalar_select %p1852, %s1851, 7
        %s1854 = smul.addr %s1853, 8
        %s1855 = scalar_lea.vmem %s13, %s1854
      $region88: #{deformable_decoder_forward.8} parent=83 // pred_fallthru
        _
      // Predicated region
      $region89: #{deformable_decoder_forward.8} parent=83 // pred_check
        %p1856 = pneg %p364
      $region90: #{deformable_decoder_forward.8} parent=83 // pred_check_branch
        %1858 = sbr.rel (%p1856) target = $region92
      $region91: #{deformable_decoder_forward.8} parent=83 // pred_region
        %s1859 = smul.u32 4, %s27
        %p1860 = scmp.lt.s32.totalorder %s1859, 7
        %s1861 = scalar_select %p1860, %s1859, 7
        %s1862 = smul.addr %s1861, 8
        %s1863 = scalar_lea.vmem %s14, %s1862
      $region92: #{deformable_decoder_forward.8} parent=83 // pred_fallthru
        _
    $region84: #{deformable_decoder_forward.8} parent=5 // pred_fallthru
      _
  $region6: #{deformable_decoder_forward.8} parent=0 // loop_footer
    %s25 = sadd.s32 1, %s21
  $region7: #{deformable_decoder_forward.8} parent=0 // loop_footer_branch
    %20 = sbr.rel target = $region3
  $region8: #{deformable_decoder_forward.8} parent=0 // loop_exit
    _

</llo_original>
